<compile_context>
chip_gen: v7x
topology: tpu7x:2x2x1
jax: 0.10.0
libtpu: 0.0.40
codegen_flags: <defaults>
</compile_context>

<pallas_src>
import functools

import jax
import jax.numpy as jnp
from jax.experimental import pallas as pl
from jax.experimental.pallas import tpu as pltpu


def _pick_tile(n, candidates):
    """Largest candidate that divides n, else n itself (full-extent block)."""
    for c in candidates:
        if n % c == 0:
            return c
    return n


# ----------------------------------------------------------------------------
# Kernel 1: per-example neighbor aggregation  (rows @ table)  + row degrees.
#   adj_rows : [B, N]  bf16   (gathered adjacency rows)
#   h        : [N, D]  bf16   (embedding table)
#   agg      : [B, D]  f32    (= adj_rows @ h)
#   deg      : [B, 1]  f32    (= row-sum of adj_rows)
# grid = (B/TB, N/TN); reduction over the contraction axis (last, "arbitrary").
# ----------------------------------------------------------------------------
def gcn_row_agg_kernel(adj_ref, h_ref, agg_ref, deg_ref):
    k = pl.program_id(1)

    @pl.when(k == 0)
    def _init():
        agg_ref[...] = jnp.zeros_like(agg_ref)
        deg_ref[...] = jnp.zeros_like(deg_ref)

    a = adj_ref[...]                                            # [TB, TN] bf16
    # MXU: bf16 x bf16 -> f32 accumulate.
    agg_ref[...] += jnp.dot(a, h_ref[...], preferred_element_type=jnp.float32)
    # Degrees via XLU reduce (free slot) instead of an N=1 MXU matmul.
    deg_ref[...] += jnp.sum(a.astype(jnp.float32), axis=1, keepdims=True)


def row_aggregate(adj_rows, h):
    B, N = adj_rows.shape
    D = h.shape[1]
    TB = _pick_tile(B, (256, 128, 64, 32, 16, 8))
    TN = _pick_tile(N, (512, 256, 128))
    grid = (B // TB, N // TN)

    return pl.pallas_call(
        gcn_row_agg_kernel,
        grid=grid,
        in_specs=[
            pl.BlockSpec((TB, TN), lambda i, k: (i, k)),        # adjacency rows
            pl.BlockSpec((TN, D), lambda i, k: (k, 0)),         # embedding table
        ],
        out_specs=[
            pl.BlockSpec((TB, D), lambda i, k: (i, 0)),         # aggregate (resident over k)
            pl.BlockSpec((TB, 1), lambda i, k: (i, 0)),         # degree    (resident over k)
        ],
        out_shape=(
            jax.ShapeDtypeStruct((B, D), jnp.float32),
            jax.ShapeDtypeStruct((B, 1), jnp.float32),
        ),
        compiler_params=pltpu.CompilerParams(
            dimension_semantics=("parallel", "arbitrary")),
    )(adj_rows, h)


# ----------------------------------------------------------------------------
# Kernel 2: fused prediction head, feature-major (batch on the lane axis).
# Per-example inputs are [D, TB] / [1, TB]; weights are PyTorch-layout
# (out_features, in_features) with column biases, resident across batch tiles.
# Output block is a lane-dense [1, TB] row.
# ----------------------------------------------------------------------------
def predict_kernel(ue_ref, ie_ref, gih_ref, guh_ref, ideg_ref, udeg_ref,
                   ub_ref, ib_ref,
                   wg_ref, bg_ref, w1_ref, b1_ref, w2_ref, b2_ref,
                   w3_ref, b3_ref, out_ref):
    D = ue_ref.shape[0]

    # Degree normalization: (deg + 1) reciprocal on the EUP, then multiply.
    inv_i = pl.reciprocal(ideg_ref[...] + 1.0, approx=True)     # [1, TB]
    inv_u = pl.reciprocal(udeg_ref[...] + 1.0, approx=True)     # [1, TB]
    gih = gih_ref[...] * inv_i                                  # [D, TB]
    guh = guh_ref[...] * inv_u                                  # [D, TB]
    # (dropout p=0.3 is identity in eval mode)

    # Fused GCN linears: block-diag(Wgu, Wgi) @ [guh ; gih] + [bgu ; bgi], relu.
    g = jnp.concatenate([guh, gih], axis=0)                     # [2D, TB]
    g = jnp.maximum(
        jnp.dot(wg_ref[...], g, preferred_element_type=jnp.float32) + bg_ref[...],
        0.0)                                                    # [2D, TB]
    gu = g[:D, :]                                               # [D, TB]
    gi = g[D:, :]                                               # [D, TB]

    ue = ue_ref[...]
    ie = ie_ref[...]
    x = jnp.concatenate([ue * ie, ue * gi, gu * ie, gu * gi], axis=0)   # [4D, TB]

    x1 = jnp.tanh(jnp.dot(w1_ref[...], x, preferred_element_type=jnp.float32)
                  + b1_ref[...])                                # [2H, TB]
    x2 = jnp.tanh(jnp.dot(w2_ref[...], x1, preferred_element_type=jnp.float32)
                  + b2_ref[...])                                # [H, TB]
    # H -> 1 projection as multiply + sublane reduce (avoids a 1-wide matmul).
    x3 = jnp.sum(x2 * w3_ref[...], axis=0, keepdims=True) + b3_ref[...]   # [1, TB]

    out_ref[...] = x3 + ub_ref[...] + ib_ref[...]               # lane-dense [1, TB]


def predict_head(ue, ie, gih, guh, ideg, udeg, ub, ib,
                 wg, bg, w1, b1, w2, b2, w3, b3):
    D, B = ue.shape
    TB = _pick_tile(B, (512, 256, 128))
    grid = (B // TB,)

    feat = lambda i: (0, i)       # batch-tiled (batch on lanes)
    const = lambda i: (0, 0)      # weights/biases stay resident across tiles

    in_specs = [
        pl.BlockSpec((D, TB), feat), pl.BlockSpec((D, TB), feat),
        pl.BlockSpec((D, TB), feat), pl.BlockSpec((D, TB), feat),
        pl.BlockSpec((1, TB), feat), pl.BlockSpec((1, TB), feat),
        pl.BlockSpec((1, TB), feat), pl.BlockSpec((1, TB), feat),
        pl.BlockSpec(wg.shape, const), pl.BlockSpec(bg.shape, const),
        pl.BlockSpec(w1.shape, const), pl.BlockSpec(b1.shape, const),
        pl.BlockSpec(w2.shape, const), pl.BlockSpec(b2.shape, const),
        pl.BlockSpec(w3.shape, const), pl.BlockSpec(b3.shape, const),
    ]
    out = pl.pallas_call(
        predict_kernel,
        grid=grid,
        in_specs=in_specs,
        out_specs=pl.BlockSpec((1, TB), feat),
        out_shape=jax.ShapeDtypeStruct((1, B), jnp.float32),
        compiler_params=pltpu.CompilerParams(dimension_semantics=("parallel",)),
    )(ue, ie, gih, guh, ideg, udeg, ub, ib, wg, bg, w1, b1, w2, b2, w3, b3)
    return out


# ----------------------------------------------------------------------------
# Parameters.  Linear weights stored PyTorch-style (out_features, in_features)
# with (out_features, 1) column biases, EXCEPT w3 which is stored (H, 1) so the
# head can use a reduce instead of a 1-wide matmul.
# ----------------------------------------------------------------------------
def init_params(key, n_user, n_item, embedding_size=64, hidden_size=64):
    ks = jax.random.split(key, 12)

    def xavier(k, shape):
        bound = jnp.sqrt(6.0 / (shape[0] + shape[1]))
        return jax.random.uniform(k, shape, jnp.float32, -bound, bound)

    D, H = embedding_size, hidden_size
    return {
        "user_embedding": xavier(ks[0], (n_user, D)),
        "item_embedding": xavier(ks[1], (n_item, D)),
        "wgu": xavier(ks[2], (D, D)), "bgu": 0.1 * xavier(ks[3], (D, 1)),
        "wgi": xavier(ks[4], (D, D)), "bgi": 0.1 * xavier(ks[5], (D, 1)),
        "w1": xavier(ks[6], (2 * H, 4 * D)), "b1": 0.1 * xavier(ks[7], (2 * H, 1)),
        "w2": xavier(ks[8], (H, 2 * H)),     "b2": 0.1 * xavier(ks[9], (H, 1)),
        "w3": xavier(ks[10], (H, 1)),        "b3": 0.1 * xavier(ks[11], (1, 1)),
        "user_bias": jnp.zeros((n_user, 1), jnp.float32),   # reset_parameters -> zeros
        "item_bias": jnp.zeros((n_item, 1), jnp.float32),
    }


# ----------------------------------------------------------------------------
# Forward (glue: dense adjacency scatter, id gathers, layout plumbing).
# ----------------------------------------------------------------------------
@functools.partial(jax.jit, static_argnames=("n_user", "n_item"))
def gcmc_forward(params, x, edge_sparse, n_user, n_item):
    user_id = x[:, 0]
    item_id = x[:, 1]
    user_h = params["user_embedding"]
    item_h = params["item_embedding"]
    D = user_h.shape[1]

    # Dense adjacency in both orientations (duplicate edges are summed, matching
    # torch.sparse.mm on an uncoalesced ones-valued COO tensor).  Kept as glue.
    adj = jnp.zeros((n_user, n_item), jnp.float32).at[
        edge_sparse[0], edge_sparse[1]].add(1.0)
    adj_t = jnp.zeros((n_item, n_user), jnp.float32).at[
        edge_sparse[1], edge_sparse[0]].add(1.0)

    # Only the B consumed rows are aggregated (O(B*N*D) instead of O(n_user*n_item*D));
    # bf16 halves HBM/VMEM traffic of the dominant adjacency tensor (counts < 256
    # are exact in bf16).
    adj_u = jnp.take(adj, user_id, axis=0).astype(jnp.bfloat16)     # [B, n_item]
    adj_i = jnp.take(adj_t, item_id, axis=0).astype(jnp.bfloat16)   # [B, n_user]

    # --- Pallas kernel 1 (x2): aggregation + degrees ---
    gih, ideg = row_aggregate(adj_u, item_h.astype(jnp.bfloat16))   # [B, D], [B, 1]
    guh, udeg = row_aggregate(adj_i, user_h.astype(jnp.bfloat16))   # [B, D], [B, 1]

    # Gather per-example embeddings / biases; present everything feature-major
    # (batch on the lane axis) so the head's output store is lane-dense.
    ue_t = jnp.take(user_h, user_id, axis=0).T                      # [D, B]
    ie_t = jnp.take(item_h, item_id, axis=0).T                      # [D, B]
    ub_t = jnp.take(params["user_bias"], user_id, axis=0).T         # [1, B]
    ib_t = jnp.take(params["item_bias"], item_id, axis=0).T         # [1, B]

    # Fuse the two small GCN linears into one block-diagonal matmul.
    wg = jnp.zeros((2 * D, 2 * D), jnp.float32)
    wg = wg.at[:D, :D].set(params["wgu"]).at[D:, D:].set(params["wgi"])
    bg = jnp.concatenate([params["bgu"], params["bgi"]], axis=0)    # [2D, 1]

    # --- Pallas kernel 2: fused prediction head ---
    out = predict_head(ue_t, ie_t, gih.T, guh.T, ideg.T, udeg.T, ub_t, ib_t,
                       wg, bg, params["w1"], params["b1"],
                       params["w2"], params["b2"],
                       params["w3"], params["b3"])
    return out.reshape(-1)


# ----------------------------------------------------------------------------
# Pure-JAX reference (mirrors the bf16 cast of the aggregation inputs so the
# only kernel-vs-reference differences are accumulation order and the approx
# EUP reciprocal).
# ----------------------------------------------------------------------------
def gcmc_reference(params, x, edge_sparse, n_user, n_item):
    user_id, item_id = x[:, 0], x[:, 1]
    user_h, item_h = params["user_embedding"], params["item_embedding"]
    adj = jnp.zeros((n_user, n_item), jnp.float32).at[
        edge_sparse[0], edge_sparse[1]].add(1.0)
    adj_t = jnp.zeros((n_item, n_user), jnp.float32).at[
        edge_sparse[1], edge_sparse[0]].add(1.0)

    bf = lambda a: a.astype(jnp.bfloat16).astype(jnp.float32)
    adj_u = bf(adj[user_id])
    adj_i = bf(adj_t[item_id])
    gih = adj_u @ bf(item_h)
    guh = adj_i @ bf(user_h)
    item_din = jnp.sum(adj_u, axis=1, keepdims=True) + 1.0
    user_din = jnp.sum(adj_i, axis=1, keepdims=True) + 1.0
    gih = gih / item_din
    guh = guh / user_din

    gu = jax.nn.relu(guh @ params["wgu"].T + params["bgu"].T)
    gi = jax.nn.relu(gih @ params["wgi"].T + params["bgi"].T)
    ue, ie = user_h[user_id], item_h[item_id]
    xc = jnp.concatenate([ue * ie, ue * gi, gu * ie, gu * gi], axis=-1)
    x1 = jnp.tanh(xc @ params["w1"].T + params["b1"].T)
    x2 = jnp.tanh(x1 @ params["w2"].T + params["b2"].T)
    x3 = (x2 @ params["w3"] + params["b3"]).reshape(-1)
    return (x3 + params["user_bias"][user_id].reshape(-1)
            + params["item_bias"][item_id].reshape(-1))


if __name__ == "__main__":
    n_user, n_item = 640, 384
    embedding_size = hidden_size = 64
    batch = 384            # -> 3 head tiles of 128 (lane-dense output rows)
    n_edges = 8192

    key = jax.random.PRNGKey(0)
    kp, kx1, kx2, ke1, ke2 = jax.random.split(key, 5)

    params = init_params(kp, n_user, n_item, embedding_size, hidden_size)

    # x: [batch, 2] -> (user_id, item_id)
    x = jnp.stack([
        jax.random.randint(kx1, (batch,), 0, n_user),
        jax.random.randint(kx2, (batch,), 0, n_item),
    ], axis=1).astype(jnp.int32)

    # edge_sparse: [2, E] COO user->item edges
    edge_sparse = jnp.stack([
        jax.random.randint(ke1, (n_edges,), 0, n_user),
        jax.random.randint(ke2, (n_edges,), 0, n_item),
    ], axis=0).astype(jnp.int32)

    out = gcmc_forward(params, x, edge_sparse, n_user, n_item)
    out = jax.block_until_ready(out)

    ref = gcmc_reference(params, x, edge_sparse, n_user, n_item)
    assert out.shape == (batch,)
    # Tolerance covers bf16 aggregation inputs + approx EUP reciprocal.
    assert jnp.allclose(out, ref, atol=5e-2, rtol=5e-2), (
        float(jnp.max(jnp.abs(out - ref))))

    print("KERNEL_OK")
</pallas_src>

<mosaic_0001>
module attributes {stable_mosaic.version = 11 : i64} {
  func.func private @main(%arg0: i32) attributes {dimension_semantics = [#tpu.dimension_semantics<core_parallel>], iteration_bounds = array<i64: 2>, tpu.core_type = #tpu.core_type<sc_scalar_subcore>, window_params = []} {
    return
  }
}

module attributes {stable_mosaic.version = 11 : i64} {
  func.func private @main(%arg0: i32) attributes {dimension_semantics = [#tpu.dimension_semantics<core_parallel>], iteration_bounds = array<i64: 2>, tpu.core_type = #tpu.core_type<sc_scalar_subcore>, window_params = []} {
    return
  }
}

module attributes {stable_mosaic.version = 11 : i64} {
  func.func @gcn_row_agg_kernel(%arg0: i32, %arg1: i32, %arg2: memref<128x128xbf16, #tpu.memory_space<vmem>>, %arg3: memref<128x64xbf16, #tpu.memory_space<vmem>>, %arg4: memref<128x64xf32, #tpu.memory_space<vmem>>, %arg5: memref<128x1xf32, #tpu.memory_space<vmem>>) attributes {dimension_semantics = [#tpu.dimension_semantics<parallel>, #tpu.dimension_semantics<arbitrary>], iteration_bounds = array<i64: 3, 5>, scalar_prefetch = 0 : i64, scratch_operands = 0 : i64, tpu.core_type = #tpu.core_type<tc>, window_params = [{transform_indices = @transform_0, window_bounds = array<i64: 128, 128>}, {transform_indices = @transform_1, window_bounds = array<i64: 128, 64>}, {transform_indices = @transform_2, window_bounds = array<i64: 128, 64>}, {transform_indices = @transform_3, window_bounds = array<i64: 128, 1>}]} {
    %c0_i32 = arith.constant 0 : i32
    %0 = arith.cmpi eq, %arg1, %c0_i32 : i32
    %1 = arith.extui %0 : i1 to i32
    %c0_i32_0 = arith.constant 0 : i32
    %2 = arith.cmpi ne, %1, %c0_i32_0 : i32
    scf.if %2 {
      %cst_13 = arith.constant 0.000000e+00 : f32
      %15 = vector.broadcast %cst_13 : f32 to vector<128x64xf32>
      %c0_14 = arith.constant 0 : index
      %c0_15 = arith.constant 0 : index
      %16 = vector.load %arg4[%c0_14, %c0_15] : memref<128x64xf32, #tpu.memory_space<vmem>>, vector<128x64xf32>
      tpu.vector_store %arg4[%c0_14, %c0_15], %15 {strides = array<i32>} : memref<128x64xf32, #tpu.memory_space<vmem>>, vector<128x64xf32>,
      %cst_16 = arith.constant 0.000000e+00 : f32
      %17 = vector.broadcast %cst_16 : f32 to vector<128x1xf32>
      %c0_17 = arith.constant 0 : index
      %c0_18 = arith.constant 0 : index
      %18 = vector.load %arg5[%c0_17, %c0_18] : memref<128x1xf32, #tpu.memory_space<vmem>>, vector<128x1xf32>
      tpu.vector_store %arg5[%c0_17, %c0_18], %17 {strides = array<i32>} : memref<128x1xf32, #tpu.memory_space<vmem>>, vector<128x1xf32>,
    } else {
    }
    %c0 = arith.constant 0 : index
    %c0_1 = arith.constant 0 : index
    %3 = vector.load %arg2[%c0, %c0_1] : memref<128x128xbf16, #tpu.memory_space<vmem>>, vector<128x128xbf16>
    %c0_2 = arith.constant 0 : index
    %c0_3 = arith.constant 0 : index
    %4 = vector.load %arg4[%c0_2, %c0_3] : memref<128x64xf32, #tpu.memory_space<vmem>>, vector<128x64xf32>
    %c0_4 = arith.constant 0 : index
    %c0_5 = arith.constant 0 : index
    %5 = vector.load %arg3[%c0_4, %c0_5] : memref<128x64xbf16, #tpu.memory_space<vmem>>, vector<128x64xbf16>
    %cst = arith.constant dense<0.000000e+00> : vector<128x64xf32>
    %6 = tpu.matmul %3, %5, %cst {dimension_numbers = #tpu.dot_dimension_numbers<[1], [0], [0], [1], [0, 0, 1, 1], [], []>} : vector<128x128xbf16>, vector<128x64xbf16>, vector<128x64xf32> -> vector<128x64xf32>
    %7 = arith.addf %4, %6 : vector<128x64xf32>
    %c0_6 = arith.constant 0 : index
    %c0_7 = arith.constant 0 : index
    %8 = vector.load %arg4[%c0_6, %c0_7] : memref<128x64xf32, #tpu.memory_space<vmem>>, vector<128x64xf32>
    tpu.vector_store %arg4[%c0_6, %c0_7], %7 {strides = array<i32>} : memref<128x64xf32, #tpu.memory_space<vmem>>, vector<128x64xf32>,
    %c0_8 = arith.constant 0 : index
    %c0_9 = arith.constant 0 : index
    %9 = vector.load %arg5[%c0_8, %c0_9] : memref<128x1xf32, #tpu.memory_space<vmem>>, vector<128x1xf32>
    %10 = arith.extf %3 : vector<128x128xbf16> to vector<128x128xf32>
    %cst_10 = arith.constant dense<0.000000e+00> : vector<128xf32>
    %11 = vector.multi_reduction <add>, %10, %cst_10 [1] : vector<128x128xf32> to vector<128xf32>
    %12 = vector.shape_cast %11 : vector<128xf32> to vector<128x1xf32>
    %13 = arith.addf %9, %12 : vector<128x1xf32>
    %c0_11 = arith.constant 0 : index
    %c0_12 = arith.constant 0 : index
    %14 = vector.load %arg5[%c0_11, %c0_12] : memref<128x1xf32, #tpu.memory_space<vmem>>, vector<128x1xf32>
    tpu.vector_store %arg5[%c0_11, %c0_12], %13 {strides = array<i32>} : memref<128x1xf32, #tpu.memory_space<vmem>>, vector<128x1xf32>,
    return
  }
  func.func @transform_0(%arg0: i32, %arg1: i32) -> (i32, i32) {
    %c0_i32 = arith.constant 0 : i32
    return %arg0, %arg1 : i32, i32
  }
  func.func @transform_1(%arg0: i32, %arg1: i32) -> (i32, i32) {
    %c0_i32 = arith.constant 0 : i32
    %c0_i32_0 = arith.constant 0 : i32
    return %arg1, %c0_i32 : i32, i32
  }
  func.func @transform_2(%arg0: i32, %arg1: i32) -> (i32, i32) {
    %c0_i32 = arith.constant 0 : i32
    %c0_i32_0 = arith.constant 0 : i32
    return %arg0, %c0_i32 : i32, i32
  }
  func.func @transform_3(%arg0: i32, %arg1: i32) -> (i32, i32) {
    %c0_i32 = arith.constant 0 : i32
    %c0_i32_0 = arith.constant 0 : i32
    return %arg0, %c0_i32 : i32, i32
  }
}

module attributes {stable_mosaic.version = 11 : i64} {
  func.func @gcn_row_agg_kernel(%arg0: i32, %arg1: i32, %arg2: memref<128x128xbf16, #tpu.memory_space<vmem>>, %arg3: memref<128x64xbf16, #tpu.memory_space<vmem>>, %arg4: memref<128x64xf32, #tpu.memory_space<vmem>>, %arg5: memref<128x1xf32, #tpu.memory_space<vmem>>) attributes {dimension_semantics = [#tpu.dimension_semantics<parallel>, #tpu.dimension_semantics<arbitrary>], iteration_bounds = array<i64: 3, 3>, scalar_prefetch = 0 : i64, scratch_operands = 0 : i64, tpu.core_type = #tpu.core_type<tc>, window_params = [{transform_indices = @transform_0, window_bounds = array<i64: 128, 128>}, {transform_indices = @transform_1, window_bounds = array<i64: 128, 64>}, {transform_indices = @transform_2, window_bounds = array<i64: 128, 64>}, {transform_indices = @transform_3, window_bounds = array<i64: 128, 1>}]} {
    %c0_i32 = arith.constant 0 : i32
    %0 = arith.cmpi eq, %arg1, %c0_i32 : i32
    %1 = arith.extui %0 : i1 to i32
    %c0_i32_0 = arith.constant 0 : i32
    %2 = arith.cmpi ne, %1, %c0_i32_0 : i32
    scf.if %2 {
      %cst_13 = arith.constant 0.000000e+00 : f32
      %15 = vector.broadcast %cst_13 : f32 to vector<128x64xf32>
      %c0_14 = arith.constant 0 : index
      %c0_15 = arith.constant 0 : index
      %16 = vector.load %arg4[%c0_14, %c0_15] : memref<128x64xf32, #tpu.memory_space<vmem>>, vector<128x64xf32>
      tpu.vector_store %arg4[%c0_14, %c0_15], %15 {strides = array<i32>} : memref<128x64xf32, #tpu.memory_space<vmem>>, vector<128x64xf32>,
      %cst_16 = arith.constant 0.000000e+00 : f32
      %17 = vector.broadcast %cst_16 : f32 to vector<128x1xf32>
      %c0_17 = arith.constant 0 : index
      %c0_18 = arith.constant 0 : index
      %18 = vector.load %arg5[%c0_17, %c0_18] : memref<128x1xf32, #tpu.memory_space<vmem>>, vector<128x1xf32>
      tpu.vector_store %arg5[%c0_17, %c0_18], %17 {strides = array<i32>} : memref<128x1xf32, #tpu.memory_space<vmem>>, vector<128x1xf32>,
    } else {
    }
    %c0 = arith.constant 0 : index
    %c0_1 = arith.constant 0 : index
    %3 = vector.load %arg2[%c0, %c0_1] : memref<128x128xbf16, #tpu.memory_space<vmem>>, vector<128x128xbf16>
    %c0_2 = arith.constant 0 : index
    %c0_3 = arith.constant 0 : index
    %4 = vector.load %arg4[%c0_2, %c0_3] : memref<128x64xf32, #tpu.memory_space<vmem>>, vector<128x64xf32>
    %c0_4 = arith.constant 0 : index
    %c0_5 = arith.constant 0 : index
    %5 = vector.load %arg3[%c0_4, %c0_5] : memref<128x64xbf16, #tpu.memory_space<vmem>>, vector<128x64xbf16>
    %cst = arith.constant dense<0.000000e+00> : vector<128x64xf32>
    %6 = tpu.matmul %3, %5, %cst {dimension_numbers = #tpu.dot_dimension_numbers<[1], [0], [0], [1], [0, 0, 1, 1], [], []>} : vector<128x128xbf16>, vector<128x64xbf16>, vector<128x64xf32> -> vector<128x64xf32>
    %7 = arith.addf %4, %6 : vector<128x64xf32>
    %c0_6 = arith.constant 0 : index
    %c0_7 = arith.constant 0 : index
    %8 = vector.load %arg4[%c0_6, %c0_7] : memref<128x64xf32, #tpu.memory_space<vmem>>, vector<128x64xf32>
    tpu.vector_store %arg4[%c0_6, %c0_7], %7 {strides = array<i32>} : memref<128x64xf32, #tpu.memory_space<vmem>>, vector<128x64xf32>,
    %c0_8 = arith.constant 0 : index
    %c0_9 = arith.constant 0 : index
    %9 = vector.load %arg5[%c0_8, %c0_9] : memref<128x1xf32, #tpu.memory_space<vmem>>, vector<128x1xf32>
    %10 = arith.extf %3 : vector<128x128xbf16> to vector<128x128xf32>
    %cst_10 = arith.constant dense<0.000000e+00> : vector<128xf32>
    %11 = vector.multi_reduction <add>, %10, %cst_10 [1] : vector<128x128xf32> to vector<128xf32>
    %12 = vector.shape_cast %11 : vector<128xf32> to vector<128x1xf32>
    %13 = arith.addf %9, %12 : vector<128x1xf32>
    %c0_11 = arith.constant 0 : index
    %c0_12 = arith.constant 0 : index
    %14 = vector.load %arg5[%c0_11, %c0_12] : memref<128x1xf32, #tpu.memory_space<vmem>>, vector<128x1xf32>
    tpu.vector_store %arg5[%c0_11, %c0_12], %13 {strides = array<i32>} : memref<128x1xf32, #tpu.memory_space<vmem>>, vector<128x1xf32>,
    return
  }
  func.func @transform_0(%arg0: i32, %arg1: i32) -> (i32, i32) {
    %c0_i32 = arith.constant 0 : i32
    return %arg0, %arg1 : i32, i32
  }
  func.func @transform_1(%arg0: i32, %arg1: i32) -> (i32, i32) {
    %c0_i32 = arith.constant 0 : i32
    %c0_i32_0 = arith.constant 0 : i32
    return %arg1, %c0_i32 : i32, i32
  }
  func.func @transform_2(%arg0: i32, %arg1: i32) -> (i32, i32) {
    %c0_i32 = arith.constant 0 : i32
    %c0_i32_0 = arith.constant 0 : i32
    return %arg0, %c0_i32 : i32, i32
  }
  func.func @transform_3(%arg0: i32, %arg1: i32) -> (i32, i32) {
    %c0_i32 = arith.constant 0 : i32
    %c0_i32_0 = arith.constant 0 : i32
    return %arg0, %c0_i32 : i32, i32
  }
}

module attributes {stable_mosaic.version = 11 : i64} {
  func.func @predict_kernel(%arg0: i32, %arg1: memref<64x128xf32, #tpu.memory_space<vmem>>, %arg2: memref<64x128xf32, #tpu.memory_space<vmem>>, %arg3: memref<64x128xf32, #tpu.memory_space<vmem>>, %arg4: memref<64x128xf32, #tpu.memory_space<vmem>>, %arg5: memref<1x128xf32, #tpu.memory_space<vmem>>, %arg6: memref<1x128xf32, #tpu.memory_space<vmem>>, %arg7: memref<1x128xf32, #tpu.memory_space<vmem>>, %arg8: memref<1x128xf32, #tpu.memory_space<vmem>>, %arg9: memref<128x128xf32, #tpu.memory_space<vmem>>, %arg10: memref<128x1xf32, #tpu.memory_space<vmem>>, %arg11: memref<128x256xf32, #tpu.memory_space<vmem>>, %arg12: memref<128x1xf32, #tpu.memory_space<vmem>>, %arg13: memref<64x128xf32, #tpu.memory_space<vmem>>, %arg14: memref<64x1xf32, #tpu.memory_space<vmem>>, %arg15: memref<64x1xf32, #tpu.memory_space<vmem>>, %arg16: memref<1x1xf32, #tpu.memory_space<vmem>>, %arg17: memref<1x128xf32, #tpu.memory_space<vmem>>) attributes {dimension_semantics = [#tpu.dimension_semantics<parallel>], iteration_bounds = array<i64: 3>, scalar_prefetch = 0 : i64, scratch_operands = 0 : i64, tpu.core_type = #tpu.core_type<tc>, window_params = [{transform_indices = @transform_0, window_bounds = array<i64: 64, 128>}, {transform_indices = @transform_1, window_bounds = array<i64: 64, 128>}, {transform_indices = @transform_2, window_bounds = array<i64: 64, 128>}, {transform_indices = @transform_3, window_bounds = array<i64: 64, 128>}, {transform_indices = @transform_4, window_bounds = array<i64: 1, 128>}, {transform_indices = @transform_5, window_bounds = array<i64: 1, 128>}, {transform_indices = @transform_6, window_bounds = array<i64: 1, 128>}, {transform_indices = @transform_7, window_bounds = array<i64: 1, 128>}, {pipeline_mode = #tpu.pipeline_mode<synchronous>, transform_indices = @transform_8, window_bounds = array<i64: 128, 128>}, {pipeline_mode = #tpu.pipeline_mode<synchronous>, transform_indices = @transform_9, window_bounds = array<i64: 128, 1>}, {pipeline_mode = #tpu.pipeline_mode<synchronous>, transform_indices = @transform_10, window_bounds = array<i64: 128, 256>}, {pipeline_mode = #tpu.pipeline_mode<synchronous>, transform_indices = @transform_11, window_bounds = array<i64: 128, 1>}, {pipeline_mode = #tpu.pipeline_mode<synchronous>, transform_indices = @transform_12, window_bounds = array<i64: 64, 128>}, {pipeline_mode = #tpu.pipeline_mode<synchronous>, transform_indices = @transform_13, window_bounds = array<i64: 64, 1>}, {pipeline_mode = #tpu.pipeline_mode<synchronous>, transform_indices = @transform_14, window_bounds = array<i64: 64, 1>}, {pipeline_mode = #tpu.pipeline_mode<synchronous>, transform_indices = @transform_15, window_bounds = array<i64: 1, 1>}, {transform_indices = @transform_16, window_bounds = array<i64: 1, 128>}]} {
    %c0 = arith.constant 0 : index
    %c0_0 = arith.constant 0 : index
    %0 = vector.load %arg5[%c0, %c0_0] : memref<1x128xf32, #tpu.memory_space<vmem>>, vector<1x128xf32>
    %cst = arith.constant 1.000000e+00 : f32
    %1 = vector.broadcast %cst : f32 to vector<1x128xf32>
    %2 = arith.addf %0, %1 : vector<1x128xf32>
    %3 = tpu.reciprocal %2 {approx = true} : vector<1x128xf32> -> vector<1x128xf32>
    %c0_1 = arith.constant 0 : index
    %c0_2 = arith.constant 0 : index
    %4 = vector.load %arg6[%c0_1, %c0_2] : memref<1x128xf32, #tpu.memory_space<vmem>>, vector<1x128xf32>
    %cst_3 = arith.constant 1.000000e+00 : f32
    %5 = vector.broadcast %cst_3 : f32 to vector<1x128xf32>
    %6 = arith.addf %4, %5 : vector<1x128xf32>
    %7 = tpu.reciprocal %6 {approx = true} : vector<1x128xf32> -> vector<1x128xf32>
    %c0_4 = arith.constant 0 : index
    %c0_5 = arith.constant 0 : index
    %8 = vector.load %arg3[%c0_4, %c0_5] : memref<64x128xf32, #tpu.memory_space<vmem>>, vector<64x128xf32>
    %9 = vector.broadcast %3 : vector<1x128xf32> to vector<64x128xf32>
    %10 = arith.mulf %8, %9 : vector<64x128xf32>
    %c0_6 = arith.constant 0 : index
    %c0_7 = arith.constant 0 : index
    %11 = vector.load %arg4[%c0_6, %c0_7] : memref<64x128xf32, #tpu.memory_space<vmem>>, vector<64x128xf32>
    %12 = vector.broadcast %7 : vector<1x128xf32> to vector<64x128xf32>
    %13 = arith.mulf %11, %12 : vector<64x128xf32>
    %14 = tpu.concatenate %13, %10 in 0 : vector<64x128xf32>, vector<64x128xf32> -> vector<128x128xf32>
    %c0_8 = arith.constant 0 : index
    %c0_9 = arith.constant 0 : index
    %15 = vector.load %arg9[%c0_8, %c0_9] : memref<128x128xf32, #tpu.memory_space<vmem>>, vector<128x128xf32>
    %cst_10 = arith.constant dense<0.000000e+00> : vector<128x128xf32>
    %16 = tpu.matmul %15, %14, %cst_10 {dimension_numbers = #tpu.dot_dimension_numbers<[1], [0], [0], [1], [0, 0, 1, 1], [], []>} : vector<128x128xf32>, vector<128x128xf32>, vector<128x128xf32> -> vector<128x128xf32>
    %c0_11 = arith.constant 0 : index
    %c0_12 = arith.constant 0 : index
    %17 = vector.load %arg10[%c0_11, %c0_12] : memref<128x1xf32, #tpu.memory_space<vmem>>, vector<128x1xf32>
    %18 = vector.broadcast %17 : vector<128x1xf32> to vector<128x128xf32>
    %19 = arith.addf %16, %18 : vector<128x128xf32>
    %cst_13 = arith.constant 0.000000e+00 : f32
    %20 = vector.broadcast %cst_13 : f32 to vector<128x128xf32>
    %21 = arith.maximumf %19, %20 : vector<128x128xf32>
    %22 = vector.extract_strided_slice %21 {offsets = [0, 0], sizes = [64, 128], strides = [1, 1]} : vector<128x128xf32> to vector<64x128xf32>
    %23 = vector.extract_strided_slice %21 {offsets = [64, 0], sizes = [64, 128], strides = [1, 1]} : vector<128x128xf32> to vector<64x128xf32>
    %c0_14 = arith.constant 0 : index
    %c0_15 = arith.constant 0 : index
    %24 = vector.load %arg1[%c0_14, %c0_15] : memref<64x128xf32, #tpu.memory_space<vmem>>, vector<64x128xf32>
    %c0_16 = arith.constant 0 : index
    %c0_17 = arith.constant 0 : index
    %25 = vector.load %arg2[%c0_16, %c0_17] : memref<64x128xf32, #tpu.memory_space<vmem>>, vector<64x128xf32>
    %26 = arith.mulf %24, %25 : vector<64x128xf32>
    %27 = arith.mulf %24, %23 : vector<64x128xf32>
    %28 = arith.mulf %22, %25 : vector<64x128xf32>
    %29 = arith.mulf %22, %23 : vector<64x128xf32>
    %30 = tpu.concatenate %26, %27, %28, %29 in 0 : vector<64x128xf32>, vector<64x128xf32>, vector<64x128xf32>, vector<64x128xf32> -> vector<256x128xf32>
    %c0_18 = arith.constant 0 : index
    %c0_19 = arith.constant 0 : index
    %31 = vector.load %arg11[%c0_18, %c0_19] : memref<128x256xf32, #tpu.memory_space<vmem>>, vector<128x256xf32>
    %cst_20 = arith.constant dense<0.000000e+00> : vector<128x128xf32>
    %32 = tpu.matmul %31, %30, %cst_20 {dimension_numbers = #tpu.dot_dimension_numbers<[1], [0], [0], [1], [0, 0, 1, 1], [], []>} : vector<128x256xf32>, vector<256x128xf32>, vector<128x128xf32> -> vector<128x128xf32>
    %c0_21 = arith.constant 0 : index
    %c0_22 = arith.constant 0 : index
    %33 = vector.load %arg12[%c0_21, %c0_22] : memref<128x1xf32, #tpu.memory_space<vmem>>, vector<128x1xf32>
    %34 = vector.broadcast %33 : vector<128x1xf32> to vector<128x128xf32>
    %35 = arith.addf %32, %34 : vector<128x128xf32>
    %36 = math.tanh %35 : vector<128x128xf32>
    %c0_23 = arith.constant 0 : index
    %c0_24 = arith.constant 0 : index
    %37 = vector.load %arg13[%c0_23, %c0_24] : memref<64x128xf32, #tpu.memory_space<vmem>>, vector<64x128xf32>
    %cst_25 = arith.constant dense<0.000000e+00> : vector<64x128xf32>
    %38 = tpu.matmul %37, %36, %cst_25 {dimension_numbers = #tpu.dot_dimension_numbers<[1], [0], [0], [1], [0, 0, 1, 1], [], []>} : vector<64x128xf32>, vector<128x128xf32>, vector<64x128xf32> -> vector<64x128xf32>
    %c0_26 = arith.constant 0 : index
    %c0_27 = arith.constant 0 : index
    %39 = vector.load %arg14[%c0_26, %c0_27] : memref<64x1xf32, #tpu.memory_space<vmem>>, vector<64x1xf32>
    %40 = vector.broadcast %39 : vector<64x1xf32> to vector<64x128xf32>
    %41 = arith.addf %38, %40 : vector<64x128xf32>
    %42 = math.tanh %41 : vector<64x128xf32>
    %c0_28 = arith.constant 0 : index
    %c0_29 = arith.constant 0 : index
    %43 = vector.load %arg15[%c0_28, %c0_29] : memref<64x1xf32, #tpu.memory_space<vmem>>, vector<64x1xf32>
    %44 = vector.broadcast %43 : vector<64x1xf32> to vector<64x128xf32>
    %45 = arith.mulf %42, %44 : vector<64x128xf32>
    %cst_30 = arith.constant dense<0.000000e+00> : vector<128xf32>
    %46 = vector.multi_reduction <add>, %45, %cst_30 [0] : vector<64x128xf32> to vector<128xf32>
    %47 = vector.shape_cast %46 : vector<128xf32> to vector<1x128xf32>
    %c0_31 = arith.constant 0 : index
    %c0_32 = arith.constant 0 : index
    %48 = vector.load %arg16[%c0_31, %c0_32] : memref<1x1xf32, #tpu.memory_space<vmem>>, vector<1x1xf32>
    %49 = vector.broadcast %48 : vector<1x1xf32> to vector<1x128xf32>
    %50 = arith.addf %47, %49 : vector<1x128xf32>
    %c0_33 = arith.constant 0 : index
    %c0_34 = arith.constant 0 : index
    %51 = vector.load %arg7[%c0_33, %c0_34] : memref<1x128xf32, #tpu.memory_space<vmem>>, vector<1x128xf32>
    %52 = arith.addf %50, %51 : vector<1x128xf32>
    %c0_35 = arith.constant 0 : index
    %c0_36 = arith.constant 0 : index
    %53 = vector.load %arg8[%c0_35, %c0_36] : memref<1x128xf32, #tpu.memory_space<vmem>>, vector<1x128xf32>
    %54 = arith.addf %52, %53 : vector<1x128xf32>
    %c0_37 = arith.constant 0 : index
    %c0_38 = arith.constant 0 : index
    %55 = vector.load %arg17[%c0_37, %c0_38] : memref<1x128xf32, #tpu.memory_space<vmem>>, vector<1x128xf32>
    tpu.vector_store %arg17[%c0_37, %c0_38], %54 {strides = array<i32>} : memref<1x128xf32, #tpu.memory_space<vmem>>, vector<1x128xf32>,
    return
  }
  func.func @transform_0(%arg0: i32) -> (i32, i32) {
    %c0_i32 = arith.constant 0 : i32
    %c0_i32_0 = arith.constant 0 : i32
    return %c0_i32, %arg0 : i32, i32
  }
  func.func @transform_1(%arg0: i32) -> (i32, i32) {
    %c0_i32 = arith.constant 0 : i32
    %c0_i32_0 = arith.constant 0 : i32
    return %c0_i32, %arg0 : i32, i32
  }
  func.func @transform_2(%arg0: i32) -> (i32, i32) {
    %c0_i32 = arith.constant 0 : i32
    %c0_i32_0 = arith.constant 0 : i32
    return %c0_i32, %arg0 : i32, i32
  }
  func.func @transform_3(%arg0: i32) -> (i32, i32) {
    %c0_i32 = arith.constant 0 : i32
    %c0_i32_0 = arith.constant 0 : i32
    return %c0_i32, %arg0 : i32, i32
  }
  func.func @transform_4(%arg0: i32) -> (i32, i32) {
    %c0_i32 = arith.constant 0 : i32
    %c0_i32_0 = arith.constant 0 : i32
    return %c0_i32, %arg0 : i32, i32
  }
  func.func @transform_5(%arg0: i32) -> (i32, i32) {
    %c0_i32 = arith.constant 0 : i32
    %c0_i32_0 = arith.constant 0 : i32
    return %c0_i32, %arg0 : i32, i32
  }
  func.func @transform_6(%arg0: i32) -> (i32, i32) {
    %c0_i32 = arith.constant 0 : i32
    %c0_i32_0 = arith.constant 0 : i32
    return %c0_i32, %arg0 : i32, i32
  }
  func.func @transform_7(%arg0: i32) -> (i32, i32) {
    %c0_i32 = arith.constant 0 : i32
    %c0_i32_0 = arith.constant 0 : i32
    return %c0_i32, %arg0 : i32, i32
  }
  func.func @transform_8(%arg0: i32) -> (i32, i32) {
    %c0_i32 = arith.constant 0 : i32
    %c0_i32_0 = arith.constant 0 : i32
    %c0_i32_1 = arith.constant 0 : i32
    return %c0_i32, %c0_i32_0 : i32, i32
  }
  func.func @transform_9(%arg0: i32) -> (i32, i32) {
    %c0_i32 = arith.constant 0 : i32
    %c0_i32_0 = arith.constant 0 : i32
    %c0_i32_1 = arith.constant 0 : i32
    return %c0_i32, %c0_i32_0 : i32, i32
  }
  func.func @transform_10(%arg0: i32) -> (i32, i32) {
    %c0_i32 = arith.constant 0 : i32
    %c0_i32_0 = arith.constant 0 : i32
    %c0_i32_1 = arith.constant 0 : i32
    return %c0_i32, %c0_i32_0 : i32, i32
  }
  func.func @transform_11(%arg0: i32) -> (i32, i32) {
    %c0_i32 = arith.constant 0 : i32
    %c0_i32_0 = arith.constant 0 : i32
    %c0_i32_1 = arith.constant 0 : i32
    return %c0_i32, %c0_i32_0 : i32, i32
  }
  func.func @transform_12(%arg0: i32) -> (i32, i32) {
    %c0_i32 = arith.constant 0 : i32
    %c0_i32_0 = arith.constant 0 : i32
    %c0_i32_1 = arith.constant 0 : i32
    return %c0_i32, %c0_i32_0 : i32, i32
  }
  func.func @transform_13(%arg0: i32) -> (i32, i32) {
    %c0_i32 = arith.constant 0 : i32
    %c0_i32_0 = arith.constant 0 : i32
    %c0_i32_1 = arith.constant 0 : i32
    return %c0_i32, %c0_i32_0 : i32, i32
  }
  func.func @transform_14(%arg0: i32) -> (i32, i32) {
    %c0_i32 = arith.constant 0 : i32
    %c0_i32_0 = arith.constant 0 : i32
    %c0_i32_1 = arith.constant 0 : i32
    return %c0_i32, %c0_i32_0 : i32, i32
  }
  func.func @transform_15(%arg0: i32) -> (i32, i32) {
    %c0_i32 = arith.constant 0 : i32
    %c0_i32_0 = arith.constant 0 : i32
    %c0_i32_1 = arith.constant 0 : i32
    return %c0_i32, %c0_i32_0 : i32, i32
  }
  func.func @transform_16(%arg0: i32) -> (i32, i32) {
    %c0_i32 = arith.constant 0 : i32
    %c0_i32_0 = arith.constant 0 : i32
    return %c0_i32, %arg0 : i32, i32
  }
}

</mosaic_0001>

<llo_original>
// kernel: gcmc_forward.4
$region0: #{gcmc_forward.4}
  #allocation0 [shape = 'u32[]', space=smem, size = 0x4, offset = 0x4, fixed_abs, tag = 'smem constant byte address 0x4 - core index']
  #allocation1 [shape = 'u32[144,128]{1,0:T(1,128)}', space=vmem, size = 0x12000, scoped, tag = 'internal scratch']
  %s0 = inlined_call_operand.vmem [shape: bf16[384,640], index: 0, kind: input, shape index: {}]
  %s1 = inlined_call_operand.vmem [shape: bf16[640,64], index: 1, kind: input, shape index: {}]
  %s2 = inlined_call_operand.vmem [shape: f32[384,64], index: 2, kind: output, shape index: {0}]
  %s3 = inlined_call_operand.vmem [shape: f32[384,1], index: 3, kind: output, shape index: {1}]
  %4 = xla_tuple %s2, %s3
  %s5 = sld [smem:[#allocation0]]
  $region94: #{gcmc_forward.4} parent=0
    _
  %s7 = ssub.s32 1, %s5
  %s8 = scalar_select 0, %s7, %s5
  $region1: #{gcmc_forward.4} parent=0
    #allocation2 [shape = 'u8[65536]{0}', space=vmem, size = 0x10000, scoped, tag = 'input window, operand 0']
    loop: start=0, step=1, limit=17
    $region2: #{gcmc_forward.4} parent=1 // loop_pre_header
      _
    $region3: #{gcmc_forward.4} parent=1 // loop_header
      %s10 = sphi 0, %s14
      %p11 = scmp.ge.s32.totalorder %s10, 17
      %s17 = sphi 0, %s29
      %s18 = sphi 0, %s25
      %s19 = sphi 0, %s17
      %s20 = sphi 0, %s18
      %s21 = sphi 0, %s19
      %s22 = sphi 0, %s20
      %s34 = sphi 0, %s36
      %s37 = sphi 0, %s34
      %s38 = sphi 0, %s37
      %s54 = sphi 0, %s38
      %s60 = sphi 0, %s62
      %s63 = sphi 0, %s60
      %s64 = sphi 0, %s63
      %s80 = sphi 0, %s64
      %s86 = sphi 0, %s88
      %s89 = sphi 0, %s86
      %s90 = sphi 0, %s89
      %s106 = sphi 0, %s90
      %s112 = sphi 0, %s114
      %s115 = sphi 0, %s112
      %s116 = sphi 0, %s115
      %s132 = sphi 0, %s116
    $region4: #{gcmc_forward.4} parent=1 // loop_header_branch
      %13 = sbr.rel (%p11) target = $region8
    $region5: #{gcmc_forward.4} parent=1 // loop_body
      %s15 = ssub.s32 %s10, 1
      %s16 = ssub.s32 %s10, 2
      %s23 = sadd.s32 1, %s18
      %p24 = scmp.ge.s32.totalorder %s23, 5
      %s25 = scalar_select %p24, 0, %s23
      %s26 = sadd.s32 1, %s17
      %s27 = scalar_select %p24, %s26, %s17
      %p28 = scmp.ge.s32.totalorder %s27, 3
      %s29 = scalar_select %p28, 0, %s27
      %s30 = ssub.s32 %s17, %s29
      %s31 = ssub.s32 %s18, %s25
      %s32 = sor.u32 %s30, %s31
      %p33 = scmp.eq.s32.totalorder %s32, 0
      %s35 = sadd.s32 %s34, 1
      %s36 = scalar_select %p33, %s34, %s35
      %p39 = pneg %p33
      %p40 = scmp.eq.s32.totalorder %s10, 14
      %p41 = por %p39, %p40
      %p42 = scmp.ne.s32.totalorder %s34, %s37
      %p43 = scmp.eq.s32.totalorder %s10, 0
      %p44 = por %p42, %p43
      %p45 = scmp.ne.s32.totalorder %s34, %s37
      %p46 = scmp.eq.s32.totalorder %s15, 14
      %p47 = por %p45, %p46
      %p48 = scmp.ne.s32.totalorder %s37, %s38
      %p49 = scmp.eq.s32.totalorder %s15, 0
      %p50 = por %p48, %p49
      %p51 = scmp.ne.s32.totalorder %s37, %s38
      %p52 = scmp.eq.s32.totalorder %s16, 14
      %p53 = por %p51, %p52
      %p55 = scmp.ne.s32.totalorder %s38, %s54
      %p56 = scmp.eq.s32.totalorder %s16, 0
      %p57 = por %p55, %p56
      %s58 = ssub.s32 %s18, %s25
      %p59 = scmp.eq.s32.totalorder %s58, 0
      %s61 = sadd.s32 %s60, 1
      %s62 = scalar_select %p59, %s60, %s61
      %p65 = pneg %p59
      %p66 = scmp.eq.s32.totalorder %s10, 14
      %p67 = por %p65, %p66
      %p68 = scmp.ne.s32.totalorder %s60, %s63
      %p69 = scmp.eq.s32.totalorder %s10, 0
      %p70 = por %p68, %p69
      %p71 = scmp.ne.s32.totalorder %s60, %s63
      %p72 = scmp.eq.s32.totalorder %s15, 14
      %p73 = por %p71, %p72
      %p74 = scmp.ne.s32.totalorder %s63, %s64
      %p75 = scmp.eq.s32.totalorder %s15, 0
      %p76 = por %p74, %p75
      %p77 = scmp.ne.s32.totalorder %s63, %s64
      %p78 = scmp.eq.s32.totalorder %s16, 14
      %p79 = por %p77, %p78
      %p81 = scmp.ne.s32.totalorder %s64, %s80
      %p82 = scmp.eq.s32.totalorder %s16, 0
      %p83 = por %p81, %p82
      %s84 = ssub.s32 %s17, %s29
      %p85 = scmp.eq.s32.totalorder %s84, 0
      %s87 = sadd.s32 %s86, 1
      %s88 = scalar_select %p85, %s86, %s87
      %p91 = pneg %p85
      %p92 = scmp.eq.s32.totalorder %s10, 14
      %p93 = por %p91, %p92
      %p94 = scmp.ne.s32.totalorder %s86, %s89
      %p95 = scmp.eq.s32.totalorder %s10, 0
      %p96 = por %p94, %p95
      %p97 = scmp.ne.s32.totalorder %s86, %s89
      %p98 = scmp.eq.s32.totalorder %s15, 14
      %p99 = por %p97, %p98
      %p100 = scmp.ne.s32.totalorder %s89, %s90
      %p101 = scmp.eq.s32.totalorder %s15, 0
      %p102 = por %p100, %p101
      %p103 = scmp.ne.s32.totalorder %s89, %s90
      %p104 = scmp.eq.s32.totalorder %s16, 14
      %p105 = por %p103, %p104
      %p107 = scmp.ne.s32.totalorder %s90, %s106
      %p108 = scmp.eq.s32.totalorder %s16, 0
      %p109 = por %p107, %p108
      %s110 = ssub.s32 %s17, %s29
      %p111 = scmp.eq.s32.totalorder %s110, 0
      %s113 = sadd.s32 %s112, 1
      %s114 = scalar_select %p111, %s112, %s113
      %p117 = pneg %p111
      %p118 = scmp.eq.s32.totalorder %s10, 14
      %p119 = por %p117, %p118
      %p120 = scmp.ne.s32.totalorder %s112, %s115
      %p121 = scmp.eq.s32.totalorder %s10, 0
      %p122 = por %p120, %p121
      %p123 = scmp.ne.s32.totalorder %s112, %s115
      %p124 = scmp.eq.s32.totalorder %s15, 14
      %p125 = por %p123, %p124
      %p126 = scmp.ne.s32.totalorder %s115, %s116
      %p127 = scmp.eq.s32.totalorder %s15, 0
      %p128 = por %p126, %p127
      %p129 = scmp.ne.s32.totalorder %s115, %s116
      %p130 = scmp.eq.s32.totalorder %s16, 14
      %p131 = por %p129, %p130
      %p133 = scmp.ne.s32.totalorder %s116, %s132
      %p134 = scmp.eq.s32.totalorder %s16, 0
      %p135 = por %p133, %p134
      %p136 = scmp.le.s32.totalorder 1, %s10
      %p137 = scmp.lt.s32.totalorder %s10, 16
      %p138 = pnand %p136, %p137
      %p139 = pneg %p138
      // Predicated region
      $region9: #{gcmc_forward.4} parent=5 // pred_check
        _
      $region10: #{gcmc_forward.4} parent=5 // pred_check_branch
        %141 = sbr.rel (%p138) target = $region12
      $region11: #{gcmc_forward.4} parent=5 // pred_region
        %s142 = ssub.s32 %s10, 1
      $region12: #{gcmc_forward.4} parent=5 // pred_fallthru
        _
      %p143 = scmp.lt.s32.totalorder %s10, 15
      // Predicated region
      $region13: #{gcmc_forward.4} parent=5 // pred_check
        %p144 = pneg %p143
      $region14: #{gcmc_forward.4} parent=5 // pred_check_branch
        %146 = sbr.rel (%p144) target = $region16
      $region15: #{gcmc_forward.4} parent=5 // pred_region
        // Predicated region
        $region17: #{gcmc_forward.4} parent=15 // pred_check
          %p147 = pneg %p44
        $region18: #{gcmc_forward.4} parent=15 // pred_check_branch
          %149 = sbr.rel (%p147) target = $region20
        $region19: #{gcmc_forward.4} parent=15 // pred_region
          %s150 = sand.u32 %s34, 1
          %s151 = sand.u32 %s34, 1
          %s152 = smul.addr %s151, 64
          %s153 = scalar_lea.vmem [#allocation2], %s152
          %s154 = smul.u32 16, %s17
          %s155 = smul.addr %s154, 5
          %s156 = sadd.s32 %s18, %s155
          %s157 = smul.addr %s156, 4
          %s158 = scalar_lea.vmem %s0, %s157
          // Predicated region
          $region21: #{gcmc_forward.4} parent=19 // pred_check
            _
          $region22: #{gcmc_forward.4} parent=19 // pred_check_branch
            %160 = sbr.rel (0) target = $region24
          $region23: #{gcmc_forward.4} parent=19 // pred_region
            // Predicated region
            $region25: #{gcmc_forward.4} parent=23 // pred_check
              _
            $region26: #{gcmc_forward.4} parent=23 // pred_check_branch
              %162 = sbr.rel target = $region28
            $region27: #{gcmc_forward.4} parent=23 // pred_region
              // Predicated region
              $region40: #{gcmc_forward.4} parent=27 // pred_check
                _
              $region41: #{gcmc_forward.4} parent=27 // pred_check_branch
                %207 = sbr.rel (0) target = $region43
              $region42: #{gcmc_forward.4} parent=27 // pred_region
                loop: start=0, step=1, limit=1
                $region44: #{gcmc_forward.4} parent=42 // loop_pre_header
                  _
                $region45: #{gcmc_forward.4} parent=42 // loop_header
                  %s209 = sphi 0, %s213
                  %p210 = scmp.ge.s32.totalorder %s209, 1
                  %s214 = sphi %s158, %s158
                  %s215 = sphi %s153, %s153
                $region46: #{gcmc_forward.4} parent=42 // loop_header_branch
                  %212 = sbr.rel (%p210) target = $region50
                $region47: #{gcmc_forward.4} parent=42 // loop_body
                  _
                $region48: #{gcmc_forward.4} parent=42 // loop_footer
                  %s213 = sadd.s32 1, %s209
                $region49: #{gcmc_forward.4} parent=42 // loop_footer_branch
                  %208 = sbr.rel target = $region45
                $region50: #{gcmc_forward.4} parent=42 // loop_exit
                  _
                loop: start=0, step=1, limit=1
                $region51: #{gcmc_forward.4} parent=42 // loop_pre_header
                  _
                $region52: #{gcmc_forward.4} parent=42 // loop_header
                  %s218 = sphi 0, %s222
                  %p219 = scmp.ge.s32.totalorder %s218, 1
                  %s223 = sphi %s158, %s158
                  %s224 = sphi %s153, %s153
                $region53: #{gcmc_forward.4} parent=42 // loop_header_branch
                  %221 = sbr.rel (%p219) target = $region57
                $region54: #{gcmc_forward.4} parent=42 // loop_body
                  %v225 = vld [vmem:[%s223] sm:$0xf]
                  %226 = vst [vmem:[%s224] sm:$0xf] %v225
                  %v227 = vld [vmem:[%s223 + $0x14] sm:$0xf]
                  %228 = vst [vmem:[%s224 + $0x4] sm:$0xf] %v227
                  %v229 = vld [vmem:[%s223 + $0x28] sm:$0xf]
                  %230 = vst [vmem:[%s224 + $0x8] sm:$0xf] %v229
                  %v231 = vld [vmem:[%s223 + $0x3c] sm:$0xf]
                  %232 = vst [vmem:[%s224 + $0xc] sm:$0xf] %v231
                  %v233 = vld [vmem:[%s223 + $0x50] sm:$0xf]
                  %234 = vst [vmem:[%s224 + $0x10] sm:$0xf] %v233
                  %v235 = vld [vmem:[%s223 + $0x64] sm:$0xf]
                  %236 = vst [vmem:[%s224 + $0x14] sm:$0xf] %v235
                  %v237 = vld [vmem:[%s223 + $0x78] sm:$0xf]
                  %238 = vst [vmem:[%s224 + $0x18] sm:$0xf] %v237
                  %v239 = vld [vmem:[%s223 + $0x8c] sm:$0xf]
                  %240 = vst [vmem:[%s224 + $0x1c] sm:$0xf] %v239
                  %v241 = vld [vmem:[%s223 + $0xa0] sm:$0xf]
                  %242 = vst [vmem:[%s224 + $0x20] sm:$0xf] %v241
                  %v243 = vld [vmem:[%s223 + $0xb4] sm:$0xf]
                  %244 = vst [vmem:[%s224 + $0x24] sm:$0xf] %v243
                  %v245 = vld [vmem:[%s223 + $0xc8] sm:$0xf]
                  %246 = vst [vmem:[%s224 + $0x28] sm:$0xf] %v245
                  %v247 = vld [vmem:[%s223 + $0xdc] sm:$0xf]
                  %248 = vst [vmem:[%s224 + $0x2c] sm:$0xf] %v247
                  %v249 = vld [vmem:[%s223 + $0xf0] sm:$0xf]
                  %250 = vst [vmem:[%s224 + $0x30] sm:$0xf] %v249
                  %v251 = vld [vmem:[%s223 + $0x104] sm:$0xf]
                  %252 = vst [vmem:[%s224 + $0x34] sm:$0xf] %v251
                  %v253 = vld [vmem:[%s223 + $0x118] sm:$0xf]
                  %254 = vst [vmem:[%s224 + $0x38] sm:$0xf] %v253
                  %v255 = vld [vmem:[%s223 + $0x12c] sm:$0xf]
                  %256 = vst [vmem:[%s224 + $0x3c] sm:$0xf] %v255
                $region55: #{gcmc_forward.4} parent=42 // loop_footer
                  %s222 = sadd.s32 1, %s218
                $region56: #{gcmc_forward.4} parent=42 // loop_footer_branch
                  %217 = sbr.rel target = $region52
                $region57: #{gcmc_forward.4} parent=42 // loop_exit
                  _
              $region43: #{gcmc_forward.4} parent=27 // pred_fallthru
                _
            $region28: #{gcmc_forward.4} parent=23 // pred_fallthru
              _
            // Predicated region
            $region29: #{gcmc_forward.4} parent=23 // pred_check
              _
            $region30: #{gcmc_forward.4} parent=23 // pred_check_branch
              %164 = sbr.rel (0) target = $region32
            $region31: #{gcmc_forward.4} parent=23 // pred_region
              loop: start=0, step=1, limit=1
              $region33: #{gcmc_forward.4} parent=31 // loop_pre_header
                _
              $region34: #{gcmc_forward.4} parent=31 // loop_header
                %s167 = sphi 0, %s171
                %p168 = scmp.ge.s32.totalorder %s167, 1
                %s172 = sphi %s158, %s158
                %s173 = sphi %s153, %s153
              $region35: #{gcmc_forward.4} parent=31 // loop_header_branch
                %170 = sbr.rel (%p168) target = $region39
              $region36: #{gcmc_forward.4} parent=31 // loop_body
                %v174 = vld [vmem:[%s172] sm:$0xf]
                %175 = vst [vmem:[%s173] sm:$0xf] %v174
                %v176 = vld [vmem:[%s172 + $0x14] sm:$0xf]
                %177 = vst [vmem:[%s173 + $0x4] sm:$0xf] %v176
                %v178 = vld [vmem:[%s172 + $0x28] sm:$0xf]
                %179 = vst [vmem:[%s173 + $0x8] sm:$0xf] %v178
                %v180 = vld [vmem:[%s172 + $0x3c] sm:$0xf]
                %181 = vst [vmem:[%s173 + $0xc] sm:$0xf] %v180
                %v182 = vld [vmem:[%s172 + $0x50] sm:$0xf]
                %183 = vst [vmem:[%s173 + $0x10] sm:$0xf] %v182
                %v184 = vld [vmem:[%s172 + $0x64] sm:$0xf]
                %185 = vst [vmem:[%s173 + $0x14] sm:$0xf] %v184
                %v186 = vld [vmem:[%s172 + $0x78] sm:$0xf]
                %187 = vst [vmem:[%s173 + $0x18] sm:$0xf] %v186
                %v188 = vld [vmem:[%s172 + $0x8c] sm:$0xf]
                %189 = vst [vmem:[%s173 + $0x1c] sm:$0xf] %v188
                %v190 = vld [vmem:[%s172 + $0xa0] sm:$0xf]
                %191 = vst [vmem:[%s173 + $0x20] sm:$0xf] %v190
                %v192 = vld [vmem:[%s172 + $0xb4] sm:$0xf]
                %193 = vst [vmem:[%s173 + $0x24] sm:$0xf] %v192
                %v194 = vld [vmem:[%s172 + $0xc8] sm:$0xf]
                %195 = vst [vmem:[%s173 + $0x28] sm:$0xf] %v194
                %v196 = vld [vmem:[%s172 + $0xdc] sm:$0xf]
                %197 = vst [vmem:[%s173 + $0x2c] sm:$0xf] %v196
                %v198 = vld [vmem:[%s172 + $0xf0] sm:$0xf]
                %199 = vst [vmem:[%s173 + $0x30] sm:$0xf] %v198
                %v200 = vld [vmem:[%s172 + $0x104] sm:$0xf]
                %201 = vst [vmem:[%s173 + $0x34] sm:$0xf] %v200
                %v202 = vld [vmem:[%s172 + $0x118] sm:$0xf]
                %203 = vst [vmem:[%s173 + $0x38] sm:$0xf] %v202
                %v204 = vld [vmem:[%s172 + $0x12c] sm:$0xf]
                %205 = vst [vmem:[%s173 + $0x3c] sm:$0xf] %v204
              $region37: #{gcmc_forward.4} parent=31 // loop_footer
                %s171 = sadd.s32 1, %s167
              $region38: #{gcmc_forward.4} parent=31 // loop_footer_branch
                %166 = sbr.rel target = $region34
              $region39: #{gcmc_forward.4} parent=31 // loop_exit
                _
            $region32: #{gcmc_forward.4} parent=23 // pred_fallthru
              _
          $region24: #{gcmc_forward.4} parent=19 // pred_fallthru
            _
          %257 = vnop
        $region20: #{gcmc_forward.4} parent=15 // pred_fallthru
          _
        // Predicated region
        $region58: #{gcmc_forward.4} parent=15 // pred_check
          %p258 = pneg %p70
        $region59: #{gcmc_forward.4} parent=15 // pred_check_branch
          %260 = sbr.rel (%p258) target = $region61
        $region60: #{gcmc_forward.4} parent=15 // pred_region
          %s261 = smul.u32 16, %s18
          %p262 = scmp.lt.s32.totalorder %s261, 79
          %s263 = scalar_select %p262, %s261, 79
          %s264 = smul.addr %s263, 4
          %s265 = scalar_lea.vmem %s1, %s264
          %s266 = smul.u32 16, %s18
        $region61: #{gcmc_forward.4} parent=15 // pred_fallthru
          _
      $region16: #{gcmc_forward.4} parent=5 // pred_fallthru
        _
      %p267 = scmp.le.s32.totalorder 1, %s10
      %p268 = scmp.lt.s32.totalorder %s10, 16
      %p269 = pnand %p267, %p268
      %p270 = pneg %p269
      // Predicated region
      $region62: #{gcmc_forward.4} parent=5 // pred_check
        _
      $region63: #{gcmc_forward.4} parent=5 // pred_check_branch
        %272 = sbr.rel (%p269) target = $region65
      $region64: #{gcmc_forward.4} parent=5 // pred_region
        %s273 = ssub.s32 %s10, 1
        %s274 = sand.u32 %s37, 1
        %s275 = sand.u32 %s37, 1
        %s276 = smul.addr %s275, 64
        %s277 = scalar_lea.vmem [#allocation2], %s276
        // Predicated region
        $region66: #{gcmc_forward.4} parent=64 // pred_check
          %p278 = pneg %p50
        $region67: #{gcmc_forward.4} parent=64 // pred_check_branch
          %280 = sbr.rel (%p278) target = $region69
        $region68: #{gcmc_forward.4} parent=64 // pred_region
          _
        $region69: #{gcmc_forward.4} parent=64 // pred_fallthru
          _
        %s281 = sand.u32 %s37, 1
        %s282 = sand.u32 %s37, 1
        %s283 = smul.addr %s282, 64
        %s284 = scalar_lea.vmem [#allocation2], %s283
        %p285 = pneg %p50
        %p286 = pneg %p47
        %s287 = smul.u32 16, %s20
        %p288 = scmp.lt.s32.totalorder %s287, 79
        %s289 = scalar_select %p288, %s287, 79
        %s290 = smul.addr %s289, 4
        %s291 = scalar_lea.vmem %s1, %s290
        %p292 = pneg %p76
        %p293 = pneg %p73
        %p294 = pneg %p102
        %p295 = pneg %p99
        %s296 = smul.u32 16, %s19
        %p297 = scmp.lt.s32.totalorder %s296, 47
        %s298 = scalar_select %p297, %s296, 47
        %s299 = smul.addr %s298, 8
        %s300 = scalar_lea.vmem %s2, %s299
        %p301 = pneg %p128
        %p302 = pneg %p125
        %s303 = smul.u32 16, %s19
        %p304 = scmp.lt.s32.totalorder %s303, 47
        %s305 = scalar_select %p304, %s303, 47
        %s306 = smul.addr %s305, 8
        %s307 = scalar_lea.vmem %s3, %s306
        %s308 = smul.u32 16, %s19
        %s309 = smul.u32 16, %s20
        %p310 = scmp.lt.s32.totalorder %s309, 79
        %s311 = scalar_select %p310, %s309, 79
        %s312 = smul.addr %s311, 4
        %s313 = scalar_lea.vmem %s1, %s312
        %s314 = smul.u32 16, %s20
        %s315 = smul.u32 16, %s19
        %p316 = scmp.lt.s32.totalorder %s315, 47
        %s317 = scalar_select %p316, %s315, 47
        %s318 = smul.addr %s317, 8
        %s319 = scalar_lea.vmem %s2, %s318
        %s320 = smul.u32 16, %s19
        %s321 = smul.u32 16, %s19
        %p322 = scmp.lt.s32.totalorder %s321, 47
        %s323 = scalar_select %p322, %s321, 47
        %s324 = smul.addr %s323, 8
        %s325 = scalar_lea.vmem %s3, %s324
        %s326 = smul.u32 16, %s19
        %p328 = scmp.eq.s32.totalorder %s20, 0
        // Predicated region
        $region70: #{gcmc_forward.4} parent=64 // pred_check
          %p329 = pneg %p328
        $region71: #{gcmc_forward.4} parent=64 // pred_check_branch
          %331 = sbr.rel (%p329) target = $region73
        $region72: #{gcmc_forward.4} parent=64 // pred_region
          %vm332 = vcmask 523264
          %333 = vst.msk [vmem:[%s319] sm:$0xff] %vm332, 0.0
          %334 = vst.msk [vmem:[%s319 + $0x8] sm:$0xff] %vm332, 0.0
          %335 = vst.msk [vmem:[%s319 + $0x10] sm:$0xff] %vm332, 0.0
          %336 = vst.msk [vmem:[%s319 + $0x18] sm:$0xff] %vm332, 0.0
          %337 = vst.msk [vmem:[%s319 + $0x20] sm:$0xff] %vm332, 0.0
          %338 = vst.msk [vmem:[%s319 + $0x28] sm:$0xff] %vm332, 0.0
          %339 = vst.msk [vmem:[%s319 + $0x30] sm:$0xff] %vm332, 0.0
          %340 = vst.msk [vmem:[%s319 + $0x38] sm:$0xff] %vm332, 0.0
          %341 = vst.msk [vmem:[%s319 + $0x40] sm:$0xff] %vm332, 0.0
          %342 = vst.msk [vmem:[%s319 + $0x48] sm:$0xff] %vm332, 0.0
          %343 = vst.msk [vmem:[%s319 + $0x50] sm:$0xff] %vm332, 0.0
          %344 = vst.msk [vmem:[%s319 + $0x58] sm:$0xff] %vm332, 0.0
          %345 = vst.msk [vmem:[%s319 + $0x60] sm:$0xff] %vm332, 0.0
          %346 = vst.msk [vmem:[%s319 + $0x68] sm:$0xff] %vm332, 0.0
          %347 = vst.msk [vmem:[%s319 + $0x70] sm:$0xff] %vm332, 0.0
          %348 = vst.msk [vmem:[%s319 + $0x78] sm:$0xff] %vm332, 0.0
          %vm349 = vcmask 7168
          %350 = vst.msk [vmem:[%s325] sm:$0xff] %vm349, 0.0
          %351 = vst.msk [vmem:[%s325 + $0x8] sm:$0xff] %vm349, 0.0
          %352 = vst.msk [vmem:[%s325 + $0x10] sm:$0xff] %vm349, 0.0
          %353 = vst.msk [vmem:[%s325 + $0x18] sm:$0xff] %vm349, 0.0
          %354 = vst.msk [vmem:[%s325 + $0x20] sm:$0xff] %vm349, 0.0
          %355 = vst.msk [vmem:[%s325 + $0x28] sm:$0xff] %vm349, 0.0
          %356 = vst.msk [vmem:[%s325 + $0x30] sm:$0xff] %vm349, 0.0
          %357 = vst.msk [vmem:[%s325 + $0x38] sm:$0xff] %vm349, 0.0
          %358 = vst.msk [vmem:[%s325 + $0x40] sm:$0xff] %vm349, 0.0
          %359 = vst.msk [vmem:[%s325 + $0x48] sm:$0xff] %vm349, 0.0
          %360 = vst.msk [vmem:[%s325 + $0x50] sm:$0xff] %vm349, 0.0
          %361 = vst.msk [vmem:[%s325 + $0x58] sm:$0xff] %vm349, 0.0
          %362 = vst.msk [vmem:[%s325 + $0x60] sm:$0xff] %vm349, 0.0
          %363 = vst.msk [vmem:[%s325 + $0x68] sm:$0xff] %vm349, 0.0
          %364 = vst.msk [vmem:[%s325 + $0x70] sm:$0xff] %vm349, 0.0
          %365 = vst.msk [vmem:[%s325 + $0x78] sm:$0xff] %vm349, 0.0
        $region73: #{gcmc_forward.4} parent=64 // pred_fallthru
          _
        %v366 = vld [vmem:[%s277] sm:$0xf]
        %v367 = vld [vmem:[%s277 + $0x4] sm:$0xf]
        %v368 = vld [vmem:[%s277 + $0x8] sm:$0xf]
        %v369 = vld [vmem:[%s277 + $0xc] sm:$0xf]
        %v370 = vld [vmem:[%s277 + $0x10] sm:$0xf]
        %v371 = vld [vmem:[%s277 + $0x14] sm:$0xf]
        %v372 = vld [vmem:[%s277 + $0x18] sm:$0xf]
        %v373 = vld [vmem:[%s277 + $0x1c] sm:$0xf]
        %v374 = vld [vmem:[%s277 + $0x20] sm:$0xf]
        %v375 = vld [vmem:[%s277 + $0x24] sm:$0xf]
        %v376 = vld [vmem:[%s277 + $0x28] sm:$0xf]
        %v377 = vld [vmem:[%s277 + $0x2c] sm:$0xf]
        %v378 = vld [vmem:[%s277 + $0x30] sm:$0xf]
        %v379 = vld [vmem:[%s277 + $0x34] sm:$0xf]
        %v380 = vld [vmem:[%s277 + $0x38] sm:$0xf]
        %v381 = vld [vmem:[%s277 + $0x3c] sm:$0xf]
        %v382 = vld [vmem:[%s319] sm:$0xff]
        %v383 = vld [vmem:[%s319 + $0x8] sm:$0xff]
        %v384 = vld [vmem:[%s319 + $0x10] sm:$0xff]
        %v385 = vld [vmem:[%s319 + $0x18] sm:$0xff]
        %v386 = vld [vmem:[%s319 + $0x20] sm:$0xff]
        %v387 = vld [vmem:[%s319 + $0x28] sm:$0xff]
        %v388 = vld [vmem:[%s319 + $0x30] sm:$0xff]
        %v389 = vld [vmem:[%s319 + $0x38] sm:$0xff]
        %v390 = vld [vmem:[%s319 + $0x40] sm:$0xff]
        %v391 = vld [vmem:[%s319 + $0x48] sm:$0xff]
        %v392 = vld [vmem:[%s319 + $0x50] sm:$0xff]
        %v393 = vld [vmem:[%s319 + $0x58] sm:$0xff]
        %v394 = vld [vmem:[%s319 + $0x60] sm:$0xff]
        %v395 = vld [vmem:[%s319 + $0x68] sm:$0xff]
        %v396 = vld [vmem:[%s319 + $0x70] sm:$0xff]
        %v397 = vld [vmem:[%s319 + $0x78] sm:$0xff]
        %v398 = vld [vmem:[%s313] sm:$0xf]
        %v399 = vld [vmem:[%s313 + $0x4] sm:$0xf]
        %v400 = vld [vmem:[%s313 + $0x8] sm:$0xf]
        %v401 = vld [vmem:[%s313 + $0xc] sm:$0xf]
        %v402 = vld [vmem:[%s313 + $0x10] sm:$0xf]
        %v403 = vld [vmem:[%s313 + $0x14] sm:$0xf]
        %v404 = vld [vmem:[%s313 + $0x18] sm:$0xf]
        %v405 = vld [vmem:[%s313 + $0x1c] sm:$0xf]
        %v406 = vld [vmem:[%s313 + $0x20] sm:$0xf]
        %v407 = vld [vmem:[%s313 + $0x24] sm:$0xf]
        %v408 = vld [vmem:[%s313 + $0x28] sm:$0xf]
        %v409 = vld [vmem:[%s313 + $0x2c] sm:$0xf]
        %v410 = vld [vmem:[%s313 + $0x30] sm:$0xf]
        %v411 = vld [vmem:[%s313 + $0x34] sm:$0xf]
        %v412 = vld [vmem:[%s313 + $0x38] sm:$0xf]
        %v413 = vld [vmem:[%s313 + $0x3c] sm:$0xf]
        %v430 = vunpack.c.l.b16 %v366
        %v431 = vunpack.c.l.b16 %v367
        %v432 = vunpack.c.l.b16 %v368
        %v433 = vunpack.c.l.b16 %v369
        %v434 = vunpack.c.l.b16 %v370
        %v435 = vunpack.c.l.b16 %v371
        %v436 = vunpack.c.l.b16 %v372
        %v437 = vunpack.c.l.b16 %v373
        %v438 = vunpack.c.l.b16 %v374
        %v439 = vunpack.c.l.b16 %v375
        %v440 = vunpack.c.l.b16 %v376
        %v441 = vunpack.c.l.b16 %v377
        %v442 = vunpack.c.l.b16 %v378
        %v443 = vunpack.c.l.b16 %v379
        %v444 = vunpack.c.l.b16 %v380
        %v445 = vunpack.c.l.b16 %v381
        %v446 = vpack.c.b16 %v431, %v430
        %v447 = vpack.c.b16 %v433, %v432
        %v448 = vpack.c.b16 %v435, %v434
        %v449 = vpack.c.b16 %v437, %v436
        %v450 = vpack.c.b16 %v439, %v438
        %v451 = vpack.c.b16 %v441, %v440
        %v452 = vpack.c.b16 %v443, %v442
        %v453 = vpack.c.b16 %v445, %v444
        %v478 = vunpack.c.l.b16 %v398
        %v479 = vunpack.c.l.b16 %v399
        %v480 = vunpack.c.l.b16 %v400
        %v481 = vunpack.c.l.b16 %v401
        %v482 = vunpack.c.l.b16 %v402
        %v483 = vunpack.c.l.b16 %v403
        %v484 = vunpack.c.l.b16 %v404
        %v485 = vunpack.c.l.b16 %v405
        %v486 = vunpack.c.l.b16 %v406
        %v487 = vunpack.c.l.b16 %v407
        %v488 = vunpack.c.l.b16 %v408
        %v489 = vunpack.c.l.b16 %v409
        %v490 = vunpack.c.l.b16 %v410
        %v491 = vunpack.c.l.b16 %v411
        %v492 = vunpack.c.l.b16 %v412
        %v493 = vunpack.c.l.b16 %v413
        %v494 = vpack.c.b16 %v479, %v478
        %v495 = vpack.c.b16 %v481, %v480
        %v496 = vpack.c.b16 %v483, %v482
        %v497 = vpack.c.b16 %v485, %v484
        %v498 = vpack.c.b16 %v487, %v486
        %v499 = vpack.c.b16 %v489, %v488
        %v500 = vpack.c.b16 %v491, %v490
        %v501 = vpack.c.b16 %v493, %v492
        %510 = vmatprep.subr.bf16.mxu0 0
        %511 = vmatpush1.bf16.msra.mxu0 %v494
        %512 = vmatprep.subr.bf16.mxu0 0
        %513 = vmatpush1.bf16.msra.mxu0 %v495
        %514 = vmatprep.subr.bf16.mxu0 0
        %515 = vmatpush1.bf16.msra.mxu0 %v496
        %516 = vmatprep.subr.bf16.mxu0 0
        %517 = vmatpush1.bf16.msra.mxu0 %v497
        %518 = vmatprep.subr.bf16.mxu0 0
        %519 = vmatpush1.bf16.msra.mxu0 %v498
        %520 = vmatprep.subr.bf16.mxu0 0
        %521 = vmatpush1.bf16.msra.mxu0 %v499
        %522 = vmatprep.subr.bf16.mxu0 0
        %523 = vmatpush1.bf16.msra.mxu0 %v500
        %524 = vmatprep.subr.bf16.mxu0 0
        %525 = vmatpush1.bf16.msra.mxu0 %v501
        %526 = vmatprep.subr.bf16.mxu0 0
        %527 = vmatpush1.bf16.msra.mxu0 0
        %528 = vmatprep.subr.bf16.mxu0 0
        %529 = vmatpush1.bf16.msra.mxu0 0
        %530 = vmatprep.subr.bf16.mxu0 0
        %531 = vmatpush1.bf16.msra.mxu0 0
        %532 = vmatprep.subr.bf16.mxu0 0
        %533 = vmatpush1.bf16.msra.mxu0 0
        %534 = vmatprep.subr.bf16.mxu0 0
        %535 = vmatpush1.bf16.msra.mxu0 0
        %536 = vmatprep.subr.bf16.mxu0 0
        %537 = vmatpush1.bf16.msra.mxu0 0
        %538 = vmatprep.subr.bf16.mxu0 0
        %539 = vmatpush1.bf16.msra.mxu0 0
        %540 = vmatprep.subr.bf16.mxu0 0
        %541 = vmatpush1.bf16.msra.mxu0 0
        %542 = vmatprep.mubr.bf16.mxu0 0
        %543 = vmatmul.mubr.bf16.gmra.mrb[0].mxu0 %v446
        %v544 = vpop.f32.mrb[0].mxu0
        %v545 = vadd.f32 0.0, %v544
        %v546 = vpop.f32.mrb[0].mxu0
        %v547 = vpop.f32.mrb[0].mxu0
        %v548 = vadd.f32 0.0, %v547
        %v549 = vpop.f32.mrb[0].mxu0
        %550 = vmatprep.mubr.bf16.mxu0 0
        %551 = vmatmul.mubr.bf16.gmra.mrb[0].mxu0 %v447
        %v552 = vpop.f32.mrb[0].mxu0
        %v553 = vadd.f32 0.0, %v552
        %v554 = vpop.f32.mrb[0].mxu0
        %v555 = vpop.f32.mrb[0].mxu0
        %v556 = vadd.f32 0.0, %v555
        %v557 = vpop.f32.mrb[0].mxu0
        %558 = vmatprep.mubr.bf16.mxu0 0
        %559 = vmatmul.mubr.bf16.gmra.mrb[0].mxu0 %v448
        %v560 = vpop.f32.mrb[0].mxu0
        %v561 = vadd.f32 0.0, %v560
        %v562 = vpop.f32.mrb[0].mxu0
        %v563 = vpop.f32.mrb[0].mxu0
        %v564 = vadd.f32 0.0, %v563
        %v565 = vpop.f32.mrb[0].mxu0
        %566 = vmatprep.mubr.bf16.mxu0 0
        %567 = vmatmul.mubr.bf16.gmra.mrb[0].mxu0 %v449
        %v568 = vpop.f32.mrb[0].mxu0
        %v569 = vadd.f32 0.0, %v568
        %v570 = vpop.f32.mrb[0].mxu0
        %v571 = vpop.f32.mrb[0].mxu0
        %v572 = vadd.f32 0.0, %v571
        %v573 = vpop.f32.mrb[0].mxu0
        %574 = vmatprep.mubr.bf16.mxu0 0
        %575 = vmatmul.mubr.bf16.gmra.mrb[0].mxu0 %v450
        %v576 = vpop.f32.mrb[0].mxu0
        %v577 = vadd.f32 0.0, %v576
        %v578 = vpop.f32.mrb[0].mxu0
        %v579 = vpop.f32.mrb[0].mxu0
        %v580 = vadd.f32 0.0, %v579
        %v581 = vpop.f32.mrb[0].mxu0
        %582 = vmatprep.mubr.bf16.mxu0 0
        %583 = vmatmul.mubr.bf16.gmra.mrb[0].mxu0 %v451
        %v584 = vpop.f32.mrb[0].mxu0
        %v585 = vadd.f32 0.0, %v584
        %v586 = vpop.f32.mrb[0].mxu0
        %v587 = vpop.f32.mrb[0].mxu0
        %v588 = vadd.f32 0.0, %v587
        %v589 = vpop.f32.mrb[0].mxu0
        %590 = vmatprep.mubr.bf16.mxu0 0
        %591 = vmatmul.mubr.bf16.gmra.mrb[0].mxu0 %v452
        %v592 = vpop.f32.mrb[0].mxu0
        %v593 = vadd.f32 0.0, %v592
        %v594 = vpop.f32.mrb[0].mxu0
        %v595 = vpop.f32.mrb[0].mxu0
        %v596 = vadd.f32 0.0, %v595
        %v597 = vpop.f32.mrb[0].mxu0
        %598 = vmatprep.mubr.bf16.mxu0 0
        %599 = vmatmul.mubr.bf16.gmra.mrb[0].mxu0 %v453
        %v600 = vpop.f32.mrb[0].mxu0
        %v601 = vadd.f32 0.0, %v600
        %v602 = vpop.f32.mrb[0].mxu0
        %v603 = vpop.f32.mrb[0].mxu0
        %v604 = vadd.f32 0.0, %v603
        %v605 = vpop.f32.mrb[0].mxu0
        %606 = vdwg.mxu0
        %v607 = vadd.f32 %v382, %v545
        %v608 = vadd.f32 %v383, %v548
        %v609 = vadd.f32 %v384, %v553
        %v610 = vadd.f32 %v385, %v556
        %v611 = vadd.f32 %v386, %v561
        %v612 = vadd.f32 %v387, %v564
        %v613 = vadd.f32 %v388, %v569
        %v614 = vadd.f32 %v389, %v572
        %v615 = vadd.f32 %v390, %v577
        %v616 = vadd.f32 %v391, %v580
        %v617 = vadd.f32 %v392, %v585
        %v618 = vadd.f32 %v393, %v588
        %v619 = vadd.f32 %v394, %v593
        %v620 = vadd.f32 %v395, %v596
        %v621 = vadd.f32 %v396, %v601
        %v622 = vadd.f32 %v397, %v604
        %vm623 = vcmask 523264
        %624 = vst.msk [vmem:[%s319] sm:$0xff] %vm623, %v607
        %625 = vst.msk [vmem:[%s319 + $0x8] sm:$0xff] %vm623, %v608
        %626 = vst.msk [vmem:[%s319 + $0x10] sm:$0xff] %vm623, %v609
        %627 = vst.msk [vmem:[%s319 + $0x18] sm:$0xff] %vm623, %v610
        %628 = vst.msk [vmem:[%s319 + $0x20] sm:$0xff] %vm623, %v611
        %629 = vst.msk [vmem:[%s319 + $0x28] sm:$0xff] %vm623, %v612
        %630 = vst.msk [vmem:[%s319 + $0x30] sm:$0xff] %vm623, %v613
        %631 = vst.msk [vmem:[%s319 + $0x38] sm:$0xff] %vm623, %v614
        %632 = vst.msk [vmem:[%s319 + $0x40] sm:$0xff] %vm623, %v615
        %633 = vst.msk [vmem:[%s319 + $0x48] sm:$0xff] %vm623, %v616
        %634 = vst.msk [vmem:[%s319 + $0x50] sm:$0xff] %vm623, %v617
        %635 = vst.msk [vmem:[%s319 + $0x58] sm:$0xff] %vm623, %v618
        %636 = vst.msk [vmem:[%s319 + $0x60] sm:$0xff] %vm623, %v619
        %637 = vst.msk [vmem:[%s319 + $0x68] sm:$0xff] %vm623, %v620
        %638 = vst.msk [vmem:[%s319 + $0x70] sm:$0xff] %vm623, %v621
        %639 = vst.msk [vmem:[%s319 + $0x78] sm:$0xff] %vm623, %v622
        %v640 = vld [vmem:[%s325] sm:$0xff]
        %v641 = vld [vmem:[%s325 + $0x8] sm:$0xff]
        %v642 = vld [vmem:[%s325 + $0x10] sm:$0xff]
        %v643 = vld [vmem:[%s325 + $0x18] sm:$0xff]
        %v644 = vld [vmem:[%s325 + $0x20] sm:$0xff]
        %v645 = vld [vmem:[%s325 + $0x28] sm:$0xff]
        %v646 = vld [vmem:[%s325 + $0x30] sm:$0xff]
        %v647 = vld [vmem:[%s325 + $0x38] sm:$0xff]
        %v648 = vld [vmem:[%s325 + $0x40] sm:$0xff]
        %v649 = vld [vmem:[%s325 + $0x48] sm:$0xff]
        %v650 = vld [vmem:[%s325 + $0x50] sm:$0xff]
        %v651 = vld [vmem:[%s325 + $0x58] sm:$0xff]
        %v652 = vld [vmem:[%s325 + $0x60] sm:$0xff]
        %v653 = vld [vmem:[%s325 + $0x68] sm:$0xff]
        %v654 = vld [vmem:[%s325 + $0x70] sm:$0xff]
        %v655 = vld [vmem:[%s325 + $0x78] sm:$0xff]
        %v656 = vunpack.c.l.bf16 %v366
        %v657 = vunpack.c.l.bf16 %v367
        %v658 = vunpack.c.l.bf16 %v368
        %v659 = vunpack.c.l.bf16 %v369
        %v660 = vunpack.c.l.bf16 %v370
        %v661 = vunpack.c.l.bf16 %v371
        %v662 = vunpack.c.l.bf16 %v372
        %v663 = vunpack.c.l.bf16 %v373
        %v664 = vunpack.c.l.bf16 %v374
        %v665 = vunpack.c.l.bf16 %v375
        %v666 = vunpack.c.l.bf16 %v376
        %v667 = vunpack.c.l.bf16 %v377
        %v668 = vunpack.c.l.bf16 %v378
        %v669 = vunpack.c.l.bf16 %v379
        %v670 = vunpack.c.l.bf16 %v380
        %v671 = vunpack.c.l.bf16 %v381
        %672 = vadd.xlane.f32.xlu0 %v656
        %v673 = vpop.xlane.xlu0 %672
        %674 = vadd.xlane.f32.xlu0 %v657
        %v675 = vpop.xlane.xlu0 %674
        %676 = vadd.xlane.f32.xlu0 %v658
        %v677 = vpop.xlane.xlu0 %676
        %678 = vadd.xlane.f32.xlu0 %v659
        %v679 = vpop.xlane.xlu0 %678
        %680 = vadd.xlane.f32.xlu0 %v660
        %v681 = vpop.xlane.xlu0 %680
        %682 = vadd.xlane.f32.xlu0 %v661
        %v683 = vpop.xlane.xlu0 %682
        %684 = vadd.xlane.f32.xlu0 %v662
        %v685 = vpop.xlane.xlu0 %684
        %686 = vadd.xlane.f32.xlu0 %v663
        %v687 = vpop.xlane.xlu0 %686
        %688 = vadd.xlane.f32.xlu0 %v664
        %v689 = vpop.xlane.xlu0 %688
        %690 = vadd.xlane.f32.xlu0 %v665
        %v691 = vpop.xlane.xlu0 %690
        %692 = vadd.xlane.f32.xlu0 %v666
        %v693 = vpop.xlane.xlu0 %692
        %694 = vadd.xlane.f32.xlu0 %v667
        %v695 = vpop.xlane.xlu0 %694
        %696 = vadd.xlane.f32.xlu0 %v668
        %v697 = vpop.xlane.xlu0 %696
        %698 = vadd.xlane.f32.xlu0 %v669
        %v699 = vpop.xlane.xlu0 %698
        %700 = vadd.xlane.f32.xlu0 %v670
        %v701 = vpop.xlane.xlu0 %700
        %702 = vadd.xlane.f32.xlu0 %v671
        %v703 = vpop.xlane.xlu0 %702
        %v704 = vadd.f32 %v640, %v673
        %v705 = vadd.f32 %v641, %v675
        %v706 = vadd.f32 %v642, %v677
        %v707 = vadd.f32 %v643, %v679
        %v708 = vadd.f32 %v644, %v681
        %v709 = vadd.f32 %v645, %v683
        %v710 = vadd.f32 %v646, %v685
        %v711 = vadd.f32 %v647, %v687
        %v712 = vadd.f32 %v648, %v689
        %v713 = vadd.f32 %v649, %v691
        %v714 = vadd.f32 %v650, %v693
        %v715 = vadd.f32 %v651, %v695
        %v716 = vadd.f32 %v652, %v697
        %v717 = vadd.f32 %v653, %v699
        %v718 = vadd.f32 %v654, %v701
        %v719 = vadd.f32 %v655, %v703
        %vm720 = vcmask 7168
        %721 = vst.msk [vmem:[%s325] sm:$0xff] %vm720, %v704
        %722 = vst.msk [vmem:[%s325 + $0x8] sm:$0xff] %vm720, %v705
        %723 = vst.msk [vmem:[%s325 + $0x10] sm:$0xff] %vm720, %v706
        %724 = vst.msk [vmem:[%s325 + $0x18] sm:$0xff] %vm720, %v707
        %725 = vst.msk [vmem:[%s325 + $0x20] sm:$0xff] %vm720, %v708
        %726 = vst.msk [vmem:[%s325 + $0x28] sm:$0xff] %vm720, %v709
        %727 = vst.msk [vmem:[%s325 + $0x30] sm:$0xff] %vm720, %v710
        %728 = vst.msk [vmem:[%s325 + $0x38] sm:$0xff] %vm720, %v711
        %729 = vst.msk [vmem:[%s325 + $0x40] sm:$0xff] %vm720, %v712
        %730 = vst.msk [vmem:[%s325 + $0x48] sm:$0xff] %vm720, %v713
        %731 = vst.msk [vmem:[%s325 + $0x50] sm:$0xff] %vm720, %v714
        %732 = vst.msk [vmem:[%s325 + $0x58] sm:$0xff] %vm720, %v715
        %733 = vst.msk [vmem:[%s325 + $0x60] sm:$0xff] %vm720, %v716
        %734 = vst.msk [vmem:[%s325 + $0x68] sm:$0xff] %vm720, %v717
        %735 = vst.msk [vmem:[%s325 + $0x70] sm:$0xff] %vm720, %v718
        %736 = vst.msk [vmem:[%s325 + $0x78] sm:$0xff] %vm720, %v719
        %s737 = smul.u32 16, %s19
        %p738 = scmp.lt.s32.totalorder %s737, 47
        %s739 = scalar_select %p738, %s737, 47
        %s740 = smul.addr %s739, 8
        %s741 = scalar_lea.vmem %s2, %s740
        %s742 = smul.u32 16, %s19
        %p743 = scmp.lt.s32.totalorder %s742, 47
        %s744 = scalar_select %p743, %s742, 47
        %s745 = smul.addr %s744, 8
        %s746 = scalar_lea.vmem %s3, %s745
        // Predicated region
        $region74: #{gcmc_forward.4} parent=64 // pred_check
          %p747 = pneg %p99
        $region75: #{gcmc_forward.4} parent=64 // pred_check_branch
          %749 = sbr.rel (%p747) target = $region77
        $region76: #{gcmc_forward.4} parent=64 // pred_region
          %s750 = smul.u32 16, %s19
        $region77: #{gcmc_forward.4} parent=64 // pred_fallthru
          _
        // Predicated region
        $region78: #{gcmc_forward.4} parent=64 // pred_check
          %p751 = pneg %p125
        $region79: #{gcmc_forward.4} parent=64 // pred_check_branch
          %753 = sbr.rel (%p751) target = $region81
        $region80: #{gcmc_forward.4} parent=64 // pred_region
          %s754 = smul.u32 16, %s19
        $region81: #{gcmc_forward.4} parent=64 // pred_fallthru
          _
      $region65: #{gcmc_forward.4} parent=5 // pred_fallthru
        _
      %p755 = scmp.le.s32.totalorder 2, %s10
      // Predicated region
      $region82: #{gcmc_forward.4} parent=5 // pred_check
        %p756 = pneg %p755
      $region83: #{gcmc_forward.4} parent=5 // pred_check_branch
        %758 = sbr.rel (%p756) target = $region85
      $region84: #{gcmc_forward.4} parent=5 // pred_region
        %s759 = ssub.s32 %s10, 2
        // Predicated region
        $region86: #{gcmc_forward.4} parent=84 // pred_check
          %p760 = pneg %p105
        $region87: #{gcmc_forward.4} parent=84 // pred_check_branch
          %762 = sbr.rel (%p760) target = $region89
        $region88: #{gcmc_forward.4} parent=84 // pred_region
          %s763 = smul.u32 16, %s21
          %p764 = scmp.lt.s32.totalorder %s763, 47
          %s765 = scalar_select %p764, %s763, 47
          %s766 = smul.addr %s765, 8
          %s767 = scalar_lea.vmem %s2, %s766
        $region89: #{gcmc_forward.4} parent=84 // pred_fallthru
          _
        // Predicated region
        $region90: #{gcmc_forward.4} parent=84 // pred_check
          %p768 = pneg %p131
        $region91: #{gcmc_forward.4} parent=84 // pred_check_branch
          %770 = sbr.rel (%p768) target = $region93
        $region92: #{gcmc_forward.4} parent=84 // pred_region
          %s771 = smul.u32 16, %s21
          %p772 = scmp.lt.s32.totalorder %s771, 47
          %s773 = scalar_select %p772, %s771, 47
          %s774 = smul.addr %s773, 8
          %s775 = scalar_lea.vmem %s3, %s774
        $region93: #{gcmc_forward.4} parent=84 // pred_fallthru
          _
      $region85: #{gcmc_forward.4} parent=5 // pred_fallthru
        _
    $region6: #{gcmc_forward.4} parent=1 // loop_footer
      %s14 = sadd.s32 1, %s10
    $region7: #{gcmc_forward.4} parent=1 // loop_footer_branch
      %9 = sbr.rel target = $region3
    $region8: #{gcmc_forward.4} parent=1 // loop_exit
      _

// kernel: gcmc_forward.3
$region0: #{gcmc_forward.3}
  #allocation0 [shape = 'u32[]', space=smem, size = 0x4, offset = 0x4, fixed_abs, tag = 'smem constant byte address 0x4 - core index']
  #allocation1 [shape = 'u32[144,128]{1,0:T(1,128)}', space=vmem, size = 0x12000, scoped, tag = 'internal scratch']
  %s0 = inlined_call_operand.vmem [shape: bf16[384,384], index: 0, kind: input, shape index: {}]
  %s1 = inlined_call_operand.vmem [shape: bf16[384,64], index: 1, kind: input, shape index: {}]
  %s2 = inlined_call_operand.vmem [shape: f32[384,64], index: 2, kind: output, shape index: {0}]
  %s3 = inlined_call_operand.vmem [shape: f32[384,1], index: 3, kind: output, shape index: {1}]
  %4 = xla_tuple %s2, %s3
  %s5 = sld [smem:[#allocation0]]
  $region94: #{gcmc_forward.3} parent=0
    _
  %s7 = ssub.s32 1, %s5
  %s8 = scalar_select 0, %s7, %s5
  $region1: #{gcmc_forward.3} parent=0
    #allocation2 [shape = 'u8[65536]{0}', space=vmem, size = 0x10000, scoped, tag = 'input window, operand 0']
    loop: start=0, step=1, limit=11
    $region2: #{gcmc_forward.3} parent=1 // loop_pre_header
      _
    $region3: #{gcmc_forward.3} parent=1 // loop_header
      %s10 = sphi 0, %s14
      %p11 = scmp.ge.s32.totalorder %s10, 11
      %s17 = sphi 0, %s29
      %s18 = sphi 0, %s25
      %s19 = sphi 0, %s17
      %s20 = sphi 0, %s18
      %s21 = sphi 0, %s19
      %s22 = sphi 0, %s20
      %s34 = sphi 0, %s36
      %s37 = sphi 0, %s34
      %s38 = sphi 0, %s37
      %s54 = sphi 0, %s38
      %s60 = sphi 0, %s62
      %s63 = sphi 0, %s60
      %s64 = sphi 0, %s63
      %s80 = sphi 0, %s64
      %s86 = sphi 0, %s88
      %s89 = sphi 0, %s86
      %s90 = sphi 0, %s89
      %s106 = sphi 0, %s90
      %s112 = sphi 0, %s114
      %s115 = sphi 0, %s112
      %s116 = sphi 0, %s115
      %s132 = sphi 0, %s116
    $region4: #{gcmc_forward.3} parent=1 // loop_header_branch
      %13 = sbr.rel (%p11) target = $region8
    $region5: #{gcmc_forward.3} parent=1 // loop_body
      %s15 = ssub.s32 %s10, 1
      %s16 = ssub.s32 %s10, 2
      %s23 = sadd.s32 1, %s18
      %p24 = scmp.ge.s32.totalorder %s23, 3
      %s25 = scalar_select %p24, 0, %s23
      %s26 = sadd.s32 1, %s17
      %s27 = scalar_select %p24, %s26, %s17
      %p28 = scmp.ge.s32.totalorder %s27, 3
      %s29 = scalar_select %p28, 0, %s27
      %s30 = ssub.s32 %s17, %s29
      %s31 = ssub.s32 %s18, %s25
      %s32 = sor.u32 %s30, %s31
      %p33 = scmp.eq.s32.totalorder %s32, 0
      %s35 = sadd.s32 %s34, 1
      %s36 = scalar_select %p33, %s34, %s35
      %p39 = pneg %p33
      %p40 = scmp.eq.s32.totalorder %s10, 8
      %p41 = por %p39, %p40
      %p42 = scmp.ne.s32.totalorder %s34, %s37
      %p43 = scmp.eq.s32.totalorder %s10, 0
      %p44 = por %p42, %p43
      %p45 = scmp.ne.s32.totalorder %s34, %s37
      %p46 = scmp.eq.s32.totalorder %s15, 8
      %p47 = por %p45, %p46
      %p48 = scmp.ne.s32.totalorder %s37, %s38
      %p49 = scmp.eq.s32.totalorder %s15, 0
      %p50 = por %p48, %p49
      %p51 = scmp.ne.s32.totalorder %s37, %s38
      %p52 = scmp.eq.s32.totalorder %s16, 8
      %p53 = por %p51, %p52
      %p55 = scmp.ne.s32.totalorder %s38, %s54
      %p56 = scmp.eq.s32.totalorder %s16, 0
      %p57 = por %p55, %p56
      %s58 = ssub.s32 %s18, %s25
      %p59 = scmp.eq.s32.totalorder %s58, 0
      %s61 = sadd.s32 %s60, 1
      %s62 = scalar_select %p59, %s60, %s61
      %p65 = pneg %p59
      %p66 = scmp.eq.s32.totalorder %s10, 8
      %p67 = por %p65, %p66
      %p68 = scmp.ne.s32.totalorder %s60, %s63
      %p69 = scmp.eq.s32.totalorder %s10, 0
      %p70 = por %p68, %p69
      %p71 = scmp.ne.s32.totalorder %s60, %s63
      %p72 = scmp.eq.s32.totalorder %s15, 8
      %p73 = por %p71, %p72
      %p74 = scmp.ne.s32.totalorder %s63, %s64
      %p75 = scmp.eq.s32.totalorder %s15, 0
      %p76 = por %p74, %p75
      %p77 = scmp.ne.s32.totalorder %s63, %s64
      %p78 = scmp.eq.s32.totalorder %s16, 8
      %p79 = por %p77, %p78
      %p81 = scmp.ne.s32.totalorder %s64, %s80
      %p82 = scmp.eq.s32.totalorder %s16, 0
      %p83 = por %p81, %p82
      %s84 = ssub.s32 %s17, %s29
      %p85 = scmp.eq.s32.totalorder %s84, 0
      %s87 = sadd.s32 %s86, 1
      %s88 = scalar_select %p85, %s86, %s87
      %p91 = pneg %p85
      %p92 = scmp.eq.s32.totalorder %s10, 8
      %p93 = por %p91, %p92
      %p94 = scmp.ne.s32.totalorder %s86, %s89
      %p95 = scmp.eq.s32.totalorder %s10, 0
      %p96 = por %p94, %p95
      %p97 = scmp.ne.s32.totalorder %s86, %s89
      %p98 = scmp.eq.s32.totalorder %s15, 8
      %p99 = por %p97, %p98
      %p100 = scmp.ne.s32.totalorder %s89, %s90
      %p101 = scmp.eq.s32.totalorder %s15, 0
      %p102 = por %p100, %p101
      %p103 = scmp.ne.s32.totalorder %s89, %s90
      %p104 = scmp.eq.s32.totalorder %s16, 8
      %p105 = por %p103, %p104
      %p107 = scmp.ne.s32.totalorder %s90, %s106
      %p108 = scmp.eq.s32.totalorder %s16, 0
      %p109 = por %p107, %p108
      %s110 = ssub.s32 %s17, %s29
      %p111 = scmp.eq.s32.totalorder %s110, 0
      %s113 = sadd.s32 %s112, 1
      %s114 = scalar_select %p111, %s112, %s113
      %p117 = pneg %p111
      %p118 = scmp.eq.s32.totalorder %s10, 8
      %p119 = por %p117, %p118
      %p120 = scmp.ne.s32.totalorder %s112, %s115
      %p121 = scmp.eq.s32.totalorder %s10, 0
      %p122 = por %p120, %p121
      %p123 = scmp.ne.s32.totalorder %s112, %s115
      %p124 = scmp.eq.s32.totalorder %s15, 8
      %p125 = por %p123, %p124
      %p126 = scmp.ne.s32.totalorder %s115, %s116
      %p127 = scmp.eq.s32.totalorder %s15, 0
      %p128 = por %p126, %p127
      %p129 = scmp.ne.s32.totalorder %s115, %s116
      %p130 = scmp.eq.s32.totalorder %s16, 8
      %p131 = por %p129, %p130
      %p133 = scmp.ne.s32.totalorder %s116, %s132
      %p134 = scmp.eq.s32.totalorder %s16, 0
      %p135 = por %p133, %p134
      %p136 = scmp.le.s32.totalorder 1, %s10
      %p137 = scmp.lt.s32.totalorder %s10, 10
      %p138 = pnand %p136, %p137
      %p139 = pneg %p138
      // Predicated region
      $region9: #{gcmc_forward.3} parent=5 // pred_check
        _
      $region10: #{gcmc_forward.3} parent=5 // pred_check_branch
        %141 = sbr.rel (%p138) target = $region12
      $region11: #{gcmc_forward.3} parent=5 // pred_region
        %s142 = ssub.s32 %s10, 1
      $region12: #{gcmc_forward.3} parent=5 // pred_fallthru
        _
      %p143 = scmp.lt.s32.totalorder %s10, 9
      // Predicated region
      $region13: #{gcmc_forward.3} parent=5 // pred_check
        %p144 = pneg %p143
      $region14: #{gcmc_forward.3} parent=5 // pred_check_branch
        %146 = sbr.rel (%p144) target = $region16
      $region15: #{gcmc_forward.3} parent=5 // pred_region
        // Predicated region
        $region17: #{gcmc_forward.3} parent=15 // pred_check
          %p147 = pneg %p44
        $region18: #{gcmc_forward.3} parent=15 // pred_check_branch
          %149 = sbr.rel (%p147) target = $region20
        $region19: #{gcmc_forward.3} parent=15 // pred_region
          %s150 = sand.u32 %s34, 1
          %s151 = sand.u32 %s34, 1
          %s152 = smul.addr %s151, 64
          %s153 = scalar_lea.vmem [#allocation2], %s152
          %s154 = smul.u32 16, %s17
          %s155 = smul.addr %s154, 3
          %s156 = sadd.s32 %s18, %s155
          %s157 = smul.addr %s156, 4
          %s158 = scalar_lea.vmem %s0, %s157
          // Predicated region
          $region21: #{gcmc_forward.3} parent=19 // pred_check
            _
          $region22: #{gcmc_forward.3} parent=19 // pred_check_branch
            %160 = sbr.rel (0) target = $region24
          $region23: #{gcmc_forward.3} parent=19 // pred_region
            // Predicated region
            $region25: #{gcmc_forward.3} parent=23 // pred_check
              _
            $region26: #{gcmc_forward.3} parent=23 // pred_check_branch
              %162 = sbr.rel target = $region28
            $region27: #{gcmc_forward.3} parent=23 // pred_region
              // Predicated region
              $region40: #{gcmc_forward.3} parent=27 // pred_check
                _
              $region41: #{gcmc_forward.3} parent=27 // pred_check_branch
                %207 = sbr.rel (0) target = $region43
              $region42: #{gcmc_forward.3} parent=27 // pred_region
                loop: start=0, step=1, limit=1
                $region44: #{gcmc_forward.3} parent=42 // loop_pre_header
                  _
                $region45: #{gcmc_forward.3} parent=42 // loop_header
                  %s209 = sphi 0, %s213
                  %p210 = scmp.ge.s32.totalorder %s209, 1
                  %s214 = sphi %s158, %s158
                  %s215 = sphi %s153, %s153
                $region46: #{gcmc_forward.3} parent=42 // loop_header_branch
                  %212 = sbr.rel (%p210) target = $region50
                $region47: #{gcmc_forward.3} parent=42 // loop_body
                  _
                $region48: #{gcmc_forward.3} parent=42 // loop_footer
                  %s213 = sadd.s32 1, %s209
                $region49: #{gcmc_forward.3} parent=42 // loop_footer_branch
                  %208 = sbr.rel target = $region45
                $region50: #{gcmc_forward.3} parent=42 // loop_exit
                  _
                loop: start=0, step=1, limit=1
                $region51: #{gcmc_forward.3} parent=42 // loop_pre_header
                  _
                $region52: #{gcmc_forward.3} parent=42 // loop_header
                  %s218 = sphi 0, %s222
                  %p219 = scmp.ge.s32.totalorder %s218, 1
                  %s223 = sphi %s158, %s158
                  %s224 = sphi %s153, %s153
                $region53: #{gcmc_forward.3} parent=42 // loop_header_branch
                  %221 = sbr.rel (%p219) target = $region57
                $region54: #{gcmc_forward.3} parent=42 // loop_body
                  %v225 = vld [vmem:[%s223] sm:$0xf]
                  %226 = vst [vmem:[%s224] sm:$0xf] %v225
                  %v227 = vld [vmem:[%s223 + $0xc] sm:$0xf]
                  %228 = vst [vmem:[%s224 + $0x4] sm:$0xf] %v227
                  %v229 = vld [vmem:[%s223 + $0x18] sm:$0xf]
                  %230 = vst [vmem:[%s224 + $0x8] sm:$0xf] %v229
                  %v231 = vld [vmem:[%s223 + $0x24] sm:$0xf]
                  %232 = vst [vmem:[%s224 + $0xc] sm:$0xf] %v231
                  %v233 = vld [vmem:[%s223 + $0x30] sm:$0xf]
                  %234 = vst [vmem:[%s224 + $0x10] sm:$0xf] %v233
                  %v235 = vld [vmem:[%s223 + $0x3c] sm:$0xf]
                  %236 = vst [vmem:[%s224 + $0x14] sm:$0xf] %v235
                  %v237 = vld [vmem:[%s223 + $0x48] sm:$0xf]
                  %238 = vst [vmem:[%s224 + $0x18] sm:$0xf] %v237
                  %v239 = vld [vmem:[%s223 + $0x54] sm:$0xf]
                  %240 = vst [vmem:[%s224 + $0x1c] sm:$0xf] %v239
                  %v241 = vld [vmem:[%s223 + $0x60] sm:$0xf]
                  %242 = vst [vmem:[%s224 + $0x20] sm:$0xf] %v241
                  %v243 = vld [vmem:[%s223 + $0x6c] sm:$0xf]
                  %244 = vst [vmem:[%s224 + $0x24] sm:$0xf] %v243
                  %v245 = vld [vmem:[%s223 + $0x78] sm:$0xf]
                  %246 = vst [vmem:[%s224 + $0x28] sm:$0xf] %v245
                  %v247 = vld [vmem:[%s223 + $0x84] sm:$0xf]
                  %248 = vst [vmem:[%s224 + $0x2c] sm:$0xf] %v247
                  %v249 = vld [vmem:[%s223 + $0x90] sm:$0xf]
                  %250 = vst [vmem:[%s224 + $0x30] sm:$0xf] %v249
                  %v251 = vld [vmem:[%s223 + $0x9c] sm:$0xf]
                  %252 = vst [vmem:[%s224 + $0x34] sm:$0xf] %v251
                  %v253 = vld [vmem:[%s223 + $0xa8] sm:$0xf]
                  %254 = vst [vmem:[%s224 + $0x38] sm:$0xf] %v253
                  %v255 = vld [vmem:[%s223 + $0xb4] sm:$0xf]
                  %256 = vst [vmem:[%s224 + $0x3c] sm:$0xf] %v255
                $region55: #{gcmc_forward.3} parent=42 // loop_footer
                  %s222 = sadd.s32 1, %s218
                $region56: #{gcmc_forward.3} parent=42 // loop_footer_branch
                  %217 = sbr.rel target = $region52
                $region57: #{gcmc_forward.3} parent=42 // loop_exit
                  _
              $region43: #{gcmc_forward.3} parent=27 // pred_fallthru
                _
            $region28: #{gcmc_forward.3} parent=23 // pred_fallthru
              _
            // Predicated region
            $region29: #{gcmc_forward.3} parent=23 // pred_check
              _
            $region30: #{gcmc_forward.3} parent=23 // pred_check_branch
              %164 = sbr.rel (0) target = $region32
            $region31: #{gcmc_forward.3} parent=23 // pred_region
              loop: start=0, step=1, limit=1
              $region33: #{gcmc_forward.3} parent=31 // loop_pre_header
                _
              $region34: #{gcmc_forward.3} parent=31 // loop_header
                %s167 = sphi 0, %s171
                %p168 = scmp.ge.s32.totalorder %s167, 1
                %s172 = sphi %s158, %s158
                %s173 = sphi %s153, %s153
              $region35: #{gcmc_forward.3} parent=31 // loop_header_branch
                %170 = sbr.rel (%p168) target = $region39
              $region36: #{gcmc_forward.3} parent=31 // loop_body
                %v174 = vld [vmem:[%s172] sm:$0xf]
                %175 = vst [vmem:[%s173] sm:$0xf] %v174
                %v176 = vld [vmem:[%s172 + $0xc] sm:$0xf]
                %177 = vst [vmem:[%s173 + $0x4] sm:$0xf] %v176
                %v178 = vld [vmem:[%s172 + $0x18] sm:$0xf]
                %179 = vst [vmem:[%s173 + $0x8] sm:$0xf] %v178
                %v180 = vld [vmem:[%s172 + $0x24] sm:$0xf]
                %181 = vst [vmem:[%s173 + $0xc] sm:$0xf] %v180
                %v182 = vld [vmem:[%s172 + $0x30] sm:$0xf]
                %183 = vst [vmem:[%s173 + $0x10] sm:$0xf] %v182
                %v184 = vld [vmem:[%s172 + $0x3c] sm:$0xf]
                %185 = vst [vmem:[%s173 + $0x14] sm:$0xf] %v184
                %v186 = vld [vmem:[%s172 + $0x48] sm:$0xf]
                %187 = vst [vmem:[%s173 + $0x18] sm:$0xf] %v186
                %v188 = vld [vmem:[%s172 + $0x54] sm:$0xf]
                %189 = vst [vmem:[%s173 + $0x1c] sm:$0xf] %v188
                %v190 = vld [vmem:[%s172 + $0x60] sm:$0xf]
                %191 = vst [vmem:[%s173 + $0x20] sm:$0xf] %v190
                %v192 = vld [vmem:[%s172 + $0x6c] sm:$0xf]
                %193 = vst [vmem:[%s173 + $0x24] sm:$0xf] %v192
                %v194 = vld [vmem:[%s172 + $0x78] sm:$0xf]
                %195 = vst [vmem:[%s173 + $0x28] sm:$0xf] %v194
                %v196 = vld [vmem:[%s172 + $0x84] sm:$0xf]
                %197 = vst [vmem:[%s173 + $0x2c] sm:$0xf] %v196
                %v198 = vld [vmem:[%s172 + $0x90] sm:$0xf]
                %199 = vst [vmem:[%s173 + $0x30] sm:$0xf] %v198
                %v200 = vld [vmem:[%s172 + $0x9c] sm:$0xf]
                %201 = vst [vmem:[%s173 + $0x34] sm:$0xf] %v200
                %v202 = vld [vmem:[%s172 + $0xa8] sm:$0xf]
                %203 = vst [vmem:[%s173 + $0x38] sm:$0xf] %v202
                %v204 = vld [vmem:[%s172 + $0xb4] sm:$0xf]
                %205 = vst [vmem:[%s173 + $0x3c] sm:$0xf] %v204
              $region37: #{gcmc_forward.3} parent=31 // loop_footer
                %s171 = sadd.s32 1, %s167
              $region38: #{gcmc_forward.3} parent=31 // loop_footer_branch
                %166 = sbr.rel target = $region34
              $region39: #{gcmc_forward.3} parent=31 // loop_exit
                _
            $region32: #{gcmc_forward.3} parent=23 // pred_fallthru
              _
          $region24: #{gcmc_forward.3} parent=19 // pred_fallthru
            _
          %257 = vnop
        $region20: #{gcmc_forward.3} parent=15 // pred_fallthru
          _
        // Predicated region
        $region58: #{gcmc_forward.3} parent=15 // pred_check
          %p258 = pneg %p70
        $region59: #{gcmc_forward.3} parent=15 // pred_check_branch
          %260 = sbr.rel (%p258) target = $region61
        $region60: #{gcmc_forward.3} parent=15 // pred_region
          %s261 = smul.u32 16, %s18
          %p262 = scmp.lt.s32.totalorder %s261, 47
          %s263 = scalar_select %p262, %s261, 47
          %s264 = smul.addr %s263, 4
          %s265 = scalar_lea.vmem %s1, %s264
          %s266 = smul.u32 16, %s18
        $region61: #{gcmc_forward.3} parent=15 // pred_fallthru
          _
      $region16: #{gcmc_forward.3} parent=5 // pred_fallthru
        _
      %p267 = scmp.le.s32.totalorder 1, %s10
      %p268 = scmp.lt.s32.totalorder %s10, 10
      %p269 = pnand %p267, %p268
      %p270 = pneg %p269
      // Predicated region
      $region62: #{gcmc_forward.3} parent=5 // pred_check
        _
      $region63: #{gcmc_forward.3} parent=5 // pred_check_branch
        %272 = sbr.rel (%p269) target = $region65
      $region64: #{gcmc_forward.3} parent=5 // pred_region
        %s273 = ssub.s32 %s10, 1
        %s274 = sand.u32 %s37, 1
        %s275 = sand.u32 %s37, 1
        %s276 = smul.addr %s275, 64
        %s277 = scalar_lea.vmem [#allocation2], %s276
        // Predicated region
        $region66: #{gcmc_forward.3} parent=64 // pred_check
          %p278 = pneg %p50
        $region67: #{gcmc_forward.3} parent=64 // pred_check_branch
          %280 = sbr.rel (%p278) target = $region69
        $region68: #{gcmc_forward.3} parent=64 // pred_region
          _
        $region69: #{gcmc_forward.3} parent=64 // pred_fallthru
          _
        %s281 = sand.u32 %s37, 1
        %s282 = sand.u32 %s37, 1
        %s283 = smul.addr %s282, 64
        %s284 = scalar_lea.vmem [#allocation2], %s283
        %p285 = pneg %p50
        %p286 = pneg %p47
        %s287 = smul.u32 16, %s20
        %p288 = scmp.lt.s32.totalorder %s287, 47
        %s289 = scalar_select %p288, %s287, 47
        %s290 = smul.addr %s289, 4
        %s291 = scalar_lea.vmem %s1, %s290
        %p292 = pneg %p76
        %p293 = pneg %p73
        %p294 = pneg %p102
        %p295 = pneg %p99
        %s296 = smul.u32 16, %s19
        %p297 = scmp.lt.s32.totalorder %s296, 47
        %s298 = scalar_select %p297, %s296, 47
        %s299 = smul.addr %s298, 8
        %s300 = scalar_lea.vmem %s2, %s299
        %p301 = pneg %p128
        %p302 = pneg %p125
        %s303 = smul.u32 16, %s19
        %p304 = scmp.lt.s32.totalorder %s303, 47
        %s305 = scalar_select %p304, %s303, 47
        %s306 = smul.addr %s305, 8
        %s307 = scalar_lea.vmem %s3, %s306
        %s308 = smul.u32 16, %s19
        %s309 = smul.u32 16, %s20
        %p310 = scmp.lt.s32.totalorder %s309, 47
        %s311 = scalar_select %p310, %s309, 47
        %s312 = smul.addr %s311, 4
        %s313 = scalar_lea.vmem %s1, %s312
        %s314 = smul.u32 16, %s20
        %s315 = smul.u32 16, %s19
        %p316 = scmp.lt.s32.totalorder %s315, 47
        %s317 = scalar_select %p316, %s315, 47
        %s318 = smul.addr %s317, 8
        %s319 = scalar_lea.vmem %s2, %s318
        %s320 = smul.u32 16, %s19
        %s321 = smul.u32 16, %s19
        %p322 = scmp.lt.s32.totalorder %s321, 47
        %s323 = scalar_select %p322, %s321, 47
        %s324 = smul.addr %s323, 8
        %s325 = scalar_lea.vmem %s3, %s324
        %s326 = smul.u32 16, %s19
        %p328 = scmp.eq.s32.totalorder %s20, 0
        // Predicated region
        $region70: #{gcmc_forward.3} parent=64 // pred_check
          %p329 = pneg %p328
        $region71: #{gcmc_forward.3} parent=64 // pred_check_branch
          %331 = sbr.rel (%p329) target = $region73
        $region72: #{gcmc_forward.3} parent=64 // pred_region
          %vm332 = vcmask 523264
          %333 = vst.msk [vmem:[%s319] sm:$0xff] %vm332, 0.0
          %334 = vst.msk [vmem:[%s319 + $0x8] sm:$0xff] %vm332, 0.0
          %335 = vst.msk [vmem:[%s319 + $0x10] sm:$0xff] %vm332, 0.0
          %336 = vst.msk [vmem:[%s319 + $0x18] sm:$0xff] %vm332, 0.0
          %337 = vst.msk [vmem:[%s319 + $0x20] sm:$0xff] %vm332, 0.0
          %338 = vst.msk [vmem:[%s319 + $0x28] sm:$0xff] %vm332, 0.0
          %339 = vst.msk [vmem:[%s319 + $0x30] sm:$0xff] %vm332, 0.0
          %340 = vst.msk [vmem:[%s319 + $0x38] sm:$0xff] %vm332, 0.0
          %341 = vst.msk [vmem:[%s319 + $0x40] sm:$0xff] %vm332, 0.0
          %342 = vst.msk [vmem:[%s319 + $0x48] sm:$0xff] %vm332, 0.0
          %343 = vst.msk [vmem:[%s319 + $0x50] sm:$0xff] %vm332, 0.0
          %344 = vst.msk [vmem:[%s319 + $0x58] sm:$0xff] %vm332, 0.0
          %345 = vst.msk [vmem:[%s319 + $0x60] sm:$0xff] %vm332, 0.0
          %346 = vst.msk [vmem:[%s319 + $0x68] sm:$0xff] %vm332, 0.0
          %347 = vst.msk [vmem:[%s319 + $0x70] sm:$0xff] %vm332, 0.0
          %348 = vst.msk [vmem:[%s319 + $0x78] sm:$0xff] %vm332, 0.0
          %vm349 = vcmask 7168
          %350 = vst.msk [vmem:[%s325] sm:$0xff] %vm349, 0.0
          %351 = vst.msk [vmem:[%s325 + $0x8] sm:$0xff] %vm349, 0.0
          %352 = vst.msk [vmem:[%s325 + $0x10] sm:$0xff] %vm349, 0.0
          %353 = vst.msk [vmem:[%s325 + $0x18] sm:$0xff] %vm349, 0.0
          %354 = vst.msk [vmem:[%s325 + $0x20] sm:$0xff] %vm349, 0.0
          %355 = vst.msk [vmem:[%s325 + $0x28] sm:$0xff] %vm349, 0.0
          %356 = vst.msk [vmem:[%s325 + $0x30] sm:$0xff] %vm349, 0.0
          %357 = vst.msk [vmem:[%s325 + $0x38] sm:$0xff] %vm349, 0.0
          %358 = vst.msk [vmem:[%s325 + $0x40] sm:$0xff] %vm349, 0.0
          %359 = vst.msk [vmem:[%s325 + $0x48] sm:$0xff] %vm349, 0.0
          %360 = vst.msk [vmem:[%s325 + $0x50] sm:$0xff] %vm349, 0.0
          %361 = vst.msk [vmem:[%s325 + $0x58] sm:$0xff] %vm349, 0.0
          %362 = vst.msk [vmem:[%s325 + $0x60] sm:$0xff] %vm349, 0.0
          %363 = vst.msk [vmem:[%s325 + $0x68] sm:$0xff] %vm349, 0.0
          %364 = vst.msk [vmem:[%s325 + $0x70] sm:$0xff] %vm349, 0.0
          %365 = vst.msk [vmem:[%s325 + $0x78] sm:$0xff] %vm349, 0.0
        $region73: #{gcmc_forward.3} parent=64 // pred_fallthru
          _
        %v366 = vld [vmem:[%s277] sm:$0xf]
        %v367 = vld [vmem:[%s277 + $0x4] sm:$0xf]
        %v368 = vld [vmem:[%s277 + $0x8] sm:$0xf]
        %v369 = vld [vmem:[%s277 + $0xc] sm:$0xf]
        %v370 = vld [vmem:[%s277 + $0x10] sm:$0xf]
        %v371 = vld [vmem:[%s277 + $0x14] sm:$0xf]
        %v372 = vld [vmem:[%s277 + $0x18] sm:$0xf]
        %v373 = vld [vmem:[%s277 + $0x1c] sm:$0xf]
        %v374 = vld [vmem:[%s277 + $0x20] sm:$0xf]
        %v375 = vld [vmem:[%s277 + $0x24] sm:$0xf]
        %v376 = vld [vmem:[%s277 + $0x28] sm:$0xf]
        %v377 = vld [vmem:[%s277 + $0x2c] sm:$0xf]
        %v378 = vld [vmem:[%s277 + $0x30] sm:$0xf]
        %v379 = vld [vmem:[%s277 + $0x34] sm:$0xf]
        %v380 = vld [vmem:[%s277 + $0x38] sm:$0xf]
        %v381 = vld [vmem:[%s277 + $0x3c] sm:$0xf]
        %v382 = vld [vmem:[%s319] sm:$0xff]
        %v383 = vld [vmem:[%s319 + $0x8] sm:$0xff]
        %v384 = vld [vmem:[%s319 + $0x10] sm:$0xff]
        %v385 = vld [vmem:[%s319 + $0x18] sm:$0xff]
        %v386 = vld [vmem:[%s319 + $0x20] sm:$0xff]
        %v387 = vld [vmem:[%s319 + $0x28] sm:$0xff]
        %v388 = vld [vmem:[%s319 + $0x30] sm:$0xff]
        %v389 = vld [vmem:[%s319 + $0x38] sm:$0xff]
        %v390 = vld [vmem:[%s319 + $0x40] sm:$0xff]
        %v391 = vld [vmem:[%s319 + $0x48] sm:$0xff]
        %v392 = vld [vmem:[%s319 + $0x50] sm:$0xff]
        %v393 = vld [vmem:[%s319 + $0x58] sm:$0xff]
        %v394 = vld [vmem:[%s319 + $0x60] sm:$0xff]
        %v395 = vld [vmem:[%s319 + $0x68] sm:$0xff]
        %v396 = vld [vmem:[%s319 + $0x70] sm:$0xff]
        %v397 = vld [vmem:[%s319 + $0x78] sm:$0xff]
        %v398 = vld [vmem:[%s313] sm:$0xf]
        %v399 = vld [vmem:[%s313 + $0x4] sm:$0xf]
        %v400 = vld [vmem:[%s313 + $0x8] sm:$0xf]
        %v401 = vld [vmem:[%s313 + $0xc] sm:$0xf]
        %v402 = vld [vmem:[%s313 + $0x10] sm:$0xf]
        %v403 = vld [vmem:[%s313 + $0x14] sm:$0xf]
        %v404 = vld [vmem:[%s313 + $0x18] sm:$0xf]
        %v405 = vld [vmem:[%s313 + $0x1c] sm:$0xf]
        %v406 = vld [vmem:[%s313 + $0x20] sm:$0xf]
        %v407 = vld [vmem:[%s313 + $0x24] sm:$0xf]
        %v408 = vld [vmem:[%s313 + $0x28] sm:$0xf]
        %v409 = vld [vmem:[%s313 + $0x2c] sm:$0xf]
        %v410 = vld [vmem:[%s313 + $0x30] sm:$0xf]
        %v411 = vld [vmem:[%s313 + $0x34] sm:$0xf]
        %v412 = vld [vmem:[%s313 + $0x38] sm:$0xf]
        %v413 = vld [vmem:[%s313 + $0x3c] sm:$0xf]
        %v430 = vunpack.c.l.b16 %v366
        %v431 = vunpack.c.l.b16 %v367
        %v432 = vunpack.c.l.b16 %v368
        %v433 = vunpack.c.l.b16 %v369
        %v434 = vunpack.c.l.b16 %v370
        %v435 = vunpack.c.l.b16 %v371
        %v436 = vunpack.c.l.b16 %v372
        %v437 = vunpack.c.l.b16 %v373
        %v438 = vunpack.c.l.b16 %v374
        %v439 = vunpack.c.l.b16 %v375
        %v440 = vunpack.c.l.b16 %v376
        %v441 = vunpack.c.l.b16 %v377
        %v442 = vunpack.c.l.b16 %v378
        %v443 = vunpack.c.l.b16 %v379
        %v444 = vunpack.c.l.b16 %v380
        %v445 = vunpack.c.l.b16 %v381
        %v446 = vpack.c.b16 %v431, %v430
        %v447 = vpack.c.b16 %v433, %v432
        %v448 = vpack.c.b16 %v435, %v434
        %v449 = vpack.c.b16 %v437, %v436
        %v450 = vpack.c.b16 %v439, %v438
        %v451 = vpack.c.b16 %v441, %v440
        %v452 = vpack.c.b16 %v443, %v442
        %v453 = vpack.c.b16 %v445, %v444
        %v478 = vunpack.c.l.b16 %v398
        %v479 = vunpack.c.l.b16 %v399
        %v480 = vunpack.c.l.b16 %v400
        %v481 = vunpack.c.l.b16 %v401
        %v482 = vunpack.c.l.b16 %v402
        %v483 = vunpack.c.l.b16 %v403
        %v484 = vunpack.c.l.b16 %v404
        %v485 = vunpack.c.l.b16 %v405
        %v486 = vunpack.c.l.b16 %v406
        %v487 = vunpack.c.l.b16 %v407
        %v488 = vunpack.c.l.b16 %v408
        %v489 = vunpack.c.l.b16 %v409
        %v490 = vunpack.c.l.b16 %v410
        %v491 = vunpack.c.l.b16 %v411
        %v492 = vunpack.c.l.b16 %v412
        %v493 = vunpack.c.l.b16 %v413
        %v494 = vpack.c.b16 %v479, %v478
        %v495 = vpack.c.b16 %v481, %v480
        %v496 = vpack.c.b16 %v483, %v482
        %v497 = vpack.c.b16 %v485, %v484
        %v498 = vpack.c.b16 %v487, %v486
        %v499 = vpack.c.b16 %v489, %v488
        %v500 = vpack.c.b16 %v491, %v490
        %v501 = vpack.c.b16 %v493, %v492
        %510 = vmatprep.subr.bf16.mxu0 0
        %511 = vmatpush1.bf16.msra.mxu0 %v494
        %512 = vmatprep.subr.bf16.mxu0 0
        %513 = vmatpush1.bf16.msra.mxu0 %v495
        %514 = vmatprep.subr.bf16.mxu0 0
        %515 = vmatpush1.bf16.msra.mxu0 %v496
        %516 = vmatprep.subr.bf16.mxu0 0
        %517 = vmatpush1.bf16.msra.mxu0 %v497
        %518 = vmatprep.subr.bf16.mxu0 0
        %519 = vmatpush1.bf16.msra.mxu0 %v498
        %520 = vmatprep.subr.bf16.mxu0 0
        %521 = vmatpush1.bf16.msra.mxu0 %v499
        %522 = vmatprep.subr.bf16.mxu0 0
        %523 = vmatpush1.bf16.msra.mxu0 %v500
        %524 = vmatprep.subr.bf16.mxu0 0
        %525 = vmatpush1.bf16.msra.mxu0 %v501
        %526 = vmatprep.subr.bf16.mxu0 0
        %527 = vmatpush1.bf16.msra.mxu0 0
        %528 = vmatprep.subr.bf16.mxu0 0
        %529 = vmatpush1.bf16.msra.mxu0 0
        %530 = vmatprep.subr.bf16.mxu0 0
        %531 = vmatpush1.bf16.msra.mxu0 0
        %532 = vmatprep.subr.bf16.mxu0 0
        %533 = vmatpush1.bf16.msra.mxu0 0
        %534 = vmatprep.subr.bf16.mxu0 0
        %535 = vmatpush1.bf16.msra.mxu0 0
        %536 = vmatprep.subr.bf16.mxu0 0
        %537 = vmatpush1.bf16.msra.mxu0 0
        %538 = vmatprep.subr.bf16.mxu0 0
        %539 = vmatpush1.bf16.msra.mxu0 0
        %540 = vmatprep.subr.bf16.mxu0 0
        %541 = vmatpush1.bf16.msra.mxu0 0
        %542 = vmatprep.mubr.bf16.mxu0 0
        %543 = vmatmul.mubr.bf16.gmra.mrb[0].mxu0 %v446
        %v544 = vpop.f32.mrb[0].mxu0
        %v545 = vadd.f32 0.0, %v544
        %v546 = vpop.f32.mrb[0].mxu0
        %v547 = vpop.f32.mrb[0].mxu0
        %v548 = vadd.f32 0.0, %v547
        %v549 = vpop.f32.mrb[0].mxu0
        %550 = vmatprep.mubr.bf16.mxu0 0
        %551 = vmatmul.mubr.bf16.gmra.mrb[0].mxu0 %v447
        %v552 = vpop.f32.mrb[0].mxu0
        %v553 = vadd.f32 0.0, %v552
        %v554 = vpop.f32.mrb[0].mxu0
        %v555 = vpop.f32.mrb[0].mxu0
        %v556 = vadd.f32 0.0, %v555
        %v557 = vpop.f32.mrb[0].mxu0
        %558 = vmatprep.mubr.bf16.mxu0 0
        %559 = vmatmul.mubr.bf16.gmra.mrb[0].mxu0 %v448
        %v560 = vpop.f32.mrb[0].mxu0
        %v561 = vadd.f32 0.0, %v560
        %v562 = vpop.f32.mrb[0].mxu0
        %v563 = vpop.f32.mrb[0].mxu0
        %v564 = vadd.f32 0.0, %v563
        %v565 = vpop.f32.mrb[0].mxu0
        %566 = vmatprep.mubr.bf16.mxu0 0
        %567 = vmatmul.mubr.bf16.gmra.mrb[0].mxu0 %v449
        %v568 = vpop.f32.mrb[0].mxu0
        %v569 = vadd.f32 0.0, %v568
        %v570 = vpop.f32.mrb[0].mxu0
        %v571 = vpop.f32.mrb[0].mxu0
        %v572 = vadd.f32 0.0, %v571
        %v573 = vpop.f32.mrb[0].mxu0
        %574 = vmatprep.mubr.bf16.mxu0 0
        %575 = vmatmul.mubr.bf16.gmra.mrb[0].mxu0 %v450
        %v576 = vpop.f32.mrb[0].mxu0
        %v577 = vadd.f32 0.0, %v576
        %v578 = vpop.f32.mrb[0].mxu0
        %v579 = vpop.f32.mrb[0].mxu0
        %v580 = vadd.f32 0.0, %v579
        %v581 = vpop.f32.mrb[0].mxu0
        %582 = vmatprep.mubr.bf16.mxu0 0
        %583 = vmatmul.mubr.bf16.gmra.mrb[0].mxu0 %v451
        %v584 = vpop.f32.mrb[0].mxu0
        %v585 = vadd.f32 0.0, %v584
        %v586 = vpop.f32.mrb[0].mxu0
        %v587 = vpop.f32.mrb[0].mxu0
        %v588 = vadd.f32 0.0, %v587
        %v589 = vpop.f32.mrb[0].mxu0
        %590 = vmatprep.mubr.bf16.mxu0 0
        %591 = vmatmul.mubr.bf16.gmra.mrb[0].mxu0 %v452
        %v592 = vpop.f32.mrb[0].mxu0
        %v593 = vadd.f32 0.0, %v592
        %v594 = vpop.f32.mrb[0].mxu0
        %v595 = vpop.f32.mrb[0].mxu0
        %v596 = vadd.f32 0.0, %v595
        %v597 = vpop.f32.mrb[0].mxu0
        %598 = vmatprep.mubr.bf16.mxu0 0
        %599 = vmatmul.mubr.bf16.gmra.mrb[0].mxu0 %v453
        %v600 = vpop.f32.mrb[0].mxu0
        %v601 = vadd.f32 0.0, %v600
        %v602 = vpop.f32.mrb[0].mxu0
        %v603 = vpop.f32.mrb[0].mxu0
        %v604 = vadd.f32 0.0, %v603
        %v605 = vpop.f32.mrb[0].mxu0
        %606 = vdwg.mxu0
        %v607 = vadd.f32 %v382, %v545
        %v608 = vadd.f32 %v383, %v548
        %v609 = vadd.f32 %v384, %v553
        %v610 = vadd.f32 %v385, %v556
        %v611 = vadd.f32 %v386, %v561
        %v612 = vadd.f32 %v387, %v564
        %v613 = vadd.f32 %v388, %v569
        %v614 = vadd.f32 %v389, %v572
        %v615 = vadd.f32 %v390, %v577
        %v616 = vadd.f32 %v391, %v580
        %v617 = vadd.f32 %v392, %v585
        %v618 = vadd.f32 %v393, %v588
        %v619 = vadd.f32 %v394, %v593
        %v620 = vadd.f32 %v395, %v596
        %v621 = vadd.f32 %v396, %v601
        %v622 = vadd.f32 %v397, %v604
        %vm623 = vcmask 523264
        %624 = vst.msk [vmem:[%s319] sm:$0xff] %vm623, %v607
        %625 = vst.msk [vmem:[%s319 + $0x8] sm:$0xff] %vm623, %v608
        %626 = vst.msk [vmem:[%s319 + $0x10] sm:$0xff] %vm623, %v609
        %627 = vst.msk [vmem:[%s319 + $0x18] sm:$0xff] %vm623, %v610
        %628 = vst.msk [vmem:[%s319 + $0x20] sm:$0xff] %vm623, %v611
        %629 = vst.msk [vmem:[%s319 + $0x28] sm:$0xff] %vm623, %v612
        %630 = vst.msk [vmem:[%s319 + $0x30] sm:$0xff] %vm623, %v613
        %631 = vst.msk [vmem:[%s319 + $0x38] sm:$0xff] %vm623, %v614
        %632 = vst.msk [vmem:[%s319 + $0x40] sm:$0xff] %vm623, %v615
        %633 = vst.msk [vmem:[%s319 + $0x48] sm:$0xff] %vm623, %v616
        %634 = vst.msk [vmem:[%s319 + $0x50] sm:$0xff] %vm623, %v617
        %635 = vst.msk [vmem:[%s319 + $0x58] sm:$0xff] %vm623, %v618
        %636 = vst.msk [vmem:[%s319 + $0x60] sm:$0xff] %vm623, %v619
        %637 = vst.msk [vmem:[%s319 + $0x68] sm:$0xff] %vm623, %v620
        %638 = vst.msk [vmem:[%s319 + $0x70] sm:$0xff] %vm623, %v621
        %639 = vst.msk [vmem:[%s319 + $0x78] sm:$0xff] %vm623, %v622
        %v640 = vld [vmem:[%s325] sm:$0xff]
        %v641 = vld [vmem:[%s325 + $0x8] sm:$0xff]
        %v642 = vld [vmem:[%s325 + $0x10] sm:$0xff]
        %v643 = vld [vmem:[%s325 + $0x18] sm:$0xff]
        %v644 = vld [vmem:[%s325 + $0x20] sm:$0xff]
        %v645 = vld [vmem:[%s325 + $0x28] sm:$0xff]
        %v646 = vld [vmem:[%s325 + $0x30] sm:$0xff]
        %v647 = vld [vmem:[%s325 + $0x38] sm:$0xff]
        %v648 = vld [vmem:[%s325 + $0x40] sm:$0xff]
        %v649 = vld [vmem:[%s325 + $0x48] sm:$0xff]
        %v650 = vld [vmem:[%s325 + $0x50] sm:$0xff]
        %v651 = vld [vmem:[%s325 + $0x58] sm:$0xff]
        %v652 = vld [vmem:[%s325 + $0x60] sm:$0xff]
        %v653 = vld [vmem:[%s325 + $0x68] sm:$0xff]
        %v654 = vld [vmem:[%s325 + $0x70] sm:$0xff]
        %v655 = vld [vmem:[%s325 + $0x78] sm:$0xff]
        %v656 = vunpack.c.l.bf16 %v366
        %v657 = vunpack.c.l.bf16 %v367
        %v658 = vunpack.c.l.bf16 %v368
        %v659 = vunpack.c.l.bf16 %v369
        %v660 = vunpack.c.l.bf16 %v370
        %v661 = vunpack.c.l.bf16 %v371
        %v662 = vunpack.c.l.bf16 %v372
        %v663 = vunpack.c.l.bf16 %v373
        %v664 = vunpack.c.l.bf16 %v374
        %v665 = vunpack.c.l.bf16 %v375
        %v666 = vunpack.c.l.bf16 %v376
        %v667 = vunpack.c.l.bf16 %v377
        %v668 = vunpack.c.l.bf16 %v378
        %v669 = vunpack.c.l.bf16 %v379
        %v670 = vunpack.c.l.bf16 %v380
        %v671 = vunpack.c.l.bf16 %v381
        %672 = vadd.xlane.f32.xlu0 %v656
        %v673 = vpop.xlane.xlu0 %672
        %674 = vadd.xlane.f32.xlu0 %v657
        %v675 = vpop.xlane.xlu0 %674
        %676 = vadd.xlane.f32.xlu0 %v658
        %v677 = vpop.xlane.xlu0 %676
        %678 = vadd.xlane.f32.xlu0 %v659
        %v679 = vpop.xlane.xlu0 %678
        %680 = vadd.xlane.f32.xlu0 %v660
        %v681 = vpop.xlane.xlu0 %680
        %682 = vadd.xlane.f32.xlu0 %v661
        %v683 = vpop.xlane.xlu0 %682
        %684 = vadd.xlane.f32.xlu0 %v662
        %v685 = vpop.xlane.xlu0 %684
        %686 = vadd.xlane.f32.xlu0 %v663
        %v687 = vpop.xlane.xlu0 %686
        %688 = vadd.xlane.f32.xlu0 %v664
        %v689 = vpop.xlane.xlu0 %688
        %690 = vadd.xlane.f32.xlu0 %v665
        %v691 = vpop.xlane.xlu0 %690
        %692 = vadd.xlane.f32.xlu0 %v666
        %v693 = vpop.xlane.xlu0 %692
        %694 = vadd.xlane.f32.xlu0 %v667
        %v695 = vpop.xlane.xlu0 %694
        %696 = vadd.xlane.f32.xlu0 %v668
        %v697 = vpop.xlane.xlu0 %696
        %698 = vadd.xlane.f32.xlu0 %v669
        %v699 = vpop.xlane.xlu0 %698
        %700 = vadd.xlane.f32.xlu0 %v670
        %v701 = vpop.xlane.xlu0 %700
        %702 = vadd.xlane.f32.xlu0 %v671
        %v703 = vpop.xlane.xlu0 %702
        %v704 = vadd.f32 %v640, %v673
        %v705 = vadd.f32 %v641, %v675
        %v706 = vadd.f32 %v642, %v677
        %v707 = vadd.f32 %v643, %v679
        %v708 = vadd.f32 %v644, %v681
        %v709 = vadd.f32 %v645, %v683
        %v710 = vadd.f32 %v646, %v685
        %v711 = vadd.f32 %v647, %v687
        %v712 = vadd.f32 %v648, %v689
        %v713 = vadd.f32 %v649, %v691
        %v714 = vadd.f32 %v650, %v693
        %v715 = vadd.f32 %v651, %v695
        %v716 = vadd.f32 %v652, %v697
        %v717 = vadd.f32 %v653, %v699
        %v718 = vadd.f32 %v654, %v701
        %v719 = vadd.f32 %v655, %v703
        %vm720 = vcmask 7168
        %721 = vst.msk [vmem:[%s325] sm:$0xff] %vm720, %v704
        %722 = vst.msk [vmem:[%s325 + $0x8] sm:$0xff] %vm720, %v705
        %723 = vst.msk [vmem:[%s325 + $0x10] sm:$0xff] %vm720, %v706
        %724 = vst.msk [vmem:[%s325 + $0x18] sm:$0xff] %vm720, %v707
        %725 = vst.msk [vmem:[%s325 + $0x20] sm:$0xff] %vm720, %v708
        %726 = vst.msk [vmem:[%s325 + $0x28] sm:$0xff] %vm720, %v709
        %727 = vst.msk [vmem:[%s325 + $0x30] sm:$0xff] %vm720, %v710
        %728 = vst.msk [vmem:[%s325 + $0x38] sm:$0xff] %vm720, %v711
        %729 = vst.msk [vmem:[%s325 + $0x40] sm:$0xff] %vm720, %v712
        %730 = vst.msk [vmem:[%s325 + $0x48] sm:$0xff] %vm720, %v713
        %731 = vst.msk [vmem:[%s325 + $0x50] sm:$0xff] %vm720, %v714
        %732 = vst.msk [vmem:[%s325 + $0x58] sm:$0xff] %vm720, %v715
        %733 = vst.msk [vmem:[%s325 + $0x60] sm:$0xff] %vm720, %v716
        %734 = vst.msk [vmem:[%s325 + $0x68] sm:$0xff] %vm720, %v717
        %735 = vst.msk [vmem:[%s325 + $0x70] sm:$0xff] %vm720, %v718
        %736 = vst.msk [vmem:[%s325 + $0x78] sm:$0xff] %vm720, %v719
        %s737 = smul.u32 16, %s19
        %p738 = scmp.lt.s32.totalorder %s737, 47
        %s739 = scalar_select %p738, %s737, 47
        %s740 = smul.addr %s739, 8
        %s741 = scalar_lea.vmem %s2, %s740
        %s742 = smul.u32 16, %s19
        %p743 = scmp.lt.s32.totalorder %s742, 47
        %s744 = scalar_select %p743, %s742, 47
        %s745 = smul.addr %s744, 8
        %s746 = scalar_lea.vmem %s3, %s745
        // Predicated region
        $region74: #{gcmc_forward.3} parent=64 // pred_check
          %p747 = pneg %p99
        $region75: #{gcmc_forward.3} parent=64 // pred_check_branch
          %749 = sbr.rel (%p747) target = $region77
        $region76: #{gcmc_forward.3} parent=64 // pred_region
          %s750 = smul.u32 16, %s19
        $region77: #{gcmc_forward.3} parent=64 // pred_fallthru
          _
        // Predicated region
        $region78: #{gcmc_forward.3} parent=64 // pred_check
          %p751 = pneg %p125
        $region79: #{gcmc_forward.3} parent=64 // pred_check_branch
          %753 = sbr.rel (%p751) target = $region81
        $region80: #{gcmc_forward.3} parent=64 // pred_region
          %s754 = smul.u32 16, %s19
        $region81: #{gcmc_forward.3} parent=64 // pred_fallthru
          _
      $region65: #{gcmc_forward.3} parent=5 // pred_fallthru
        _
      %p755 = scmp.le.s32.totalorder 2, %s10
      // Predicated region
      $region82: #{gcmc_forward.3} parent=5 // pred_check
        %p756 = pneg %p755
      $region83: #{gcmc_forward.3} parent=5 // pred_check_branch
        %758 = sbr.rel (%p756) target = $region85
      $region84: #{gcmc_forward.3} parent=5 // pred_region
        %s759 = ssub.s32 %s10, 2
        // Predicated region
        $region86: #{gcmc_forward.3} parent=84 // pred_check
          %p760 = pneg %p105
        $region87: #{gcmc_forward.3} parent=84 // pred_check_branch
          %762 = sbr.rel (%p760) target = $region89
        $region88: #{gcmc_forward.3} parent=84 // pred_region
          %s763 = smul.u32 16, %s21
          %p764 = scmp.lt.s32.totalorder %s763, 47
          %s765 = scalar_select %p764, %s763, 47
          %s766 = smul.addr %s765, 8
          %s767 = scalar_lea.vmem %s2, %s766
        $region89: #{gcmc_forward.3} parent=84 // pred_fallthru
          _
        // Predicated region
        $region90: #{gcmc_forward.3} parent=84 // pred_check
          %p768 = pneg %p131
        $region91: #{gcmc_forward.3} parent=84 // pred_check_branch
          %770 = sbr.rel (%p768) target = $region93
        $region92: #{gcmc_forward.3} parent=84 // pred_region
          %s771 = smul.u32 16, %s21
          %p772 = scmp.lt.s32.totalorder %s771, 47
          %s773 = scalar_select %p772, %s771, 47
          %s774 = smul.addr %s773, 8
          %s775 = scalar_lea.vmem %s3, %s774
        $region93: #{gcmc_forward.3} parent=84 // pred_fallthru
          _
      $region85: #{gcmc_forward.3} parent=5 // pred_fallthru
        _
    $region6: #{gcmc_forward.3} parent=1 // loop_footer
      %s14 = sadd.s32 1, %s10
    $region7: #{gcmc_forward.3} parent=1 // loop_footer_branch
      %9 = sbr.rel target = $region3
    $region8: #{gcmc_forward.3} parent=1 // loop_exit
      _

// kernel: gcmc_forward.5
$region0: #{gcmc_forward.5}
  #allocation0 [shape = 'u32[]', space=smem, size = 0x4, offset = 0x4, fixed_abs, tag = 'smem constant byte address 0x4 - core index']
  #allocation1 [shape = 'u32[144,128]{1,0:T(1,128)}', space=vmem, size = 0x12000, scoped, tag = 'internal scratch']
  #allocation2 [shape = 'f32[1,1]{1,0:T(1,128)S(1)}', space=vmem, size = 0x200, scoped, tag = 'scoped memory for gcmc_forward.5']
  %s0 = inlined_call_operand.vmem [shape: f32[64,384], index: 0, kind: input, shape index: {}]
  %s1 = inlined_call_operand.vmem [shape: f32[64,384], index: 1, kind: input, shape index: {}]
  %s2 = inlined_call_operand.vmem [shape: f32[64,384], index: 2, kind: input, shape index: {}]
  %s3 = inlined_call_operand.vmem [shape: f32[64,384], index: 3, kind: input, shape index: {}]
  %s4 = inlined_call_operand.vmem [shape: f32[1,384], index: 4, kind: input, shape index: {}]
  %s5 = inlined_call_operand.vmem [shape: f32[1,384], index: 5, kind: input, shape index: {}]
  %s6 = inlined_call_operand.vmem [shape: f32[1,384], index: 6, kind: input, shape index: {}]
  %s7 = inlined_call_operand.vmem [shape: f32[1,384], index: 7, kind: input, shape index: {}]
  %s8 = inlined_call_operand.vmem [shape: f32[128,128], index: 8, kind: input, shape index: {}]
  %s9 = inlined_call_operand.vmem [shape: f32[128,1], index: 9, kind: input, shape index: {}]
  %s10 = inlined_call_operand.vmem [shape: f32[128,256], index: 10, kind: input, shape index: {}]
  %s11 = inlined_call_operand.vmem [shape: f32[128,1], index: 11, kind: input, shape index: {}]
  %s12 = inlined_call_operand.vmem [shape: f32[64,128], index: 12, kind: input, shape index: {}]
  %s13 = inlined_call_operand.vmem [shape: f32[64,1], index: 13, kind: input, shape index: {}]
  %s14 = inlined_call_operand.vmem [shape: f32[64,1], index: 14, kind: input, shape index: {}]
  %s15 = inlined_call_operand.<no memory space> [shape: f32[1,1], index: 15, kind: input, shape index: {}]
  %s16 = inlined_call_operand.vmem [shape: f32[1,384], index: 16, kind: output, shape index: {}]
  %s17 = sld [smem:[#allocation0]]
  $region249: #{gcmc_forward.5} parent=0
    _
  %s19 = ssub.s32 1, %s17
  %s20 = scalar_select 0, %s19, %s17
  %v21 = vstv %s15
  %22 = vst [vmem:[#allocation2] sm:$0x1] %v21
  $region1: #{gcmc_forward.5} parent=0
    #allocation3 [shape = 'u8[65536]{0}', space=vmem, size = 0x10000, scoped, tag = 'input window, operand 0']
    #allocation4 [shape = 'u8[65536]{0}', space=vmem, size = 0x10000, scoped, tag = 'input window, operand 1']
    #allocation5 [shape = 'u8[65536]{0}', space=vmem, size = 0x10000, scoped, tag = 'input window, operand 2']
    #allocation6 [shape = 'u8[65536]{0}', space=vmem, size = 0x10000, scoped, tag = 'input window, operand 3']
    loop: start=0, step=1, limit=5
    $region2: #{gcmc_forward.5} parent=1 // loop_pre_header
      _
    $region3: #{gcmc_forward.5} parent=1 // loop_header
      %s24 = sphi 0, %s28
      %p25 = scmp.ge.s32.totalorder %s24, 5
      %s34 = sphi 0, %s36
      %s37 = sphi 0, %s34
      %s38 = sphi 0, %s37
      %s54 = sphi 0, %s38
      %s60 = sphi 0, %s62
      %s63 = sphi 0, %s60
      %s64 = sphi 0, %s63
      %s80 = sphi 0, %s64
      %s86 = sphi 0, %s88
      %s89 = sphi 0, %s86
      %s90 = sphi 0, %s89
      %s106 = sphi 0, %s90
      %s112 = sphi 0, %s114
      %s115 = sphi 0, %s112
      %s116 = sphi 0, %s115
      %s132 = sphi 0, %s116
      %s138 = sphi 0, %s140
      %s141 = sphi 0, %s138
      %s142 = sphi 0, %s141
      %s158 = sphi 0, %s142
      %s164 = sphi 0, %s166
      %s167 = sphi 0, %s164
      %s168 = sphi 0, %s167
      %s184 = sphi 0, %s168
      %s190 = sphi 0, %s192
      %s193 = sphi 0, %s190
      %s194 = sphi 0, %s193
      %s210 = sphi 0, %s194
      %s216 = sphi 0, %s218
      %s219 = sphi 0, %s216
      %s220 = sphi 0, %s219
      %s236 = sphi 0, %s220
      %s240 = sphi 0, %s240
      %s242 = sphi 0, %s240
      %s243 = sphi 0, %s242
      %s257 = sphi 0, %s243
      %s261 = sphi 0, %s261
      %s263 = sphi 0, %s261
      %s264 = sphi 0, %s263
      %s278 = sphi 0, %s264
      %s282 = sphi 0, %s282
      %s284 = sphi 0, %s282
      %s285 = sphi 0, %s284
      %s299 = sphi 0, %s285
      %s303 = sphi 0, %s303
      %s305 = sphi 0, %s303
      %s306 = sphi 0, %s305
      %s320 = sphi 0, %s306
      %s324 = sphi 0, %s324
      %s326 = sphi 0, %s324
      %s327 = sphi 0, %s326
      %s341 = sphi 0, %s327
      %s345 = sphi 0, %s345
      %s347 = sphi 0, %s345
      %s348 = sphi 0, %s347
      %s362 = sphi 0, %s348
      %s366 = sphi 0, %s366
      %s368 = sphi 0, %s366
      %s369 = sphi 0, %s368
      %s383 = sphi 0, %s369
      %s387 = sphi 0, %s387
      %s389 = sphi 0, %s387
      %s390 = sphi 0, %s389
      %s404 = sphi 0, %s390
      %s410 = sphi 0, %s412
      %s413 = sphi 0, %s410
      %s414 = sphi 0, %s413
      %s430 = sphi 0, %s414
    $region4: #{gcmc_forward.5} parent=1 // loop_header_branch
      %27 = sbr.rel (%p25) target = $region8
    $region5: #{gcmc_forward.5} parent=1 // loop_body
      %s29 = ssub.s32 %s24, 1
      %s30 = ssub.s32 %s24, 2
      %s31 = sadd.s32 %s24, 1
      %s32 = ssub.s32 %s24, %s31
      %p33 = scmp.eq.s32.totalorder %s32, 0
      %s35 = sadd.s32 %s34, 1
      %s36 = scalar_select %p33, %s34, %s35
      %p39 = pneg %p33
      %p40 = scmp.eq.s32.totalorder %s24, 2
      %p41 = por %p39, %p40
      %p42 = scmp.ne.s32.totalorder %s34, %s37
      %p43 = scmp.eq.s32.totalorder %s24, 0
      %p44 = por %p42, %p43
      %p45 = scmp.ne.s32.totalorder %s34, %s37
      %p46 = scmp.eq.s32.totalorder %s29, 2
      %p47 = por %p45, %p46
      %p48 = scmp.ne.s32.totalorder %s37, %s38
      %p49 = scmp.eq.s32.totalorder %s29, 0
      %p50 = por %p48, %p49
      %p51 = scmp.ne.s32.totalorder %s37, %s38
      %p52 = scmp.eq.s32.totalorder %s30, 2
      %p53 = por %p51, %p52
      %p55 = scmp.ne.s32.totalorder %s38, %s54
      %p56 = scmp.eq.s32.totalorder %s30, 0
      %p57 = por %p55, %p56
      %s58 = ssub.s32 %s24, %s31
      %p59 = scmp.eq.s32.totalorder %s58, 0
      %s61 = sadd.s32 %s60, 1
      %s62 = scalar_select %p59, %s60, %s61
      %p65 = pneg %p59
      %p66 = scmp.eq.s32.totalorder %s24, 2
      %p67 = por %p65, %p66
      %p68 = scmp.ne.s32.totalorder %s60, %s63
      %p69 = scmp.eq.s32.totalorder %s24, 0
      %p70 = por %p68, %p69
      %p71 = scmp.ne.s32.totalorder %s60, %s63
      %p72 = scmp.eq.s32.totalorder %s29, 2
      %p73 = por %p71, %p72
      %p74 = scmp.ne.s32.totalorder %s63, %s64
      %p75 = scmp.eq.s32.totalorder %s29, 0
      %p76 = por %p74, %p75
      %p77 = scmp.ne.s32.totalorder %s63, %s64
      %p78 = scmp.eq.s32.totalorder %s30, 2
      %p79 = por %p77, %p78
      %p81 = scmp.ne.s32.totalorder %s64, %s80
      %p82 = scmp.eq.s32.totalorder %s30, 0
      %p83 = por %p81, %p82
      %s84 = ssub.s32 %s24, %s31
      %p85 = scmp.eq.s32.totalorder %s84, 0
      %s87 = sadd.s32 %s86, 1
      %s88 = scalar_select %p85, %s86, %s87
      %p91 = pneg %p85
      %p92 = scmp.eq.s32.totalorder %s24, 2
      %p93 = por %p91, %p92
      %p94 = scmp.ne.s32.totalorder %s86, %s89
      %p95 = scmp.eq.s32.totalorder %s24, 0
      %p96 = por %p94, %p95
      %p97 = scmp.ne.s32.totalorder %s86, %s89
      %p98 = scmp.eq.s32.totalorder %s29, 2
      %p99 = por %p97, %p98
      %p100 = scmp.ne.s32.totalorder %s89, %s90
      %p101 = scmp.eq.s32.totalorder %s29, 0
      %p102 = por %p100, %p101
      %p103 = scmp.ne.s32.totalorder %s89, %s90
      %p104 = scmp.eq.s32.totalorder %s30, 2
      %p105 = por %p103, %p104
      %p107 = scmp.ne.s32.totalorder %s90, %s106
      %p108 = scmp.eq.s32.totalorder %s30, 0
      %p109 = por %p107, %p108
      %s110 = ssub.s32 %s24, %s31
      %p111 = scmp.eq.s32.totalorder %s110, 0
      %s113 = sadd.s32 %s112, 1
      %s114 = scalar_select %p111, %s112, %s113
      %p117 = pneg %p111
      %p118 = scmp.eq.s32.totalorder %s24, 2
      %p119 = por %p117, %p118
      %p120 = scmp.ne.s32.totalorder %s112, %s115
      %p121 = scmp.eq.s32.totalorder %s24, 0
      %p122 = por %p120, %p121
      %p123 = scmp.ne.s32.totalorder %s112, %s115
      %p124 = scmp.eq.s32.totalorder %s29, 2
      %p125 = por %p123, %p124
      %p126 = scmp.ne.s32.totalorder %s115, %s116
      %p127 = scmp.eq.s32.totalorder %s29, 0
      %p128 = por %p126, %p127
      %p129 = scmp.ne.s32.totalorder %s115, %s116
      %p130 = scmp.eq.s32.totalorder %s30, 2
      %p131 = por %p129, %p130
      %p133 = scmp.ne.s32.totalorder %s116, %s132
      %p134 = scmp.eq.s32.totalorder %s30, 0
      %p135 = por %p133, %p134
      %s136 = ssub.s32 %s24, %s31
      %p137 = scmp.eq.s32.totalorder %s136, 0
      %s139 = sadd.s32 %s138, 1
      %s140 = scalar_select %p137, %s138, %s139
      %p143 = pneg %p137
      %p144 = scmp.eq.s32.totalorder %s24, 2
      %p145 = por %p143, %p144
      %p146 = scmp.ne.s32.totalorder %s138, %s141
      %p147 = scmp.eq.s32.totalorder %s24, 0
      %p148 = por %p146, %p147
      %p149 = scmp.ne.s32.totalorder %s138, %s141
      %p150 = scmp.eq.s32.totalorder %s29, 2
      %p151 = por %p149, %p150
      %p152 = scmp.ne.s32.totalorder %s141, %s142
      %p153 = scmp.eq.s32.totalorder %s29, 0
      %p154 = por %p152, %p153
      %p155 = scmp.ne.s32.totalorder %s141, %s142
      %p156 = scmp.eq.s32.totalorder %s30, 2
      %p157 = por %p155, %p156
      %p159 = scmp.ne.s32.totalorder %s142, %s158
      %p160 = scmp.eq.s32.totalorder %s30, 0
      %p161 = por %p159, %p160
      %s162 = ssub.s32 %s24, %s31
      %p163 = scmp.eq.s32.totalorder %s162, 0
      %s165 = sadd.s32 %s164, 1
      %s166 = scalar_select %p163, %s164, %s165
      %p169 = pneg %p163
      %p170 = scmp.eq.s32.totalorder %s24, 2
      %p171 = por %p169, %p170
      %p172 = scmp.ne.s32.totalorder %s164, %s167
      %p173 = scmp.eq.s32.totalorder %s24, 0
      %p174 = por %p172, %p173
      %p175 = scmp.ne.s32.totalorder %s164, %s167
      %p176 = scmp.eq.s32.totalorder %s29, 2
      %p177 = por %p175, %p176
      %p178 = scmp.ne.s32.totalorder %s167, %s168
      %p179 = scmp.eq.s32.totalorder %s29, 0
      %p180 = por %p178, %p179
      %p181 = scmp.ne.s32.totalorder %s167, %s168
      %p182 = scmp.eq.s32.totalorder %s30, 2
      %p183 = por %p181, %p182
      %p185 = scmp.ne.s32.totalorder %s168, %s184
      %p186 = scmp.eq.s32.totalorder %s30, 0
      %p187 = por %p185, %p186
      %s188 = ssub.s32 %s24, %s31
      %p189 = scmp.eq.s32.totalorder %s188, 0
      %s191 = sadd.s32 %s190, 1
      %s192 = scalar_select %p189, %s190, %s191
      %p195 = pneg %p189
      %p196 = scmp.eq.s32.totalorder %s24, 2
      %p197 = por %p195, %p196
      %p198 = scmp.ne.s32.totalorder %s190, %s193
      %p199 = scmp.eq.s32.totalorder %s24, 0
      %p200 = por %p198, %p199
      %p201 = scmp.ne.s32.totalorder %s190, %s193
      %p202 = scmp.eq.s32.totalorder %s29, 2
      %p203 = por %p201, %p202
      %p204 = scmp.ne.s32.totalorder %s193, %s194
      %p205 = scmp.eq.s32.totalorder %s29, 0
      %p206 = por %p204, %p205
      %p207 = scmp.ne.s32.totalorder %s193, %s194
      %p208 = scmp.eq.s32.totalorder %s30, 2
      %p209 = por %p207, %p208
      %p211 = scmp.ne.s32.totalorder %s194, %s210
      %p212 = scmp.eq.s32.totalorder %s30, 0
      %p213 = por %p211, %p212
      %s214 = ssub.s32 %s24, %s31
      %p215 = scmp.eq.s32.totalorder %s214, 0
      %s217 = sadd.s32 %s216, 1
      %s218 = scalar_select %p215, %s216, %s217
      %p221 = pneg %p215
      %p222 = scmp.eq.s32.totalorder %s24, 2
      %p223 = por %p221, %p222
      %p224 = scmp.ne.s32.totalorder %s216, %s219
      %p225 = scmp.eq.s32.totalorder %s24, 0
      %p226 = por %p224, %p225
      %p227 = scmp.ne.s32.totalorder %s216, %s219
      %p228 = scmp.eq.s32.totalorder %s29, 2
      %p229 = por %p227, %p228
      %p230 = scmp.ne.s32.totalorder %s219, %s220
      %p231 = scmp.eq.s32.totalorder %s29, 0
      %p232 = por %p230, %p231
      %p233 = scmp.ne.s32.totalorder %s219, %s220
      %p234 = scmp.eq.s32.totalorder %s30, 2
      %p235 = por %p233, %p234
      %p237 = scmp.ne.s32.totalorder %s220, %s236
      %p238 = scmp.eq.s32.totalorder %s30, 0
      %p239 = por %p237, %p238
      %s241 = sadd.s32 %s240, 1
      %p244 = scmp.eq.s32.totalorder %s24, 2
      %p245 = scmp.ne.s32.totalorder %s240, %s242
      %p246 = scmp.eq.s32.totalorder %s24, 0
      %p247 = por %p245, %p246
      %p248 = scmp.ne.s32.totalorder %s240, %s242
      %p249 = scmp.eq.s32.totalorder %s29, 2
      %p250 = por %p248, %p249
      %p251 = scmp.ne.s32.totalorder %s242, %s243
      %p252 = scmp.eq.s32.totalorder %s29, 0
      %p253 = por %p251, %p252
      %p254 = scmp.ne.s32.totalorder %s242, %s243
      %p255 = scmp.eq.s32.totalorder %s30, 2
      %p256 = por %p254, %p255
      %p258 = scmp.ne.s32.totalorder %s243, %s257
      %p259 = scmp.eq.s32.totalorder %s30, 0
      %p260 = por %p258, %p259
      %s262 = sadd.s32 %s261, 1
      %p265 = scmp.eq.s32.totalorder %s24, 2
      %p266 = scmp.ne.s32.totalorder %s261, %s263
      %p267 = scmp.eq.s32.totalorder %s24, 0
      %p268 = por %p266, %p267
      %p269 = scmp.ne.s32.totalorder %s261, %s263
      %p270 = scmp.eq.s32.totalorder %s29, 2
      %p271 = por %p269, %p270
      %p272 = scmp.ne.s32.totalorder %s263, %s264
      %p273 = scmp.eq.s32.totalorder %s29, 0
      %p274 = por %p272, %p273
      %p275 = scmp.ne.s32.totalorder %s263, %s264
      %p276 = scmp.eq.s32.totalorder %s30, 2
      %p277 = por %p275, %p276
      %p279 = scmp.ne.s32.totalorder %s264, %s278
      %p280 = scmp.eq.s32.totalorder %s30, 0
      %p281 = por %p279, %p280
      %s283 = sadd.s32 %s282, 1
      %p286 = scmp.eq.s32.totalorder %s24, 2
      %p287 = scmp.ne.s32.totalorder %s282, %s284
      %p288 = scmp.eq.s32.totalorder %s24, 0
      %p289 = por %p287, %p288
      %p290 = scmp.ne.s32.totalorder %s282, %s284
      %p291 = scmp.eq.s32.totalorder %s29, 2
      %p292 = por %p290, %p291
      %p293 = scmp.ne.s32.totalorder %s284, %s285
      %p294 = scmp.eq.s32.totalorder %s29, 0
      %p295 = por %p293, %p294
      %p296 = scmp.ne.s32.totalorder %s284, %s285
      %p297 = scmp.eq.s32.totalorder %s30, 2
      %p298 = por %p296, %p297
      %p300 = scmp.ne.s32.totalorder %s285, %s299
      %p301 = scmp.eq.s32.totalorder %s30, 0
      %p302 = por %p300, %p301
      %s304 = sadd.s32 %s303, 1
      %p307 = scmp.eq.s32.totalorder %s24, 2
      %p308 = scmp.ne.s32.totalorder %s303, %s305
      %p309 = scmp.eq.s32.totalorder %s24, 0
      %p310 = por %p308, %p309
      %p311 = scmp.ne.s32.totalorder %s303, %s305
      %p312 = scmp.eq.s32.totalorder %s29, 2
      %p313 = por %p311, %p312
      %p314 = scmp.ne.s32.totalorder %s305, %s306
      %p315 = scmp.eq.s32.totalorder %s29, 0
      %p316 = por %p314, %p315
      %p317 = scmp.ne.s32.totalorder %s305, %s306
      %p318 = scmp.eq.s32.totalorder %s30, 2
      %p319 = por %p317, %p318
      %p321 = scmp.ne.s32.totalorder %s306, %s320
      %p322 = scmp.eq.s32.totalorder %s30, 0
      %p323 = por %p321, %p322
      %s325 = sadd.s32 %s324, 1
      %p328 = scmp.eq.s32.totalorder %s24, 2
      %p329 = scmp.ne.s32.totalorder %s324, %s326
      %p330 = scmp.eq.s32.totalorder %s24, 0
      %p331 = por %p329, %p330
      %p332 = scmp.ne.s32.totalorder %s324, %s326
      %p333 = scmp.eq.s32.totalorder %s29, 2
      %p334 = por %p332, %p333
      %p335 = scmp.ne.s32.totalorder %s326, %s327
      %p336 = scmp.eq.s32.totalorder %s29, 0
      %p337 = por %p335, %p336
      %p338 = scmp.ne.s32.totalorder %s326, %s327
      %p339 = scmp.eq.s32.totalorder %s30, 2
      %p340 = por %p338, %p339
      %p342 = scmp.ne.s32.totalorder %s327, %s341
      %p343 = scmp.eq.s32.totalorder %s30, 0
      %p344 = por %p342, %p343
      %s346 = sadd.s32 %s345, 1
      %p349 = scmp.eq.s32.totalorder %s24, 2
      %p350 = scmp.ne.s32.totalorder %s345, %s347
      %p351 = scmp.eq.s32.totalorder %s24, 0
      %p352 = por %p350, %p351
      %p353 = scmp.ne.s32.totalorder %s345, %s347
      %p354 = scmp.eq.s32.totalorder %s29, 2
      %p355 = por %p353, %p354
      %p356 = scmp.ne.s32.totalorder %s347, %s348
      %p357 = scmp.eq.s32.totalorder %s29, 0
      %p358 = por %p356, %p357
      %p359 = scmp.ne.s32.totalorder %s347, %s348
      %p360 = scmp.eq.s32.totalorder %s30, 2
      %p361 = por %p359, %p360
      %p363 = scmp.ne.s32.totalorder %s348, %s362
      %p364 = scmp.eq.s32.totalorder %s30, 0
      %p365 = por %p363, %p364
      %s367 = sadd.s32 %s366, 1
      %p370 = scmp.eq.s32.totalorder %s24, 2
      %p371 = scmp.ne.s32.totalorder %s366, %s368
      %p372 = scmp.eq.s32.totalorder %s24, 0
      %p373 = por %p371, %p372
      %p374 = scmp.ne.s32.totalorder %s366, %s368
      %p375 = scmp.eq.s32.totalorder %s29, 2
      %p376 = por %p374, %p375
      %p377 = scmp.ne.s32.totalorder %s368, %s369
      %p378 = scmp.eq.s32.totalorder %s29, 0
      %p379 = por %p377, %p378
      %p380 = scmp.ne.s32.totalorder %s368, %s369
      %p381 = scmp.eq.s32.totalorder %s30, 2
      %p382 = por %p380, %p381
      %p384 = scmp.ne.s32.totalorder %s369, %s383
      %p385 = scmp.eq.s32.totalorder %s30, 0
      %p386 = por %p384, %p385
      %s388 = sadd.s32 %s387, 1
      %p391 = scmp.eq.s32.totalorder %s24, 2
      %p392 = scmp.ne.s32.totalorder %s387, %s389
      %p393 = scmp.eq.s32.totalorder %s24, 0
      %p394 = por %p392, %p393
      %p395 = scmp.ne.s32.totalorder %s387, %s389
      %p396 = scmp.eq.s32.totalorder %s29, 2
      %p397 = por %p395, %p396
      %p398 = scmp.ne.s32.totalorder %s389, %s390
      %p399 = scmp.eq.s32.totalorder %s29, 0
      %p400 = por %p398, %p399
      %p401 = scmp.ne.s32.totalorder %s389, %s390
      %p402 = scmp.eq.s32.totalorder %s30, 2
      %p403 = por %p401, %p402
      %p405 = scmp.ne.s32.totalorder %s390, %s404
      %p406 = scmp.eq.s32.totalorder %s30, 0
      %p407 = por %p405, %p406
      %s408 = ssub.s32 %s24, %s31
      %p409 = scmp.eq.s32.totalorder %s408, 0
      %s411 = sadd.s32 %s410, 1
      %s412 = scalar_select %p409, %s410, %s411
      %p415 = pneg %p409
      %p416 = scmp.eq.s32.totalorder %s24, 2
      %p417 = por %p415, %p416
      %p418 = scmp.ne.s32.totalorder %s410, %s413
      %p419 = scmp.eq.s32.totalorder %s24, 0
      %p420 = por %p418, %p419
      %p421 = scmp.ne.s32.totalorder %s410, %s413
      %p422 = scmp.eq.s32.totalorder %s29, 2
      %p423 = por %p421, %p422
      %p424 = scmp.ne.s32.totalorder %s413, %s414
      %p425 = scmp.eq.s32.totalorder %s29, 0
      %p426 = por %p424, %p425
      %p427 = scmp.ne.s32.totalorder %s413, %s414
      %p428 = scmp.eq.s32.totalorder %s30, 2
      %p429 = por %p427, %p428
      %p431 = scmp.ne.s32.totalorder %s414, %s430
      %p432 = scmp.eq.s32.totalorder %s30, 0
      %p433 = por %p431, %p432
      %p434 = scmp.le.s32.totalorder 1, %s24
      %p435 = scmp.lt.s32.totalorder %s24, 4
      %p436 = pnand %p434, %p435
      %p437 = pneg %p436
      // Predicated region
      $region9: #{gcmc_forward.5} parent=5 // pred_check
        _
      $region10: #{gcmc_forward.5} parent=5 // pred_check_branch
        %439 = sbr.rel (%p436) target = $region12
      $region11: #{gcmc_forward.5} parent=5 // pred_region
        %s440 = ssub.s32 %s24, 1
        // Predicated region
        $region13: #{gcmc_forward.5} parent=11 // pred_check
          %p441 = pneg %p253
        $region14: #{gcmc_forward.5} parent=11 // pred_check_branch
          %443 = sbr.rel (%p441) target = $region16
        $region15: #{gcmc_forward.5} parent=11 // pred_region
          _
        $region16: #{gcmc_forward.5} parent=11 // pred_fallthru
          _
        // Predicated region
        $region17: #{gcmc_forward.5} parent=11 // pred_check
          %p444 = pneg %p274
        $region18: #{gcmc_forward.5} parent=11 // pred_check_branch
          %446 = sbr.rel (%p444) target = $region20
        $region19: #{gcmc_forward.5} parent=11 // pred_region
          _
        $region20: #{gcmc_forward.5} parent=11 // pred_fallthru
          _
        // Predicated region
        $region21: #{gcmc_forward.5} parent=11 // pred_check
          %p447 = pneg %p295
        $region22: #{gcmc_forward.5} parent=11 // pred_check_branch
          %449 = sbr.rel (%p447) target = $region24
        $region23: #{gcmc_forward.5} parent=11 // pred_region
          _
        $region24: #{gcmc_forward.5} parent=11 // pred_fallthru
          _
        // Predicated region
        $region25: #{gcmc_forward.5} parent=11 // pred_check
          %p450 = pneg %p316
        $region26: #{gcmc_forward.5} parent=11 // pred_check_branch
          %452 = sbr.rel (%p450) target = $region28
        $region27: #{gcmc_forward.5} parent=11 // pred_region
          _
        $region28: #{gcmc_forward.5} parent=11 // pred_fallthru
          _
        // Predicated region
        $region29: #{gcmc_forward.5} parent=11 // pred_check
          %p453 = pneg %p337
        $region30: #{gcmc_forward.5} parent=11 // pred_check_branch
          %455 = sbr.rel (%p453) target = $region32
        $region31: #{gcmc_forward.5} parent=11 // pred_region
          _
        $region32: #{gcmc_forward.5} parent=11 // pred_fallthru
          _
        // Predicated region
        $region33: #{gcmc_forward.5} parent=11 // pred_check
          %p456 = pneg %p358
        $region34: #{gcmc_forward.5} parent=11 // pred_check_branch
          %458 = sbr.rel (%p456) target = $region36
        $region35: #{gcmc_forward.5} parent=11 // pred_region
          _
        $region36: #{gcmc_forward.5} parent=11 // pred_fallthru
          _
        // Predicated region
        $region37: #{gcmc_forward.5} parent=11 // pred_check
          %p459 = pneg %p379
        $region38: #{gcmc_forward.5} parent=11 // pred_check_branch
          %461 = sbr.rel (%p459) target = $region40
        $region39: #{gcmc_forward.5} parent=11 // pred_region
          _
        $region40: #{gcmc_forward.5} parent=11 // pred_fallthru
          _
        // Predicated region
        $region41: #{gcmc_forward.5} parent=11 // pred_check
          %p462 = pneg %p400
        $region42: #{gcmc_forward.5} parent=11 // pred_check_branch
          %464 = sbr.rel (%p462) target = $region44
        $region43: #{gcmc_forward.5} parent=11 // pred_region
          _
        $region44: #{gcmc_forward.5} parent=11 // pred_fallthru
          _
      $region12: #{gcmc_forward.5} parent=5 // pred_fallthru
        _
      %p465 = scmp.lt.s32.totalorder %s24, 3
      // Predicated region
      $region45: #{gcmc_forward.5} parent=5 // pred_check
        %p466 = pneg %p465
      $region46: #{gcmc_forward.5} parent=5 // pred_check_branch
        %468 = sbr.rel (%p466) target = $region48
      $region47: #{gcmc_forward.5} parent=5 // pred_region
        // Predicated region
        $region49: #{gcmc_forward.5} parent=47 // pred_check
          %p469 = pneg %p44
        $region50: #{gcmc_forward.5} parent=47 // pred_check_branch
          %471 = sbr.rel (%p469) target = $region52
        $region51: #{gcmc_forward.5} parent=47 // pred_region
          %s472 = sand.u32 %s34, 1
          %s473 = sand.u32 %s34, 1
          %s474 = smul.addr %s473, 64
          %s475 = scalar_lea.vmem [#allocation3], %s474
          %s476 = smul.addr %s24, 8
          %s477 = scalar_lea.vmem %s0, %s476
          // Predicated region
          $region53: #{gcmc_forward.5} parent=51 // pred_check
            _
          $region54: #{gcmc_forward.5} parent=51 // pred_check_branch
            %479 = sbr.rel (0) target = $region56
          $region55: #{gcmc_forward.5} parent=51 // pred_region
            // Predicated region
            $region57: #{gcmc_forward.5} parent=55 // pred_check
              _
            $region58: #{gcmc_forward.5} parent=55 // pred_check_branch
              %481 = sbr.rel (0) target = $region60
            $region59: #{gcmc_forward.5} parent=55 // pred_region
              // Predicated region
              $region72: #{gcmc_forward.5} parent=59 // pred_check
                _
              $region73: #{gcmc_forward.5} parent=59 // pred_check_branch
                %510 = sbr.rel (0) target = $region75
              $region74: #{gcmc_forward.5} parent=59 // pred_region
                loop: start=0, step=1, limit=1
                $region76: #{gcmc_forward.5} parent=74 // loop_pre_header
                  _
                $region77: #{gcmc_forward.5} parent=74 // loop_header
                  %s512 = sphi 0, %s516
                  %p513 = scmp.ge.s32.totalorder %s512, 1
                  %s517 = sphi %s477, %s477
                  %s518 = sphi %s475, %s475
                $region78: #{gcmc_forward.5} parent=74 // loop_header_branch
                  %515 = sbr.rel (%p513) target = $region82
                $region79: #{gcmc_forward.5} parent=74 // loop_body
                  %v519 = vld [vmem:[%s517] sm:$0xff]
                  %520 = vst [vmem:[%s518] sm:$0xff] %v519
                  %v521 = vld [vmem:[%s517 + $0x18] sm:$0xff]
                  %522 = vst [vmem:[%s518 + $0x8] sm:$0xff] %v521
                  %v523 = vld [vmem:[%s517 + $0x30] sm:$0xff]
                  %524 = vst [vmem:[%s518 + $0x10] sm:$0xff] %v523
                  %v525 = vld [vmem:[%s517 + $0x48] sm:$0xff]
                  %526 = vst [vmem:[%s518 + $0x18] sm:$0xff] %v525
                  %v527 = vld [vmem:[%s517 + $0x60] sm:$0xff]
                  %528 = vst [vmem:[%s518 + $0x20] sm:$0xff] %v527
                  %v529 = vld [vmem:[%s517 + $0x78] sm:$0xff]
                  %530 = vst [vmem:[%s518 + $0x28] sm:$0xff] %v529
                  %v531 = vld [vmem:[%s517 + $0x90] sm:$0xff]
                  %532 = vst [vmem:[%s518 + $0x30] sm:$0xff] %v531
                  %v533 = vld [vmem:[%s517 + $0xa8] sm:$0xff]
                  %534 = vst [vmem:[%s518 + $0x38] sm:$0xff] %v533
                $region80: #{gcmc_forward.5} parent=74 // loop_footer
                  %s516 = sadd.s32 1, %s512
                $region81: #{gcmc_forward.5} parent=74 // loop_footer_branch
                  %511 = sbr.rel target = $region77
                $region82: #{gcmc_forward.5} parent=74 // loop_exit
                  _
              $region75: #{gcmc_forward.5} parent=59 // pred_fallthru
                _
              // Predicated region
              $region83: #{gcmc_forward.5} parent=59 // pred_check
                _
              $region84: #{gcmc_forward.5} parent=59 // pred_check_branch
                %536 = sbr.rel target = $region86
              $region85: #{gcmc_forward.5} parent=59 // pred_region
                _
              $region86: #{gcmc_forward.5} parent=59 // pred_fallthru
                _
            $region60: #{gcmc_forward.5} parent=55 // pred_fallthru
              _
            // Predicated region
            $region61: #{gcmc_forward.5} parent=55 // pred_check
              _
            $region62: #{gcmc_forward.5} parent=55 // pred_check_branch
              %483 = sbr.rel target = $region64
            $region63: #{gcmc_forward.5} parent=55 // pred_region
              loop: start=0, step=1, limit=1
              $region65: #{gcmc_forward.5} parent=63 // loop_pre_header
                _
              $region66: #{gcmc_forward.5} parent=63 // loop_header
                %s486 = sphi 0, %s490
                %p487 = scmp.ge.s32.totalorder %s486, 1
                %s491 = sphi %s477, %s477
                %s492 = sphi %s475, %s475
              $region67: #{gcmc_forward.5} parent=63 // loop_header_branch
                %489 = sbr.rel (%p487) target = $region71
              $region68: #{gcmc_forward.5} parent=63 // loop_body
                %v493 = vld [vmem:[%s491] sm:$0xff]
                %494 = vst [vmem:[%s492] sm:$0xff] %v493
                %v495 = vld [vmem:[%s491 + $0x18] sm:$0xff]
                %496 = vst [vmem:[%s492 + $0x8] sm:$0xff] %v495
                %v497 = vld [vmem:[%s491 + $0x30] sm:$0xff]
                %498 = vst [vmem:[%s492 + $0x10] sm:$0xff] %v497
                %v499 = vld [vmem:[%s491 + $0x48] sm:$0xff]
                %500 = vst [vmem:[%s492 + $0x18] sm:$0xff] %v499
                %v501 = vld [vmem:[%s491 + $0x60] sm:$0xff]
                %502 = vst [vmem:[%s492 + $0x20] sm:$0xff] %v501
                %v503 = vld [vmem:[%s491 + $0x78] sm:$0xff]
                %504 = vst [vmem:[%s492 + $0x28] sm:$0xff] %v503
                %v505 = vld [vmem:[%s491 + $0x90] sm:$0xff]
                %506 = vst [vmem:[%s492 + $0x30] sm:$0xff] %v505
                %v507 = vld [vmem:[%s491 + $0xa8] sm:$0xff]
                %508 = vst [vmem:[%s492 + $0x38] sm:$0xff] %v507
              $region69: #{gcmc_forward.5} parent=63 // loop_footer
                %s490 = sadd.s32 1, %s486
              $region70: #{gcmc_forward.5} parent=63 // loop_footer_branch
                %485 = sbr.rel target = $region66
              $region71: #{gcmc_forward.5} parent=63 // loop_exit
                _
            $region64: #{gcmc_forward.5} parent=55 // pred_fallthru
              _
          $region56: #{gcmc_forward.5} parent=51 // pred_fallthru
            _
          %537 = vnop
        $region52: #{gcmc_forward.5} parent=47 // pred_fallthru
          _
        // Predicated region
        $region87: #{gcmc_forward.5} parent=47 // pred_check
          %p538 = pneg %p70
        $region88: #{gcmc_forward.5} parent=47 // pred_check_branch
          %540 = sbr.rel (%p538) target = $region90
        $region89: #{gcmc_forward.5} parent=47 // pred_region
          %s541 = sand.u32 %s60, 1
          %s542 = sand.u32 %s60, 1
          %s543 = smul.addr %s542, 64
          %s544 = scalar_lea.vmem [#allocation4], %s543
          %s545 = smul.addr %s24, 8
          %s546 = scalar_lea.vmem %s1, %s545
          // Predicated region
          $region91: #{gcmc_forward.5} parent=89 // pred_check
            _
          $region92: #{gcmc_forward.5} parent=89 // pred_check_branch
            %548 = sbr.rel (0) target = $region94
          $region93: #{gcmc_forward.5} parent=89 // pred_region
            // Predicated region
            $region95: #{gcmc_forward.5} parent=93 // pred_check
              _
            $region96: #{gcmc_forward.5} parent=93 // pred_check_branch
              %550 = sbr.rel (0) target = $region98
            $region97: #{gcmc_forward.5} parent=93 // pred_region
              // Predicated region
              $region110: #{gcmc_forward.5} parent=97 // pred_check
                _
              $region111: #{gcmc_forward.5} parent=97 // pred_check_branch
                %579 = sbr.rel (0) target = $region113
              $region112: #{gcmc_forward.5} parent=97 // pred_region
                loop: start=0, step=1, limit=1
                $region114: #{gcmc_forward.5} parent=112 // loop_pre_header
                  _
                $region115: #{gcmc_forward.5} parent=112 // loop_header
                  %s581 = sphi 0, %s585
                  %p582 = scmp.ge.s32.totalorder %s581, 1
                  %s586 = sphi %s546, %s546
                  %s587 = sphi %s544, %s544
                $region116: #{gcmc_forward.5} parent=112 // loop_header_branch
                  %584 = sbr.rel (%p582) target = $region120
                $region117: #{gcmc_forward.5} parent=112 // loop_body
                  %v588 = vld [vmem:[%s586] sm:$0xff]
                  %589 = vst [vmem:[%s587] sm:$0xff] %v588
                  %v590 = vld [vmem:[%s586 + $0x18] sm:$0xff]
                  %591 = vst [vmem:[%s587 + $0x8] sm:$0xff] %v590
                  %v592 = vld [vmem:[%s586 + $0x30] sm:$0xff]
                  %593 = vst [vmem:[%s587 + $0x10] sm:$0xff] %v592
                  %v594 = vld [vmem:[%s586 + $0x48] sm:$0xff]
                  %595 = vst [vmem:[%s587 + $0x18] sm:$0xff] %v594
                  %v596 = vld [vmem:[%s586 + $0x60] sm:$0xff]
                  %597 = vst [vmem:[%s587 + $0x20] sm:$0xff] %v596
                  %v598 = vld [vmem:[%s586 + $0x78] sm:$0xff]
                  %599 = vst [vmem:[%s587 + $0x28] sm:$0xff] %v598
                  %v600 = vld [vmem:[%s586 + $0x90] sm:$0xff]
                  %601 = vst [vmem:[%s587 + $0x30] sm:$0xff] %v600
                  %v602 = vld [vmem:[%s586 + $0xa8] sm:$0xff]
                  %603 = vst [vmem:[%s587 + $0x38] sm:$0xff] %v602
                $region118: #{gcmc_forward.5} parent=112 // loop_footer
                  %s585 = sadd.s32 1, %s581
                $region119: #{gcmc_forward.5} parent=112 // loop_footer_branch
                  %580 = sbr.rel target = $region115
                $region120: #{gcmc_forward.5} parent=112 // loop_exit
                  _
              $region113: #{gcmc_forward.5} parent=97 // pred_fallthru
                _
              // Predicated region
              $region121: #{gcmc_forward.5} parent=97 // pred_check
                _
              $region122: #{gcmc_forward.5} parent=97 // pred_check_branch
                %605 = sbr.rel target = $region124
              $region123: #{gcmc_forward.5} parent=97 // pred_region
                _
              $region124: #{gcmc_forward.5} parent=97 // pred_fallthru
                _
            $region98: #{gcmc_forward.5} parent=93 // pred_fallthru
              _
            // Predicated region
            $region99: #{gcmc_forward.5} parent=93 // pred_check
              _
            $region100: #{gcmc_forward.5} parent=93 // pred_check_branch
              %552 = sbr.rel target = $region102
            $region101: #{gcmc_forward.5} parent=93 // pred_region
              loop: start=0, step=1, limit=1
              $region103: #{gcmc_forward.5} parent=101 // loop_pre_header
                _
              $region104: #{gcmc_forward.5} parent=101 // loop_header
                %s555 = sphi 0, %s559
                %p556 = scmp.ge.s32.totalorder %s555, 1
                %s560 = sphi %s546, %s546
                %s561 = sphi %s544, %s544
              $region105: #{gcmc_forward.5} parent=101 // loop_header_branch
                %558 = sbr.rel (%p556) target = $region109
              $region106: #{gcmc_forward.5} parent=101 // loop_body
                %v562 = vld [vmem:[%s560] sm:$0xff]
                %563 = vst [vmem:[%s561] sm:$0xff] %v562
                %v564 = vld [vmem:[%s560 + $0x18] sm:$0xff]
                %565 = vst [vmem:[%s561 + $0x8] sm:$0xff] %v564
                %v566 = vld [vmem:[%s560 + $0x30] sm:$0xff]
                %567 = vst [vmem:[%s561 + $0x10] sm:$0xff] %v566
                %v568 = vld [vmem:[%s560 + $0x48] sm:$0xff]
                %569 = vst [vmem:[%s561 + $0x18] sm:$0xff] %v568
                %v570 = vld [vmem:[%s560 + $0x60] sm:$0xff]
                %571 = vst [vmem:[%s561 + $0x20] sm:$0xff] %v570
                %v572 = vld [vmem:[%s560 + $0x78] sm:$0xff]
                %573 = vst [vmem:[%s561 + $0x28] sm:$0xff] %v572
                %v574 = vld [vmem:[%s560 + $0x90] sm:$0xff]
                %575 = vst [vmem:[%s561 + $0x30] sm:$0xff] %v574
                %v576 = vld [vmem:[%s560 + $0xa8] sm:$0xff]
                %577 = vst [vmem:[%s561 + $0x38] sm:$0xff] %v576
              $region107: #{gcmc_forward.5} parent=101 // loop_footer
                %s559 = sadd.s32 1, %s555
              $region108: #{gcmc_forward.5} parent=101 // loop_footer_branch
                %554 = sbr.rel target = $region104
              $region109: #{gcmc_forward.5} parent=101 // loop_exit
                _
            $region102: #{gcmc_forward.5} parent=93 // pred_fallthru
              _
          $region94: #{gcmc_forward.5} parent=89 // pred_fallthru
            _
          %606 = vnop
        $region90: #{gcmc_forward.5} parent=47 // pred_fallthru
          _
        // Predicated region
        $region125: #{gcmc_forward.5} parent=47 // pred_check
          %p607 = pneg %p96
        $region126: #{gcmc_forward.5} parent=47 // pred_check_branch
          %609 = sbr.rel (%p607) target = $region128
        $region127: #{gcmc_forward.5} parent=47 // pred_region
          %s610 = sand.u32 %s86, 1
          %s611 = sand.u32 %s86, 1
          %s612 = smul.addr %s611, 64
          %s613 = scalar_lea.vmem [#allocation5], %s612
          %s614 = smul.addr %s24, 8
          %s615 = scalar_lea.vmem %s2, %s614
          // Predicated region
          $region129: #{gcmc_forward.5} parent=127 // pred_check
            _
          $region130: #{gcmc_forward.5} parent=127 // pred_check_branch
            %617 = sbr.rel (0) target = $region132
          $region131: #{gcmc_forward.5} parent=127 // pred_region
            // Predicated region
            $region133: #{gcmc_forward.5} parent=131 // pred_check
              _
            $region134: #{gcmc_forward.5} parent=131 // pred_check_branch
              %619 = sbr.rel (0) target = $region136
            $region135: #{gcmc_forward.5} parent=131 // pred_region
              // Predicated region
              $region148: #{gcmc_forward.5} parent=135 // pred_check
                _
              $region149: #{gcmc_forward.5} parent=135 // pred_check_branch
                %648 = sbr.rel (0) target = $region151
              $region150: #{gcmc_forward.5} parent=135 // pred_region
                loop: start=0, step=1, limit=1
                $region152: #{gcmc_forward.5} parent=150 // loop_pre_header
                  _
                $region153: #{gcmc_forward.5} parent=150 // loop_header
                  %s650 = sphi 0, %s654
                  %p651 = scmp.ge.s32.totalorder %s650, 1
                  %s655 = sphi %s615, %s615
                  %s656 = sphi %s613, %s613
                $region154: #{gcmc_forward.5} parent=150 // loop_header_branch
                  %653 = sbr.rel (%p651) target = $region158
                $region155: #{gcmc_forward.5} parent=150 // loop_body
                  %v657 = vld [vmem:[%s655] sm:$0xff]
                  %658 = vst [vmem:[%s656] sm:$0xff] %v657
                  %v659 = vld [vmem:[%s655 + $0x18] sm:$0xff]
                  %660 = vst [vmem:[%s656 + $0x8] sm:$0xff] %v659
                  %v661 = vld [vmem:[%s655 + $0x30] sm:$0xff]
                  %662 = vst [vmem:[%s656 + $0x10] sm:$0xff] %v661
                  %v663 = vld [vmem:[%s655 + $0x48] sm:$0xff]
                  %664 = vst [vmem:[%s656 + $0x18] sm:$0xff] %v663
                  %v665 = vld [vmem:[%s655 + $0x60] sm:$0xff]
                  %666 = vst [vmem:[%s656 + $0x20] sm:$0xff] %v665
                  %v667 = vld [vmem:[%s655 + $0x78] sm:$0xff]
                  %668 = vst [vmem:[%s656 + $0x28] sm:$0xff] %v667
                  %v669 = vld [vmem:[%s655 + $0x90] sm:$0xff]
                  %670 = vst [vmem:[%s656 + $0x30] sm:$0xff] %v669
                  %v671 = vld [vmem:[%s655 + $0xa8] sm:$0xff]
                  %672 = vst [vmem:[%s656 + $0x38] sm:$0xff] %v671
                $region156: #{gcmc_forward.5} parent=150 // loop_footer
                  %s654 = sadd.s32 1, %s650
                $region157: #{gcmc_forward.5} parent=150 // loop_footer_branch
                  %649 = sbr.rel target = $region153
                $region158: #{gcmc_forward.5} parent=150 // loop_exit
                  _
              $region151: #{gcmc_forward.5} parent=135 // pred_fallthru
                _
              // Predicated region
              $region159: #{gcmc_forward.5} parent=135 // pred_check
                _
              $region160: #{gcmc_forward.5} parent=135 // pred_check_branch
                %674 = sbr.rel target = $region162
              $region161: #{gcmc_forward.5} parent=135 // pred_region
                _
              $region162: #{gcmc_forward.5} parent=135 // pred_fallthru
                _
            $region136: #{gcmc_forward.5} parent=131 // pred_fallthru
              _
            // Predicated region
            $region137: #{gcmc_forward.5} parent=131 // pred_check
              _
            $region138: #{gcmc_forward.5} parent=131 // pred_check_branch
              %621 = sbr.rel target = $region140
            $region139: #{gcmc_forward.5} parent=131 // pred_region
              loop: start=0, step=1, limit=1
              $region141: #{gcmc_forward.5} parent=139 // loop_pre_header
                _
              $region142: #{gcmc_forward.5} parent=139 // loop_header
                %s624 = sphi 0, %s628
                %p625 = scmp.ge.s32.totalorder %s624, 1
                %s629 = sphi %s615, %s615
                %s630 = sphi %s613, %s613
              $region143: #{gcmc_forward.5} parent=139 // loop_header_branch
                %627 = sbr.rel (%p625) target = $region147
              $region144: #{gcmc_forward.5} parent=139 // loop_body
                %v631 = vld [vmem:[%s629] sm:$0xff]
                %632 = vst [vmem:[%s630] sm:$0xff] %v631
                %v633 = vld [vmem:[%s629 + $0x18] sm:$0xff]
                %634 = vst [vmem:[%s630 + $0x8] sm:$0xff] %v633
                %v635 = vld [vmem:[%s629 + $0x30] sm:$0xff]
                %636 = vst [vmem:[%s630 + $0x10] sm:$0xff] %v635
                %v637 = vld [vmem:[%s629 + $0x48] sm:$0xff]
                %638 = vst [vmem:[%s630 + $0x18] sm:$0xff] %v637
                %v639 = vld [vmem:[%s629 + $0x60] sm:$0xff]
                %640 = vst [vmem:[%s630 + $0x20] sm:$0xff] %v639
                %v641 = vld [vmem:[%s629 + $0x78] sm:$0xff]
                %642 = vst [vmem:[%s630 + $0x28] sm:$0xff] %v641
                %v643 = vld [vmem:[%s629 + $0x90] sm:$0xff]
                %644 = vst [vmem:[%s630 + $0x30] sm:$0xff] %v643
                %v645 = vld [vmem:[%s629 + $0xa8] sm:$0xff]
                %646 = vst [vmem:[%s630 + $0x38] sm:$0xff] %v645
              $region145: #{gcmc_forward.5} parent=139 // loop_footer
                %s628 = sadd.s32 1, %s624
              $region146: #{gcmc_forward.5} parent=139 // loop_footer_branch
                %623 = sbr.rel target = $region142
              $region147: #{gcmc_forward.5} parent=139 // loop_exit
                _
            $region140: #{gcmc_forward.5} parent=131 // pred_fallthru
              _
          $region132: #{gcmc_forward.5} parent=127 // pred_fallthru
            _
          %675 = vnop
        $region128: #{gcmc_forward.5} parent=47 // pred_fallthru
          _
        // Predicated region
        $region163: #{gcmc_forward.5} parent=47 // pred_check
          %p676 = pneg %p122
        $region164: #{gcmc_forward.5} parent=47 // pred_check_branch
          %678 = sbr.rel (%p676) target = $region166
        $region165: #{gcmc_forward.5} parent=47 // pred_region
          %s679 = sand.u32 %s112, 1
          %s680 = sand.u32 %s112, 1
          %s681 = smul.addr %s680, 64
          %s682 = scalar_lea.vmem [#allocation6], %s681
          %s683 = smul.addr %s24, 8
          %s684 = scalar_lea.vmem %s3, %s683
          // Predicated region
          $region167: #{gcmc_forward.5} parent=165 // pred_check
            _
          $region168: #{gcmc_forward.5} parent=165 // pred_check_branch
            %686 = sbr.rel (0) target = $region170
          $region169: #{gcmc_forward.5} parent=165 // pred_region
            // Predicated region
            $region171: #{gcmc_forward.5} parent=169 // pred_check
              _
            $region172: #{gcmc_forward.5} parent=169 // pred_check_branch
              %688 = sbr.rel (0) target = $region174
            $region173: #{gcmc_forward.5} parent=169 // pred_region
              // Predicated region
              $region186: #{gcmc_forward.5} parent=173 // pred_check
                _
              $region187: #{gcmc_forward.5} parent=173 // pred_check_branch
                %717 = sbr.rel (0) target = $region189
              $region188: #{gcmc_forward.5} parent=173 // pred_region
                loop: start=0, step=1, limit=1
                $region190: #{gcmc_forward.5} parent=188 // loop_pre_header
                  _
                $region191: #{gcmc_forward.5} parent=188 // loop_header
                  %s719 = sphi 0, %s723
                  %p720 = scmp.ge.s32.totalorder %s719, 1
                  %s724 = sphi %s684, %s684
                  %s725 = sphi %s682, %s682
                $region192: #{gcmc_forward.5} parent=188 // loop_header_branch
                  %722 = sbr.rel (%p720) target = $region196
                $region193: #{gcmc_forward.5} parent=188 // loop_body
                  %v726 = vld [vmem:[%s724] sm:$0xff]
                  %727 = vst [vmem:[%s725] sm:$0xff] %v726
                  %v728 = vld [vmem:[%s724 + $0x18] sm:$0xff]
                  %729 = vst [vmem:[%s725 + $0x8] sm:$0xff] %v728
                  %v730 = vld [vmem:[%s724 + $0x30] sm:$0xff]
                  %731 = vst [vmem:[%s725 + $0x10] sm:$0xff] %v730
                  %v732 = vld [vmem:[%s724 + $0x48] sm:$0xff]
                  %733 = vst [vmem:[%s725 + $0x18] sm:$0xff] %v732
                  %v734 = vld [vmem:[%s724 + $0x60] sm:$0xff]
                  %735 = vst [vmem:[%s725 + $0x20] sm:$0xff] %v734
                  %v736 = vld [vmem:[%s724 + $0x78] sm:$0xff]
                  %737 = vst [vmem:[%s725 + $0x28] sm:$0xff] %v736
                  %v738 = vld [vmem:[%s724 + $0x90] sm:$0xff]
                  %739 = vst [vmem:[%s725 + $0x30] sm:$0xff] %v738
                  %v740 = vld [vmem:[%s724 + $0xa8] sm:$0xff]
                  %741 = vst [vmem:[%s725 + $0x38] sm:$0xff] %v740
                $region194: #{gcmc_forward.5} parent=188 // loop_footer
                  %s723 = sadd.s32 1, %s719
                $region195: #{gcmc_forward.5} parent=188 // loop_footer_branch
                  %718 = sbr.rel target = $region191
                $region196: #{gcmc_forward.5} parent=188 // loop_exit
                  _
              $region189: #{gcmc_forward.5} parent=173 // pred_fallthru
                _
              // Predicated region
              $region197: #{gcmc_forward.5} parent=173 // pred_check
                _
              $region198: #{gcmc_forward.5} parent=173 // pred_check_branch
                %743 = sbr.rel target = $region200
              $region199: #{gcmc_forward.5} parent=173 // pred_region
                _
              $region200: #{gcmc_forward.5} parent=173 // pred_fallthru
                _
            $region174: #{gcmc_forward.5} parent=169 // pred_fallthru
              _
            // Predicated region
            $region175: #{gcmc_forward.5} parent=169 // pred_check
              _
            $region176: #{gcmc_forward.5} parent=169 // pred_check_branch
              %690 = sbr.rel target = $region178
            $region177: #{gcmc_forward.5} parent=169 // pred_region
              loop: start=0, step=1, limit=1
              $region179: #{gcmc_forward.5} parent=177 // loop_pre_header
                _
              $region180: #{gcmc_forward.5} parent=177 // loop_header
                %s693 = sphi 0, %s697
                %p694 = scmp.ge.s32.totalorder %s693, 1
                %s698 = sphi %s684, %s684
                %s699 = sphi %s682, %s682
              $region181: #{gcmc_forward.5} parent=177 // loop_header_branch
                %696 = sbr.rel (%p694) target = $region185
              $region182: #{gcmc_forward.5} parent=177 // loop_body
                %v700 = vld [vmem:[%s698] sm:$0xff]
                %701 = vst [vmem:[%s699] sm:$0xff] %v700
                %v702 = vld [vmem:[%s698 + $0x18] sm:$0xff]
                %703 = vst [vmem:[%s699 + $0x8] sm:$0xff] %v702
                %v704 = vld [vmem:[%s698 + $0x30] sm:$0xff]
                %705 = vst [vmem:[%s699 + $0x10] sm:$0xff] %v704
                %v706 = vld [vmem:[%s698 + $0x48] sm:$0xff]
                %707 = vst [vmem:[%s699 + $0x18] sm:$0xff] %v706
                %v708 = vld [vmem:[%s698 + $0x60] sm:$0xff]
                %709 = vst [vmem:[%s699 + $0x20] sm:$0xff] %v708
                %v710 = vld [vmem:[%s698 + $0x78] sm:$0xff]
                %711 = vst [vmem:[%s699 + $0x28] sm:$0xff] %v710
                %v712 = vld [vmem:[%s698 + $0x90] sm:$0xff]
                %713 = vst [vmem:[%s699 + $0x30] sm:$0xff] %v712
                %v714 = vld [vmem:[%s698 + $0xa8] sm:$0xff]
                %715 = vst [vmem:[%s699 + $0x38] sm:$0xff] %v714
              $region183: #{gcmc_forward.5} parent=177 // loop_footer
                %s697 = sadd.s32 1, %s693
              $region184: #{gcmc_forward.5} parent=177 // loop_footer_branch
                %692 = sbr.rel target = $region180
              $region185: #{gcmc_forward.5} parent=177 // loop_exit
                _
            $region178: #{gcmc_forward.5} parent=169 // pred_fallthru
              _
          $region170: #{gcmc_forward.5} parent=165 // pred_fallthru
            _
          %744 = vnop
        $region166: #{gcmc_forward.5} parent=47 // pred_fallthru
          _
        // Predicated region
        $region201: #{gcmc_forward.5} parent=47 // pred_check
          %p745 = pneg %p148
        $region202: #{gcmc_forward.5} parent=47 // pred_check_branch
          %747 = sbr.rel (%p745) target = $region204
        $region203: #{gcmc_forward.5} parent=47 // pred_region
          %p748 = scmp.lt.s32.totalorder %s24, 2
          %s749 = scalar_select %p748, %s24, 2
          %s750 = scalar_lea.vmem %s4, %s749
        $region204: #{gcmc_forward.5} parent=47 // pred_fallthru
          _
        // Predicated region
        $region205: #{gcmc_forward.5} parent=47 // pred_check
          %p751 = pneg %p174
        $region206: #{gcmc_forward.5} parent=47 // pred_check_branch
          %753 = sbr.rel (%p751) target = $region208
        $region207: #{gcmc_forward.5} parent=47 // pred_region
          %p754 = scmp.lt.s32.totalorder %s24, 2
          %s755 = scalar_select %p754, %s24, 2
          %s756 = scalar_lea.vmem %s5, %s755
        $region208: #{gcmc_forward.5} parent=47 // pred_fallthru
          _
        // Predicated region
        $region209: #{gcmc_forward.5} parent=47 // pred_check
          %p757 = pneg %p200
        $region210: #{gcmc_forward.5} parent=47 // pred_check_branch
          %759 = sbr.rel (%p757) target = $region212
        $region211: #{gcmc_forward.5} parent=47 // pred_region
          %p760 = scmp.lt.s32.totalorder %s24, 2
          %s761 = scalar_select %p760, %s24, 2
          %s762 = scalar_lea.vmem %s6, %s761
        $region212: #{gcmc_forward.5} parent=47 // pred_fallthru
          _
        // Predicated region
        $region213: #{gcmc_forward.5} parent=47 // pred_check
          %p763 = pneg %p226
        $region214: #{gcmc_forward.5} parent=47 // pred_check_branch
          %765 = sbr.rel (%p763) target = $region216
        $region215: #{gcmc_forward.5} parent=47 // pred_region
          %p766 = scmp.lt.s32.totalorder %s24, 2
          %s767 = scalar_select %p766, %s24, 2
          %s768 = scalar_lea.vmem %s7, %s767
        $region216: #{gcmc_forward.5} parent=47 // pred_fallthru
          _
      $region48: #{gcmc_forward.5} parent=5 // pred_fallthru
        _
      %p769 = scmp.le.s32.totalorder 1, %s24
      %p770 = scmp.lt.s32.totalorder %s24, 4
      %p771 = pnand %p769, %p770
      %p772 = pneg %p771
      // Predicated region
      $region217: #{gcmc_forward.5} parent=5 // pred_check
        _
      $region218: #{gcmc_forward.5} parent=5 // pred_check_branch
        %774 = sbr.rel (%p771) target = $region220
      $region219: #{gcmc_forward.5} parent=5 // pred_region
        %s775 = ssub.s32 %s24, 1
        %s776 = sand.u32 %s37, 1
        %s777 = sand.u32 %s37, 1
        %s778 = smul.addr %s777, 64
        %s779 = scalar_lea.vmem [#allocation3], %s778
        // Predicated region
        $region221: #{gcmc_forward.5} parent=219 // pred_check
          %p780 = pneg %p50
        $region222: #{gcmc_forward.5} parent=219 // pred_check_branch
          %782 = sbr.rel (%p780) target = $region224
        $region223: #{gcmc_forward.5} parent=219 // pred_region
          _
        $region224: #{gcmc_forward.5} parent=219 // pred_fallthru
          _
        %s783 = sand.u32 %s63, 1
        %s784 = sand.u32 %s63, 1
        %s785 = smul.addr %s784, 64
        %s786 = scalar_lea.vmem [#allocation4], %s785
        // Predicated region
        $region225: #{gcmc_forward.5} parent=219 // pred_check
          %p787 = pneg %p76
        $region226: #{gcmc_forward.5} parent=219 // pred_check_branch
          %789 = sbr.rel (%p787) target = $region228
        $region227: #{gcmc_forward.5} parent=219 // pred_region
          _
        $region228: #{gcmc_forward.5} parent=219 // pred_fallthru
          _
        %s790 = sand.u32 %s89, 1
        %s791 = sand.u32 %s89, 1
        %s792 = smul.addr %s791, 64
        %s793 = scalar_lea.vmem [#allocation5], %s792
        // Predicated region
        $region229: #{gcmc_forward.5} parent=219 // pred_check
          %p794 = pneg %p102
        $region230: #{gcmc_forward.5} parent=219 // pred_check_branch
          %796 = sbr.rel (%p794) target = $region232
        $region231: #{gcmc_forward.5} parent=219 // pred_region
          _
        $region232: #{gcmc_forward.5} parent=219 // pred_fallthru
          _
        %s797 = sand.u32 %s115, 1
        %s798 = sand.u32 %s115, 1
        %s799 = smul.addr %s798, 64
        %s800 = scalar_lea.vmem [#allocation6], %s799
        // Predicated region
        $region233: #{gcmc_forward.5} parent=219 // pred_check
          %p801 = pneg %p128
        $region234: #{gcmc_forward.5} parent=219 // pred_check_branch
          %803 = sbr.rel (%p801) target = $region236
        $region235: #{gcmc_forward.5} parent=219 // pred_region
          _
        $region236: #{gcmc_forward.5} parent=219 // pred_fallthru
          _
        %s804 = sand.u32 %s37, 1
        %s805 = sand.u32 %s37, 1
        %s806 = smul.addr %s805, 64
        %s807 = scalar_lea.vmem [#allocation3], %s806
        %p808 = pneg %p50
        %p809 = pneg %p47
        %s810 = sand.u32 %s63, 1
        %s811 = sand.u32 %s63, 1
        %s812 = smul.addr %s811, 64
        %s813 = scalar_lea.vmem [#allocation4], %s812
        %p814 = pneg %p76
        %p815 = pneg %p73
        %s816 = sand.u32 %s89, 1
        %s817 = sand.u32 %s89, 1
        %s818 = smul.addr %s817, 64
        %s819 = scalar_lea.vmem [#allocation5], %s818
        %p820 = pneg %p102
        %p821 = pneg %p99
        %s822 = sand.u32 %s115, 1
        %s823 = sand.u32 %s115, 1
        %s824 = smul.addr %s823, 64
        %s825 = scalar_lea.vmem [#allocation6], %s824
        %p826 = pneg %p128
        %p827 = pneg %p125
        %p828 = scmp.lt.s32.totalorder %s29, 2
        %s829 = scalar_select %p828, %s29, 2
        %s830 = scalar_lea.vmem %s4, %s829
        %p831 = pneg %p154
        %p832 = pneg %p151
        %p833 = scmp.lt.s32.totalorder %s29, 2
        %s834 = scalar_select %p833, %s29, 2
        %s835 = scalar_lea.vmem %s5, %s834
        %p836 = pneg %p180
        %p837 = pneg %p177
        %p838 = scmp.lt.s32.totalorder %s29, 2
        %s839 = scalar_select %p838, %s29, 2
        %s840 = scalar_lea.vmem %s6, %s839
        %p841 = pneg %p206
        %p842 = pneg %p203
        %p843 = scmp.lt.s32.totalorder %s29, 2
        %s844 = scalar_select %p843, %s29, 2
        %s845 = scalar_lea.vmem %s7, %s844
        %p846 = pneg %p232
        %p847 = pneg %p229
        %p848 = pneg %p253
        %p849 = pneg %p250
        %p850 = pneg %p274
        %p851 = pneg %p271
        %p852 = pneg %p295
        %p853 = pneg %p292
        %p854 = pneg %p316
        %p855 = pneg %p313
        %p856 = pneg %p337
        %p857 = pneg %p334
        %p858 = pneg %p358
        %p859 = pneg %p355
        %p860 = pneg %p379
        %p861 = pneg %p376
        %p862 = pneg %p400
        %p863 = pneg %p397
        %p864 = pneg %p426
        %p865 = pneg %p423
        %p866 = scmp.lt.s32.totalorder %s29, 2
        %s867 = scalar_select %p866, %s29, 2
        %s868 = scalar_lea.vmem %s16, %s867
        %p869 = scmp.lt.s32.totalorder %s29, 2
        %s870 = scalar_select %p869, %s29, 2
        %s871 = scalar_lea.vmem %s4, %s870
        %p872 = scmp.lt.s32.totalorder %s29, 2
        %s873 = scalar_select %p872, %s29, 2
        %s874 = scalar_lea.vmem %s5, %s873
        %p875 = scmp.lt.s32.totalorder %s29, 2
        %s876 = scalar_select %p875, %s29, 2
        %s877 = scalar_lea.vmem %s6, %s876
        %p878 = scmp.lt.s32.totalorder %s29, 2
        %s879 = scalar_select %p878, %s29, 2
        %s880 = scalar_lea.vmem %s7, %s879
        %p881 = scmp.lt.s32.totalorder %s29, 2
        %s882 = scalar_select %p881, %s29, 2
        %s883 = scalar_lea.vmem %s16, %s882
        %v884 = vld [vmem:[%s871] sm:$0x1]
        %v885 = vadd.f32 %v884, 1.0
        %v886 = vrcp.pop %v885
        %v887 = vld [vmem:[%s874] sm:$0x1]
        %v888 = vadd.f32 %v887, 1.0
        %v889 = vrcp.pop %v888
        %v890 = vld [vmem:[%s793] sm:$0xff]
        %v891 = vld [vmem:[%s793 + $0x8] sm:$0xff]
        %v892 = vld [vmem:[%s793 + $0x10] sm:$0xff]
        %v893 = vld [vmem:[%s793 + $0x18] sm:$0xff]
        %v894 = vld [vmem:[%s793 + $0x20] sm:$0xff]
        %v895 = vld [vmem:[%s793 + $0x28] sm:$0xff]
        %v896 = vld [vmem:[%s793 + $0x30] sm:$0xff]
        %v897 = vld [vmem:[%s793 + $0x38] sm:$0xff]
        %v899 = vlaneseq
        %v900 = vshrl.u32 %v899, 7
        %v901 = vsub.s32 0, %v900
        %v902 = vrot.slane %v886, %v901
        %v904 = vmul.f32 %v890, %v902
        %v905 = vmul.f32 %v891, %v902
        %v906 = vmul.f32 %v892, %v902
        %v907 = vmul.f32 %v893, %v902
        %v908 = vmul.f32 %v894, %v902
        %v909 = vmul.f32 %v895, %v902
        %v910 = vmul.f32 %v896, %v902
        %v911 = vmul.f32 %v897, %v902
        %v912 = vld [vmem:[%s800] sm:$0xff]
        %v913 = vld [vmem:[%s800 + $0x8] sm:$0xff]
        %v914 = vld [vmem:[%s800 + $0x10] sm:$0xff]
        %v915 = vld [vmem:[%s800 + $0x18] sm:$0xff]
        %v916 = vld [vmem:[%s800 + $0x20] sm:$0xff]
        %v917 = vld [vmem:[%s800 + $0x28] sm:$0xff]
        %v918 = vld [vmem:[%s800 + $0x30] sm:$0xff]
        %v919 = vld [vmem:[%s800 + $0x38] sm:$0xff]
        %v921 = vlaneseq
        %v922 = vshrl.u32 %v921, 7
        %v923 = vsub.s32 0, %v922
        %v924 = vrot.slane %v889, %v923
        %v926 = vmul.f32 %v912, %v924
        %v927 = vmul.f32 %v913, %v924
        %v928 = vmul.f32 %v914, %v924
        %v929 = vmul.f32 %v915, %v924
        %v930 = vmul.f32 %v916, %v924
        %v931 = vmul.f32 %v917, %v924
        %v932 = vmul.f32 %v918, %v924
        %v933 = vmul.f32 %v919, %v924
        %v934 = vld [vmem:[%s8] sm:$0xff]
        %v935 = vld [vmem:[%s8 + $0x8] sm:$0xff]
        %v936 = vld [vmem:[%s8 + $0x10] sm:$0xff]
        %v937 = vld [vmem:[%s8 + $0x18] sm:$0xff]
        %v938 = vld [vmem:[%s8 + $0x20] sm:$0xff]
        %v939 = vld [vmem:[%s8 + $0x28] sm:$0xff]
        %v940 = vld [vmem:[%s8 + $0x30] sm:$0xff]
        %v941 = vld [vmem:[%s8 + $0x38] sm:$0xff]
        %v942 = vld [vmem:[%s8 + $0x40] sm:$0xff]
        %v943 = vld [vmem:[%s8 + $0x48] sm:$0xff]
        %v944 = vld [vmem:[%s8 + $0x50] sm:$0xff]
        %v945 = vld [vmem:[%s8 + $0x58] sm:$0xff]
        %v946 = vld [vmem:[%s8 + $0x60] sm:$0xff]
        %v947 = vld [vmem:[%s8 + $0x68] sm:$0xff]
        %v948 = vld [vmem:[%s8 + $0x70] sm:$0xff]
        %v949 = vld [vmem:[%s8 + $0x78] sm:$0xff]
        %v950 = vld [vmem:[%s9] sm:$0xff]
        %v951 = vld [vmem:[%s9 + $0x8] sm:$0xff]
        %v952 = vld [vmem:[%s9 + $0x10] sm:$0xff]
        %v953 = vld [vmem:[%s9 + $0x18] sm:$0xff]
        %v954 = vld [vmem:[%s9 + $0x20] sm:$0xff]
        %v955 = vld [vmem:[%s9 + $0x28] sm:$0xff]
        %v956 = vld [vmem:[%s9 + $0x30] sm:$0xff]
        %v957 = vld [vmem:[%s9 + $0x38] sm:$0xff]
        %v958 = vld [vmem:[%s9 + $0x40] sm:$0xff]
        %v959 = vld [vmem:[%s9 + $0x48] sm:$0xff]
        %v960 = vld [vmem:[%s9 + $0x50] sm:$0xff]
        %v961 = vld [vmem:[%s9 + $0x58] sm:$0xff]
        %v962 = vld [vmem:[%s9 + $0x60] sm:$0xff]
        %v963 = vld [vmem:[%s9 + $0x68] sm:$0xff]
        %v964 = vld [vmem:[%s9 + $0x70] sm:$0xff]
        %v965 = vld [vmem:[%s9 + $0x78] sm:$0xff]
        %967 = vset.pattern.permute.xlu0 0
        %968 = vperm.xlu0 %967, %v950
        %v969 = vpop.permute.xlu0 %968
        %972 = vset.pattern.permute.xlu0 0
        %973 = vperm.xlu0 %972, %v951
        %v974 = vpop.permute.xlu0 %973
        %977 = vset.pattern.permute.xlu0 0
        %978 = vperm.xlu0 %977, %v952
        %v979 = vpop.permute.xlu0 %978
        %982 = vset.pattern.permute.xlu0 0
        %983 = vperm.xlu0 %982, %v953
        %v984 = vpop.permute.xlu0 %983
        %987 = vset.pattern.permute.xlu0 0
        %988 = vperm.xlu0 %987, %v954
        %v989 = vpop.permute.xlu0 %988
        %992 = vset.pattern.permute.xlu0 0
        %993 = vperm.xlu0 %992, %v955
        %v994 = vpop.permute.xlu0 %993
        %997 = vset.pattern.permute.xlu0 0
        %998 = vperm.xlu0 %997, %v956
        %v999 = vpop.permute.xlu0 %998
        %1002 = vset.pattern.permute.xlu0 0
        %1003 = vperm.xlu0 %1002, %v957
        %v1004 = vpop.permute.xlu0 %1003
        %1007 = vset.pattern.permute.xlu0 0
        %1008 = vperm.xlu0 %1007, %v958
        %v1009 = vpop.permute.xlu0 %1008
        %1012 = vset.pattern.permute.xlu0 0
        %1013 = vperm.xlu0 %1012, %v959
        %v1014 = vpop.permute.xlu0 %1013
        %1017 = vset.pattern.permute.xlu0 0
        %1018 = vperm.xlu0 %1017, %v960
        %v1019 = vpop.permute.xlu0 %1018
        %1022 = vset.pattern.permute.xlu0 0
        %1023 = vperm.xlu0 %1022, %v961
        %v1024 = vpop.permute.xlu0 %1023
        %1027 = vset.pattern.permute.xlu0 0
        %1028 = vperm.xlu0 %1027, %v962
        %v1029 = vpop.permute.xlu0 %1028
        %1032 = vset.pattern.permute.xlu0 0
        %1033 = vperm.xlu0 %1032, %v963
        %v1034 = vpop.permute.xlu0 %1033
        %1037 = vset.pattern.permute.xlu0 0
        %1038 = vperm.xlu0 %1037, %v964
        %v1039 = vpop.permute.xlu0 %1038
        %1042 = vset.pattern.permute.xlu0 0
        %1043 = vperm.xlu0 %1042, %v965
        %v1044 = vpop.permute.xlu0 %1043
        %1046 = vmatprep.subr.mxu0 0.0
        %1047 = vmatpush1.msra.mxu0 %v926
        %1048 = vmatprep.subr.mxu0 0.0
        %1049 = vmatpush1.msra.mxu0 %v927
        %1050 = vmatprep.subr.mxu0 0.0
        %1051 = vmatpush1.msra.mxu0 %v928
        %1052 = vmatprep.subr.mxu0 0.0
        %1053 = vmatpush1.msra.mxu0 %v929
        %1054 = vmatprep.subr.mxu0 0.0
        %1055 = vmatpush1.msra.mxu0 %v930
        %1056 = vmatprep.subr.mxu0 0.0
        %1057 = vmatpush1.msra.mxu0 %v931
        %1058 = vmatprep.subr.mxu0 0.0
        %1059 = vmatpush1.msra.mxu0 %v932
        %1060 = vmatprep.subr.mxu0 0.0
        %1061 = vmatpush1.msra.mxu0 %v933
        %1062 = vmatprep.subr.mxu0 0.0
        %1063 = vmatpush1.msra.mxu0 %v904
        %1064 = vmatprep.subr.mxu0 0.0
        %1065 = vmatpush1.msra.mxu0 %v905
        %1066 = vmatprep.subr.mxu0 0.0
        %1067 = vmatpush1.msra.mxu0 %v906
        %1068 = vmatprep.subr.mxu0 0.0
        %1069 = vmatpush1.msra.mxu0 %v907
        %1070 = vmatprep.subr.mxu0 0.0
        %1071 = vmatpush1.msra.mxu0 %v908
        %1072 = vmatprep.subr.mxu0 0.0
        %1073 = vmatpush1.msra.mxu0 %v909
        %1074 = vmatprep.subr.mxu0 0.0
        %1075 = vmatpush1.msra.mxu0 %v910
        %1076 = vmatprep.subr.mxu0 0.0
        %1077 = vmatpush1.msra.mxu0 %v911
        %1078 = vmatprep.subr.mxu0 0.0
        %1079 = vmatpush1.msra.mxu0 0.0
        %1080 = vmatprep.subr.mxu0 0.0
        %1081 = vmatpush1.msra.mxu0 0.0
        %1082 = vmatprep.subr.mxu0 0.0
        %1083 = vmatpush1.msra.mxu0 0.0
        %1084 = vmatprep.subr.mxu0 0.0
        %1085 = vmatpush1.msra.mxu0 0.0
        %1086 = vmatprep.subr.mxu0 0.0
        %1087 = vmatpush1.msra.mxu0 0.0
        %1088 = vmatprep.subr.mxu0 0.0
        %1089 = vmatpush1.msra.mxu0 0.0
        %1090 = vmatprep.subr.mxu0 0.0
        %1091 = vmatpush1.msra.mxu0 0.0
        %1092 = vmatprep.subr.mxu0 0.0
        %1093 = vmatpush1.msra.mxu0 0.0
        %1094 = vmatprep.subr.mxu0 0.0
        %1095 = vmatpush1.msra.mxu0 0.0
        %1096 = vmatprep.subr.mxu0 0.0
        %1097 = vmatpush1.msra.mxu0 0.0
        %1098 = vmatprep.subr.mxu0 0.0
        %1099 = vmatpush1.msra.mxu0 0.0
        %1100 = vmatprep.subr.mxu0 0.0
        %1101 = vmatpush1.msra.mxu0 0.0
        %1102 = vmatprep.subr.mxu0 0.0
        %1103 = vmatpush1.msra.mxu0 0.0
        %1104 = vmatprep.subr.mxu0 0.0
        %1105 = vmatpush1.msra.mxu0 0.0
        %1106 = vmatprep.subr.mxu0 0.0
        %1107 = vmatpush1.msra.mxu0 0.0
        %1108 = vmatprep.subr.mxu0 0.0
        %1109 = vmatpush1.msra.mxu0 0.0
        %1110 = vmatprep.mubr.f32.mxu0 0.0
        %1111 = vmatmul.mubr.f32.gmra.mrb[0].mxu0 %v934
        %v1112 = vpop.f32.mrb[0].mxu0
        %v1113 = vadd.f32 %v969, %v1112
        %v1114 = vpop.f32.mrb[0].mxu0
        %1115 = vmatprep.mubr.f32.mxu0 0.0
        %1116 = vmatmul.mubr.f32.gmra.mrb[0].mxu0 %v935
        %v1117 = vpop.f32.mrb[0].mxu0
        %v1118 = vadd.f32 %v974, %v1117
        %v1119 = vpop.f32.mrb[0].mxu0
        %1120 = vmatprep.mubr.f32.mxu0 0.0
        %1121 = vmatmul.mubr.f32.gmra.mrb[0].mxu0 %v936
        %v1122 = vpop.f32.mrb[0].mxu0
        %v1123 = vadd.f32 %v979, %v1122
        %v1124 = vpop.f32.mrb[0].mxu0
        %1125 = vmatprep.mubr.f32.mxu0 0.0
        %1126 = vmatmul.mubr.f32.gmra.mrb[0].mxu0 %v937
        %v1127 = vpop.f32.mrb[0].mxu0
        %v1128 = vadd.f32 %v984, %v1127
        %v1129 = vpop.f32.mrb[0].mxu0
        %1130 = vmatprep.mubr.f32.mxu0 0.0
        %1131 = vmatmul.mubr.f32.gmra.mrb[0].mxu0 %v938
        %v1132 = vpop.f32.mrb[0].mxu0
        %v1133 = vadd.f32 %v989, %v1132
        %v1134 = vpop.f32.mrb[0].mxu0
        %1135 = vmatprep.mubr.f32.mxu0 0.0
        %1136 = vmatmul.mubr.f32.gmra.mrb[0].mxu0 %v939
        %v1137 = vpop.f32.mrb[0].mxu0
        %v1138 = vadd.f32 %v994, %v1137
        %v1139 = vpop.f32.mrb[0].mxu0
        %1140 = vmatprep.mubr.f32.mxu0 0.0
        %1141 = vmatmul.mubr.f32.gmra.mrb[0].mxu0 %v940
        %v1142 = vpop.f32.mrb[0].mxu0
        %v1143 = vadd.f32 %v999, %v1142
        %v1144 = vpop.f32.mrb[0].mxu0
        %1145 = vmatprep.mubr.f32.mxu0 0.0
        %1146 = vmatmul.mubr.f32.gmra.mrb[0].mxu0 %v941
        %v1147 = vpop.f32.mrb[0].mxu0
        %v1148 = vadd.f32 %v1004, %v1147
        %v1149 = vpop.f32.mrb[0].mxu0
        %1150 = vmatprep.mubr.f32.mxu0 0.0
        %1151 = vmatmul.mubr.f32.gmra.mrb[0].mxu0 %v942
        %v1152 = vpop.f32.mrb[0].mxu0
        %v1153 = vadd.f32 %v1009, %v1152
        %v1154 = vpop.f32.mrb[0].mxu0
        %1155 = vmatprep.mubr.f32.mxu0 0.0
        %1156 = vmatmul.mubr.f32.gmra.mrb[0].mxu0 %v943
        %v1157 = vpop.f32.mrb[0].mxu0
        %v1158 = vadd.f32 %v1014, %v1157
        %v1159 = vpop.f32.mrb[0].mxu0
        %1160 = vmatprep.mubr.f32.mxu0 0.0
        %1161 = vmatmul.mubr.f32.gmra.mrb[0].mxu0 %v944
        %v1162 = vpop.f32.mrb[0].mxu0
        %v1163 = vadd.f32 %v1019, %v1162
        %v1164 = vpop.f32.mrb[0].mxu0
        %1165 = vmatprep.mubr.f32.mxu0 0.0
        %1166 = vmatmul.mubr.f32.gmra.mrb[0].mxu0 %v945
        %v1167 = vpop.f32.mrb[0].mxu0
        %v1168 = vadd.f32 %v1024, %v1167
        %v1169 = vpop.f32.mrb[0].mxu0
        %1170 = vmatprep.mubr.f32.mxu0 0.0
        %1171 = vmatmul.mubr.f32.gmra.mrb[0].mxu0 %v946
        %v1172 = vpop.f32.mrb[0].mxu0
        %v1173 = vadd.f32 %v1029, %v1172
        %v1174 = vpop.f32.mrb[0].mxu0
        %1175 = vmatprep.mubr.f32.mxu0 0.0
        %1176 = vmatmul.mubr.f32.gmra.mrb[0].mxu0 %v947
        %v1177 = vpop.f32.mrb[0].mxu0
        %v1178 = vadd.f32 %v1034, %v1177
        %v1179 = vpop.f32.mrb[0].mxu0
        %1180 = vmatprep.mubr.f32.mxu0 0.0
        %1181 = vmatmul.mubr.f32.gmra.mrb[0].mxu0 %v948
        %v1182 = vpop.f32.mrb[0].mxu0
        %v1183 = vadd.f32 %v1039, %v1182
        %v1184 = vpop.f32.mrb[0].mxu0
        %1185 = vmatprep.mubr.f32.mxu0 0.0
        %1186 = vmatmul.mubr.f32.gmra.mrb[0].mxu0 %v949
        %v1187 = vpop.f32.mrb[0].mxu0
        %v1188 = vadd.f32 %v1044, %v1187
        %v1189 = vpop.f32.mrb[0].mxu0
        %1190 = vdwg.mxu0
        %v1191 = vmax.f32 %v1113, 0.0
        %v1192 = vmax.f32 %v1118, 0.0
        %v1193 = vmax.f32 %v1123, 0.0
        %v1194 = vmax.f32 %v1128, 0.0
        %v1195 = vmax.f32 %v1133, 0.0
        %v1196 = vmax.f32 %v1138, 0.0
        %v1197 = vmax.f32 %v1143, 0.0
        %v1198 = vmax.f32 %v1148, 0.0
        %v1199 = vmax.f32 %v1153, 0.0
        %v1200 = vmax.f32 %v1158, 0.0
        %v1201 = vmax.f32 %v1163, 0.0
        %v1202 = vmax.f32 %v1168, 0.0
        %v1203 = vmax.f32 %v1173, 0.0
        %v1204 = vmax.f32 %v1178, 0.0
        %v1205 = vmax.f32 %v1183, 0.0
        %v1206 = vmax.f32 %v1188, 0.0
        %v1207 = vld [vmem:[%s779] sm:$0xff]
        %v1208 = vld [vmem:[%s779 + $0x8] sm:$0xff]
        %v1209 = vld [vmem:[%s779 + $0x10] sm:$0xff]
        %v1210 = vld [vmem:[%s779 + $0x18] sm:$0xff]
        %v1211 = vld [vmem:[%s779 + $0x20] sm:$0xff]
        %v1212 = vld [vmem:[%s779 + $0x28] sm:$0xff]
        %v1213 = vld [vmem:[%s779 + $0x30] sm:$0xff]
        %v1214 = vld [vmem:[%s779 + $0x38] sm:$0xff]
        %v1215 = vld [vmem:[%s786] sm:$0xff]
        %v1216 = vld [vmem:[%s786 + $0x8] sm:$0xff]
        %v1217 = vld [vmem:[%s786 + $0x10] sm:$0xff]
        %v1218 = vld [vmem:[%s786 + $0x18] sm:$0xff]
        %v1219 = vld [vmem:[%s786 + $0x20] sm:$0xff]
        %v1220 = vld [vmem:[%s786 + $0x28] sm:$0xff]
        %v1221 = vld [vmem:[%s786 + $0x30] sm:$0xff]
        %v1222 = vld [vmem:[%s786 + $0x38] sm:$0xff]
        %v1223 = vmul.f32 %v1207, %v1215
        %v1224 = vmul.f32 %v1208, %v1216
        %v1225 = vmul.f32 %v1209, %v1217
        %v1226 = vmul.f32 %v1210, %v1218
        %v1227 = vmul.f32 %v1211, %v1219
        %v1228 = vmul.f32 %v1212, %v1220
        %v1229 = vmul.f32 %v1213, %v1221
        %v1230 = vmul.f32 %v1214, %v1222
        %v1231 = vmul.f32 %v1207, %v1199
        %v1232 = vmul.f32 %v1208, %v1200
        %v1233 = vmul.f32 %v1209, %v1201
        %v1234 = vmul.f32 %v1210, %v1202
        %v1235 = vmul.f32 %v1211, %v1203
        %v1236 = vmul.f32 %v1212, %v1204
        %v1237 = vmul.f32 %v1213, %v1205
        %v1238 = vmul.f32 %v1214, %v1206
        %v1239 = vmul.f32 %v1191, %v1215
        %v1240 = vmul.f32 %v1192, %v1216
        %v1241 = vmul.f32 %v1193, %v1217
        %v1242 = vmul.f32 %v1194, %v1218
        %v1243 = vmul.f32 %v1195, %v1219
        %v1244 = vmul.f32 %v1196, %v1220
        %v1245 = vmul.f32 %v1197, %v1221
        %v1246 = vmul.f32 %v1198, %v1222
        %v1247 = vmul.f32 %v1191, %v1199
        %v1248 = vmul.f32 %v1192, %v1200
        %v1249 = vmul.f32 %v1193, %v1201
        %v1250 = vmul.f32 %v1194, %v1202
        %v1251 = vmul.f32 %v1195, %v1203
        %v1252 = vmul.f32 %v1196, %v1204
        %v1253 = vmul.f32 %v1197, %v1205
        %v1254 = vmul.f32 %v1198, %v1206
        %v1255 = vld [vmem:[%s10] sm:$0xff]
        %v1256 = vld [vmem:[%s10 + $0x8] sm:$0xff]
        %v1257 = vld [vmem:[%s10 + $0x10] sm:$0xff]
        %v1258 = vld [vmem:[%s10 + $0x18] sm:$0xff]
        %v1259 = vld [vmem:[%s10 + $0x20] sm:$0xff]
        %v1260 = vld [vmem:[%s10 + $0x28] sm:$0xff]
        %v1261 = vld [vmem:[%s10 + $0x30] sm:$0xff]
        %v1262 = vld [vmem:[%s10 + $0x38] sm:$0xff]
        %v1263 = vld [vmem:[%s10 + $0x40] sm:$0xff]
        %v1264 = vld [vmem:[%s10 + $0x48] sm:$0xff]
        %v1265 = vld [vmem:[%s10 + $0x50] sm:$0xff]
        %v1266 = vld [vmem:[%s10 + $0x58] sm:$0xff]
        %v1267 = vld [vmem:[%s10 + $0x60] sm:$0xff]
        %v1268 = vld [vmem:[%s10 + $0x68] sm:$0xff]
        %v1269 = vld [vmem:[%s10 + $0x70] sm:$0xff]
        %v1270 = vld [vmem:[%s10 + $0x78] sm:$0xff]
        %v1271 = vld [vmem:[%s10 + $0x80] sm:$0xff]
        %v1272 = vld [vmem:[%s10 + $0x88] sm:$0xff]
        %v1273 = vld [vmem:[%s10 + $0x90] sm:$0xff]
        %v1274 = vld [vmem:[%s10 + $0x98] sm:$0xff]
        %v1275 = vld [vmem:[%s10 + $0xa0] sm:$0xff]
        %v1276 = vld [vmem:[%s10 + $0xa8] sm:$0xff]
        %v1277 = vld [vmem:[%s10 + $0xb0] sm:$0xff]
        %v1278 = vld [vmem:[%s10 + $0xb8] sm:$0xff]
        %v1279 = vld [vmem:[%s10 + $0xc0] sm:$0xff]
        %v1280 = vld [vmem:[%s10 + $0xc8] sm:$0xff]
        %v1281 = vld [vmem:[%s10 + $0xd0] sm:$0xff]
        %v1282 = vld [vmem:[%s10 + $0xd8] sm:$0xff]
        %v1283 = vld [vmem:[%s10 + $0xe0] sm:$0xff]
        %v1284 = vld [vmem:[%s10 + $0xe8] sm:$0xff]
        %v1285 = vld [vmem:[%s10 + $0xf0] sm:$0xff]
        %v1286 = vld [vmem:[%s10 + $0xf8] sm:$0xff]
        %v1287 = vld [vmem:[%s11] sm:$0xff]
        %v1288 = vld [vmem:[%s11 + $0x8] sm:$0xff]
        %v1289 = vld [vmem:[%s11 + $0x10] sm:$0xff]
        %v1290 = vld [vmem:[%s11 + $0x18] sm:$0xff]
        %v1291 = vld [vmem:[%s11 + $0x20] sm:$0xff]
        %v1292 = vld [vmem:[%s11 + $0x28] sm:$0xff]
        %v1293 = vld [vmem:[%s11 + $0x30] sm:$0xff]
        %v1294 = vld [vmem:[%s11 + $0x38] sm:$0xff]
        %v1295 = vld [vmem:[%s11 + $0x40] sm:$0xff]
        %v1296 = vld [vmem:[%s11 + $0x48] sm:$0xff]
        %v1297 = vld [vmem:[%s11 + $0x50] sm:$0xff]
        %v1298 = vld [vmem:[%s11 + $0x58] sm:$0xff]
        %v1299 = vld [vmem:[%s11 + $0x60] sm:$0xff]
        %v1300 = vld [vmem:[%s11 + $0x68] sm:$0xff]
        %v1301 = vld [vmem:[%s11 + $0x70] sm:$0xff]
        %v1302 = vld [vmem:[%s11 + $0x78] sm:$0xff]
        %1304 = vset.pattern.permute.xlu0 0
        %1305 = vperm.xlu0 %1304, %v1287
        %v1306 = vpop.permute.xlu0 %1305
        %1309 = vset.pattern.permute.xlu0 0
        %1310 = vperm.xlu0 %1309, %v1288
        %v1311 = vpop.permute.xlu0 %1310
        %1314 = vset.pattern.permute.xlu0 0
        %1315 = vperm.xlu0 %1314, %v1289
        %v1316 = vpop.permute.xlu0 %1315
        %1319 = vset.pattern.permute.xlu0 0
        %1320 = vperm.xlu0 %1319, %v1290
        %v1321 = vpop.permute.xlu0 %1320
        %1324 = vset.pattern.permute.xlu0 0
        %1325 = vperm.xlu0 %1324, %v1291
        %v1326 = vpop.permute.xlu0 %1325
        %1329 = vset.pattern.permute.xlu0 0
        %1330 = vperm.xlu0 %1329, %v1292
        %v1331 = vpop.permute.xlu0 %1330
        %1334 = vset.pattern.permute.xlu0 0
        %1335 = vperm.xlu0 %1334, %v1293
        %v1336 = vpop.permute.xlu0 %1335
        %1339 = vset.pattern.permute.xlu0 0
        %1340 = vperm.xlu0 %1339, %v1294
        %v1341 = vpop.permute.xlu0 %1340
        %1344 = vset.pattern.permute.xlu0 0
        %1345 = vperm.xlu0 %1344, %v1295
        %v1346 = vpop.permute.xlu0 %1345
        %1349 = vset.pattern.permute.xlu0 0
        %1350 = vperm.xlu0 %1349, %v1296
        %v1351 = vpop.permute.xlu0 %1350
        %1354 = vset.pattern.permute.xlu0 0
        %1355 = vperm.xlu0 %1354, %v1297
        %v1356 = vpop.permute.xlu0 %1355
        %1359 = vset.pattern.permute.xlu0 0
        %1360 = vperm.xlu0 %1359, %v1298
        %v1361 = vpop.permute.xlu0 %1360
        %1364 = vset.pattern.permute.xlu0 0
        %1365 = vperm.xlu0 %1364, %v1299
        %v1366 = vpop.permute.xlu0 %1365
        %1369 = vset.pattern.permute.xlu0 0
        %1370 = vperm.xlu0 %1369, %v1300
        %v1371 = vpop.permute.xlu0 %1370
        %1374 = vset.pattern.permute.xlu0 0
        %1375 = vperm.xlu0 %1374, %v1301
        %v1376 = vpop.permute.xlu0 %1375
        %1379 = vset.pattern.permute.xlu0 0
        %1380 = vperm.xlu0 %1379, %v1302
        %v1381 = vpop.permute.xlu0 %1380
        %1383 = vmatprep.subr.mxu0 0.0
        %1384 = vmatpush1.msra.mxu0 %v1223
        %1385 = vmatprep.subr.mxu0 0.0
        %1386 = vmatpush1.msra.mxu0 %v1224
        %1387 = vmatprep.subr.mxu0 0.0
        %1388 = vmatpush1.msra.mxu0 %v1225
        %1389 = vmatprep.subr.mxu0 0.0
        %1390 = vmatpush1.msra.mxu0 %v1226
        %1391 = vmatprep.subr.mxu0 0.0
        %1392 = vmatpush1.msra.mxu0 %v1227
        %1393 = vmatprep.subr.mxu0 0.0
        %1394 = vmatpush1.msra.mxu0 %v1228
        %1395 = vmatprep.subr.mxu0 0.0
        %1396 = vmatpush1.msra.mxu0 %v1229
        %1397 = vmatprep.subr.mxu0 0.0
        %1398 = vmatpush1.msra.mxu0 %v1230
        %1399 = vmatprep.subr.mxu0 0.0
        %1400 = vmatpush1.msra.mxu0 %v1231
        %1401 = vmatprep.subr.mxu0 0.0
        %1402 = vmatpush1.msra.mxu0 %v1232
        %1403 = vmatprep.subr.mxu0 0.0
        %1404 = vmatpush1.msra.mxu0 %v1233
        %1405 = vmatprep.subr.mxu0 0.0
        %1406 = vmatpush1.msra.mxu0 %v1234
        %1407 = vmatprep.subr.mxu0 0.0
        %1408 = vmatpush1.msra.mxu0 %v1235
        %1409 = vmatprep.subr.mxu0 0.0
        %1410 = vmatpush1.msra.mxu0 %v1236
        %1411 = vmatprep.subr.mxu0 0.0
        %1412 = vmatpush1.msra.mxu0 %v1237
        %1413 = vmatprep.subr.mxu0 0.0
        %1414 = vmatpush1.msra.mxu0 %v1238
        %1415 = vmatprep.subr.mxu0 0.0
        %1416 = vmatpush1.msra.mxu0 %v1239
        %1417 = vmatprep.subr.mxu0 0.0
        %1418 = vmatpush1.msra.mxu0 %v1240
        %1419 = vmatprep.subr.mxu0 0.0
        %1420 = vmatpush1.msra.mxu0 %v1241
        %1421 = vmatprep.subr.mxu0 0.0
        %1422 = vmatpush1.msra.mxu0 %v1242
        %1423 = vmatprep.subr.mxu0 0.0
        %1424 = vmatpush1.msra.mxu0 %v1243
        %1425 = vmatprep.subr.mxu0 0.0
        %1426 = vmatpush1.msra.mxu0 %v1244
        %1427 = vmatprep.subr.mxu0 0.0
        %1428 = vmatpush1.msra.mxu0 %v1245
        %1429 = vmatprep.subr.mxu0 0.0
        %1430 = vmatpush1.msra.mxu0 %v1246
        %1431 = vmatprep.subr.mxu0 0.0
        %1432 = vmatpush1.msra.mxu0 %v1247
        %1433 = vmatprep.subr.mxu0 0.0
        %1434 = vmatpush1.msra.mxu0 %v1248
        %1435 = vmatprep.subr.mxu0 0.0
        %1436 = vmatpush1.msra.mxu0 %v1249
        %1437 = vmatprep.subr.mxu0 0.0
        %1438 = vmatpush1.msra.mxu0 %v1250
        %1439 = vmatprep.subr.mxu0 0.0
        %1440 = vmatpush1.msra.mxu0 %v1251
        %1441 = vmatprep.subr.mxu0 0.0
        %1442 = vmatpush1.msra.mxu0 %v1252
        %1443 = vmatprep.subr.mxu0 0.0
        %1444 = vmatpush1.msra.mxu0 %v1253
        %1445 = vmatprep.subr.mxu0 0.0
        %1446 = vmatpush1.msra.mxu0 %v1254
        %1447 = vmatprep.mubr.f32.mxu0 %v1256
        %1448 = vmatmul.mubr.f32.gmra.mrb[0].mxu0 %v1255
        %v1449 = vpop.f32.mrb[0].mxu0
        %v1450 = vadd.f32 %v1306, %v1449
        %v1451 = vpop.f32.mrb[0].mxu0
        %1452 = vmatprep.mubr.f32.mxu0 %v1258
        %1453 = vmatmul.mubr.f32.gmra.mrb[0].mxu0 %v1257
        %v1454 = vpop.f32.mrb[0].mxu0
        %v1455 = vadd.f32 %v1311, %v1454
        %v1456 = vpop.f32.mrb[0].mxu0
        %1457 = vmatprep.mubr.f32.mxu0 %v1260
        %1458 = vmatmul.mubr.f32.gmra.mrb[0].mxu0 %v1259
        %v1459 = vpop.f32.mrb[0].mxu0
        %v1460 = vadd.f32 %v1316, %v1459
        %v1461 = vpop.f32.mrb[0].mxu0
        %1462 = vmatprep.mubr.f32.mxu0 %v1262
        %1463 = vmatmul.mubr.f32.gmra.mrb[0].mxu0 %v1261
        %v1464 = vpop.f32.mrb[0].mxu0
        %v1465 = vadd.f32 %v1321, %v1464
        %v1466 = vpop.f32.mrb[0].mxu0
        %1467 = vmatprep.mubr.f32.mxu0 %v1264
        %1468 = vmatmul.mubr.f32.gmra.mrb[0].mxu0 %v1263
        %v1469 = vpop.f32.mrb[0].mxu0
        %v1470 = vadd.f32 %v1326, %v1469
        %v1471 = vpop.f32.mrb[0].mxu0
        %1472 = vmatprep.mubr.f32.mxu0 %v1266
        %1473 = vmatmul.mubr.f32.gmra.mrb[0].mxu0 %v1265
        %v1474 = vpop.f32.mrb[0].mxu0
        %v1475 = vadd.f32 %v1331, %v1474
        %v1476 = vpop.f32.mrb[0].mxu0
        %1477 = vmatprep.mubr.f32.mxu0 %v1268
        %1478 = vmatmul.mubr.f32.gmra.mrb[0].mxu0 %v1267
        %v1479 = vpop.f32.mrb[0].mxu0
        %v1480 = vadd.f32 %v1336, %v1479
        %v1481 = vpop.f32.mrb[0].mxu0
        %1482 = vmatprep.mubr.f32.mxu0 %v1270
        %1483 = vmatmul.mubr.f32.gmra.mrb[0].mxu0 %v1269
        %v1484 = vpop.f32.mrb[0].mxu0
        %v1485 = vadd.f32 %v1341, %v1484
        %v1486 = vpop.f32.mrb[0].mxu0
        %1487 = vmatprep.mubr.f32.mxu0 %v1272
        %1488 = vmatmul.mubr.f32.gmra.mrb[0].mxu0 %v1271
        %v1489 = vpop.f32.mrb[0].mxu0
        %v1490 = vadd.f32 %v1346, %v1489
        %v1491 = vpop.f32.mrb[0].mxu0
        %1492 = vmatprep.mubr.f32.mxu0 %v1274
        %1493 = vmatmul.mubr.f32.gmra.mrb[0].mxu0 %v1273
        %v1494 = vpop.f32.mrb[0].mxu0
        %v1495 = vadd.f32 %v1351, %v1494
        %v1496 = vpop.f32.mrb[0].mxu0
        %1497 = vmatprep.mubr.f32.mxu0 %v1276
        %1498 = vmatmul.mubr.f32.gmra.mrb[0].mxu0 %v1275
        %v1499 = vpop.f32.mrb[0].mxu0
        %v1500 = vadd.f32 %v1356, %v1499
        %v1501 = vpop.f32.mrb[0].mxu0
        %1502 = vmatprep.mubr.f32.mxu0 %v1278
        %1503 = vmatmul.mubr.f32.gmra.mrb[0].mxu0 %v1277
        %v1504 = vpop.f32.mrb[0].mxu0
        %v1505 = vadd.f32 %v1361, %v1504
        %v1506 = vpop.f32.mrb[0].mxu0
        %1507 = vmatprep.mubr.f32.mxu0 %v1280
        %1508 = vmatmul.mubr.f32.gmra.mrb[0].mxu0 %v1279
        %v1509 = vpop.f32.mrb[0].mxu0
        %v1510 = vadd.f32 %v1366, %v1509
        %v1511 = vpop.f32.mrb[0].mxu0
        %1512 = vmatprep.mubr.f32.mxu0 %v1282
        %1513 = vmatmul.mubr.f32.gmra.mrb[0].mxu0 %v1281
        %v1514 = vpop.f32.mrb[0].mxu0
        %v1515 = vadd.f32 %v1371, %v1514
        %v1516 = vpop.f32.mrb[0].mxu0
        %1517 = vmatprep.mubr.f32.mxu0 %v1284
        %1518 = vmatmul.mubr.f32.gmra.mrb[0].mxu0 %v1283
        %v1519 = vpop.f32.mrb[0].mxu0
        %v1520 = vadd.f32 %v1376, %v1519
        %v1521 = vpop.f32.mrb[0].mxu0
        %1522 = vmatprep.mubr.f32.mxu0 %v1286
        %1523 = vmatmul.mubr.f32.gmra.mrb[0].mxu0 %v1285
        %v1524 = vpop.f32.mrb[0].mxu0
        %v1525 = vadd.f32 %v1381, %v1524
        %v1526 = vpop.f32.mrb[0].mxu0
        %1527 = vdwg.mxu0
        %v1528 = vtanh.pop %v1450
        %v1529 = vtanh.pop %v1455
        %v1530 = vtanh.pop %v1460
        %v1531 = vtanh.pop %v1465
        %v1532 = vtanh.pop %v1470
        %v1533 = vtanh.pop %v1475
        %v1534 = vtanh.pop %v1480
        %v1535 = vtanh.pop %v1485
        %v1536 = vtanh.pop %v1490
        %v1537 = vtanh.pop %v1495
        %v1538 = vtanh.pop %v1500
        %v1539 = vtanh.pop %v1505
        %v1540 = vtanh.pop %v1510
        %v1541 = vtanh.pop %v1515
        %v1542 = vtanh.pop %v1520
        %v1543 = vtanh.pop %v1525
        %v1544 = vld [vmem:[%s12] sm:$0xff]
        %v1545 = vld [vmem:[%s12 + $0x8] sm:$0xff]
        %v1546 = vld [vmem:[%s12 + $0x10] sm:$0xff]
        %v1547 = vld [vmem:[%s12 + $0x18] sm:$0xff]
        %v1548 = vld [vmem:[%s12 + $0x20] sm:$0xff]
        %v1549 = vld [vmem:[%s12 + $0x28] sm:$0xff]
        %v1550 = vld [vmem:[%s12 + $0x30] sm:$0xff]
        %v1551 = vld [vmem:[%s12 + $0x38] sm:$0xff]
        %v1552 = vld [vmem:[%s13] sm:$0xff]
        %v1553 = vld [vmem:[%s13 + $0x8] sm:$0xff]
        %v1554 = vld [vmem:[%s13 + $0x10] sm:$0xff]
        %v1555 = vld [vmem:[%s13 + $0x18] sm:$0xff]
        %v1556 = vld [vmem:[%s13 + $0x20] sm:$0xff]
        %v1557 = vld [vmem:[%s13 + $0x28] sm:$0xff]
        %v1558 = vld [vmem:[%s13 + $0x30] sm:$0xff]
        %v1559 = vld [vmem:[%s13 + $0x38] sm:$0xff]
        %1561 = vset.pattern.permute.xlu0 0
        %1562 = vperm.xlu0 %1561, %v1552
        %v1563 = vpop.permute.xlu0 %1562
        %1566 = vset.pattern.permute.xlu0 0
        %1567 = vperm.xlu0 %1566, %v1553
        %v1568 = vpop.permute.xlu0 %1567
        %1571 = vset.pattern.permute.xlu0 0
        %1572 = vperm.xlu0 %1571, %v1554
        %v1573 = vpop.permute.xlu0 %1572
        %1576 = vset.pattern.permute.xlu0 0
        %1577 = vperm.xlu0 %1576, %v1555
        %v1578 = vpop.permute.xlu0 %1577
        %1581 = vset.pattern.permute.xlu0 0
        %1582 = vperm.xlu0 %1581, %v1556
        %v1583 = vpop.permute.xlu0 %1582
        %1586 = vset.pattern.permute.xlu0 0
        %1587 = vperm.xlu0 %1586, %v1557
        %v1588 = vpop.permute.xlu0 %1587
        %1591 = vset.pattern.permute.xlu0 0
        %1592 = vperm.xlu0 %1591, %v1558
        %v1593 = vpop.permute.xlu0 %1592
        %1596 = vset.pattern.permute.xlu0 0
        %1597 = vperm.xlu0 %1596, %v1559
        %v1598 = vpop.permute.xlu0 %1597
        %1600 = vmatprep.subr.mxu0 0.0
        %1601 = vmatpush1.msra.mxu0 %v1528
        %1602 = vmatprep.subr.mxu0 0.0
        %1603 = vmatpush1.msra.mxu0 %v1529
        %1604 = vmatprep.subr.mxu0 0.0
        %1605 = vmatpush1.msra.mxu0 %v1530
        %1606 = vmatprep.subr.mxu0 0.0
        %1607 = vmatpush1.msra.mxu0 %v1531
        %1608 = vmatprep.subr.mxu0 0.0
        %1609 = vmatpush1.msra.mxu0 %v1532
        %1610 = vmatprep.subr.mxu0 0.0
        %1611 = vmatpush1.msra.mxu0 %v1533
        %1612 = vmatprep.subr.mxu0 0.0
        %1613 = vmatpush1.msra.mxu0 %v1534
        %1614 = vmatprep.subr.mxu0 0.0
        %1615 = vmatpush1.msra.mxu0 %v1535
        %1616 = vmatprep.subr.mxu0 0.0
        %1617 = vmatpush1.msra.mxu0 %v1536
        %1618 = vmatprep.subr.mxu0 0.0
        %1619 = vmatpush1.msra.mxu0 %v1537
        %1620 = vmatprep.subr.mxu0 0.0
        %1621 = vmatpush1.msra.mxu0 %v1538
        %1622 = vmatprep.subr.mxu0 0.0
        %1623 = vmatpush1.msra.mxu0 %v1539
        %1624 = vmatprep.subr.mxu0 0.0
        %1625 = vmatpush1.msra.mxu0 %v1540
        %1626 = vmatprep.subr.mxu0 0.0
        %1627 = vmatpush1.msra.mxu0 %v1541
        %1628 = vmatprep.subr.mxu0 0.0
        %1629 = vmatpush1.msra.mxu0 %v1542
        %1630 = vmatprep.subr.mxu0 0.0
        %1631 = vmatpush1.msra.mxu0 %v1543
        %1632 = vmatprep.subr.mxu0 0.0
        %1633 = vmatpush1.msra.mxu0 0.0
        %1634 = vmatprep.subr.mxu0 0.0
        %1635 = vmatpush1.msra.mxu0 0.0
        %1636 = vmatprep.subr.mxu0 0.0
        %1637 = vmatpush1.msra.mxu0 0.0
        %1638 = vmatprep.subr.mxu0 0.0
        %1639 = vmatpush1.msra.mxu0 0.0
        %1640 = vmatprep.subr.mxu0 0.0
        %1641 = vmatpush1.msra.mxu0 0.0
        %1642 = vmatprep.subr.mxu0 0.0
        %1643 = vmatpush1.msra.mxu0 0.0
        %1644 = vmatprep.subr.mxu0 0.0
        %1645 = vmatpush1.msra.mxu0 0.0
        %1646 = vmatprep.subr.mxu0 0.0
        %1647 = vmatpush1.msra.mxu0 0.0
        %1648 = vmatprep.subr.mxu0 0.0
        %1649 = vmatpush1.msra.mxu0 0.0
        %1650 = vmatprep.subr.mxu0 0.0
        %1651 = vmatpush1.msra.mxu0 0.0
        %1652 = vmatprep.subr.mxu0 0.0
        %1653 = vmatpush1.msra.mxu0 0.0
        %1654 = vmatprep.subr.mxu0 0.0
        %1655 = vmatpush1.msra.mxu0 0.0
        %1656 = vmatprep.subr.mxu0 0.0
        %1657 = vmatpush1.msra.mxu0 0.0
        %1658 = vmatprep.subr.mxu0 0.0
        %1659 = vmatpush1.msra.mxu0 0.0
        %1660 = vmatprep.subr.mxu0 0.0
        %1661 = vmatpush1.msra.mxu0 0.0
        %1662 = vmatprep.subr.mxu0 0.0
        %1663 = vmatpush1.msra.mxu0 0.0
        %1664 = vmatprep.mubr.f32.mxu0 0.0
        %1665 = vmatmul.mubr.f32.gmra.mrb[0].mxu0 %v1544
        %v1666 = vpop.f32.mrb[0].mxu0
        %v1667 = vadd.f32 %v1563, %v1666
        %v1668 = vpop.f32.mrb[0].mxu0
        %1669 = vmatprep.mubr.f32.mxu0 0.0
        %1670 = vmatmul.mubr.f32.gmra.mrb[0].mxu0 %v1545
        %v1671 = vpop.f32.mrb[0].mxu0
        %v1672 = vadd.f32 %v1568, %v1671
        %v1673 = vpop.f32.mrb[0].mxu0
        %1674 = vmatprep.mubr.f32.mxu0 0.0
        %1675 = vmatmul.mubr.f32.gmra.mrb[0].mxu0 %v1546
        %v1676 = vpop.f32.mrb[0].mxu0
        %v1677 = vadd.f32 %v1573, %v1676
        %v1678 = vpop.f32.mrb[0].mxu0
        %1679 = vmatprep.mubr.f32.mxu0 0.0
        %1680 = vmatmul.mubr.f32.gmra.mrb[0].mxu0 %v1547
        %v1681 = vpop.f32.mrb[0].mxu0
        %v1682 = vadd.f32 %v1578, %v1681
        %v1683 = vpop.f32.mrb[0].mxu0
        %1684 = vmatprep.mubr.f32.mxu0 0.0
        %1685 = vmatmul.mubr.f32.gmra.mrb[0].mxu0 %v1548
        %v1686 = vpop.f32.mrb[0].mxu0
        %v1687 = vadd.f32 %v1583, %v1686
        %v1688 = vpop.f32.mrb[0].mxu0
        %1689 = vmatprep.mubr.f32.mxu0 0.0
        %1690 = vmatmul.mubr.f32.gmra.mrb[0].mxu0 %v1549
        %v1691 = vpop.f32.mrb[0].mxu0
        %v1692 = vadd.f32 %v1588, %v1691
        %v1693 = vpop.f32.mrb[0].mxu0
        %1694 = vmatprep.mubr.f32.mxu0 0.0
        %1695 = vmatmul.mubr.f32.gmra.mrb[0].mxu0 %v1550
        %v1696 = vpop.f32.mrb[0].mxu0
        %v1697 = vadd.f32 %v1593, %v1696
        %v1698 = vpop.f32.mrb[0].mxu0
        %1699 = vmatprep.mubr.f32.mxu0 0.0
        %1700 = vmatmul.mubr.f32.gmra.mrb[0].mxu0 %v1551
        %v1701 = vpop.f32.mrb[0].mxu0
        %v1702 = vadd.f32 %v1598, %v1701
        %v1703 = vpop.f32.mrb[0].mxu0
        %1704 = vdwg.mxu0
        %v1705 = vtanh.pop %v1667
        %v1706 = vtanh.pop %v1672
        %v1707 = vtanh.pop %v1677
        %v1708 = vtanh.pop %v1682
        %v1709 = vtanh.pop %v1687
        %v1710 = vtanh.pop %v1692
        %v1711 = vtanh.pop %v1697
        %v1712 = vtanh.pop %v1702
        %v1713 = vld [vmem:[%s14] sm:$0xff]
        %v1714 = vld [vmem:[%s14 + $0x8] sm:$0xff]
        %v1715 = vld [vmem:[%s14 + $0x10] sm:$0xff]
        %v1716 = vld [vmem:[%s14 + $0x18] sm:$0xff]
        %v1717 = vld [vmem:[%s14 + $0x20] sm:$0xff]
        %v1718 = vld [vmem:[%s14 + $0x28] sm:$0xff]
        %v1719 = vld [vmem:[%s14 + $0x30] sm:$0xff]
        %v1720 = vld [vmem:[%s14 + $0x38] sm:$0xff]
        %1722 = vset.pattern.permute.xlu0 0
        %1723 = vperm.xlu0 %1722, %v1713
        %v1724 = vpop.permute.xlu0 %1723
        %1727 = vset.pattern.permute.xlu0 0
        %1728 = vperm.xlu0 %1727, %v1714
        %v1729 = vpop.permute.xlu0 %1728
        %1732 = vset.pattern.permute.xlu0 0
        %1733 = vperm.xlu0 %1732, %v1715
        %v1734 = vpop.permute.xlu0 %1733
        %1737 = vset.pattern.permute.xlu0 0
        %1738 = vperm.xlu0 %1737, %v1716
        %v1739 = vpop.permute.xlu0 %1738
        %1742 = vset.pattern.permute.xlu0 0
        %1743 = vperm.xlu0 %1742, %v1717
        %v1744 = vpop.permute.xlu0 %1743
        %1747 = vset.pattern.permute.xlu0 0
        %1748 = vperm.xlu0 %1747, %v1718
        %v1749 = vpop.permute.xlu0 %1748
        %1752 = vset.pattern.permute.xlu0 0
        %1753 = vperm.xlu0 %1752, %v1719
        %v1754 = vpop.permute.xlu0 %1753
        %1757 = vset.pattern.permute.xlu0 0
        %1758 = vperm.xlu0 %1757, %v1720
        %v1759 = vpop.permute.xlu0 %1758
        %v1761 = vmul.f32 %v1705, %v1724
        %v1762 = vmul.f32 %v1706, %v1729
        %v1763 = vmul.f32 %v1707, %v1734
        %v1764 = vmul.f32 %v1708, %v1739
        %v1765 = vmul.f32 %v1709, %v1744
        %v1766 = vmul.f32 %v1710, %v1749
        %v1767 = vmul.f32 %v1711, %v1754
        %v1768 = vmul.f32 %v1712, %v1759
        %v1769 = vadd.f32 %v1761, %v1762
        %v1770 = vadd.f32 %v1769, %v1763
        %v1771 = vadd.f32 %v1770, %v1764
        %v1772 = vadd.f32 %v1771, %v1765
        %v1773 = vadd.f32 %v1772, %v1766
        %v1774 = vadd.f32 %v1773, %v1767
        %v1775 = vadd.f32 %v1774, %v1768
        %v1776 = vrot.slane %v1775, 4
        %v1777 = vadd.f32 %v1775, %v1776
        %v1778 = vrot.slane %v1777, 2
        %v1779 = vadd.f32 %v1777, %v1778
        %v1780 = vrot.slane %v1779, 1
        %v1781 = vadd.f32 %v1779, %v1780
        %v1782 = vld [vmem:[#allocation2] sm:$0x1]
        %1784 = vset.pattern.permute.xlu0 0
        %1785 = vperm.xlu0 %1784, %v1782
        %v1786 = vpop.permute.xlu0 %1785
        %v1788 = vlaneseq
        %v1789 = vshrl.u32 %v1788, 7
        %v1790 = vsub.s32 0, %v1789
        %v1791 = vrot.slane %v1786, %v1790
        %v1792 = vadd.f32 %v1781, %v1791
        %v1793 = vld [vmem:[%s877] sm:$0x1]
        %v1794 = vadd.f32 %v1792, %v1793
        %v1795 = vld [vmem:[%s880] sm:$0x1]
        %v1796 = vadd.f32 %v1794, %v1795
        %1797 = vst [vmem:[%s883] sm:$0x1] %v1796
        %p1798 = scmp.lt.s32.totalorder %s29, 2
        %s1799 = scalar_select %p1798, %s29, 2
        %s1800 = scalar_lea.vmem %s16, %s1799
        // Predicated region
        $region237: #{gcmc_forward.5} parent=219 // pred_check
          %p1801 = pneg %p423
        $region238: #{gcmc_forward.5} parent=219 // pred_check_branch
          %1803 = sbr.rel (%p1801) target = $region240
        $region239: #{gcmc_forward.5} parent=219 // pred_region
          _
        $region240: #{gcmc_forward.5} parent=219 // pred_fallthru
          _
      $region220: #{gcmc_forward.5} parent=5 // pred_fallthru
        _
      %p1804 = scmp.le.s32.totalorder 2, %s24
      // Predicated region
      $region241: #{gcmc_forward.5} parent=5 // pred_check
        %p1805 = pneg %p1804
      $region242: #{gcmc_forward.5} parent=5 // pred_check_branch
        %1807 = sbr.rel (%p1805) target = $region244
      $region243: #{gcmc_forward.5} parent=5 // pred_region
        %s1808 = ssub.s32 %s24, 2
        // Predicated region
        $region245: #{gcmc_forward.5} parent=243 // pred_check
          %p1809 = pneg %p429
        $region246: #{gcmc_forward.5} parent=243 // pred_check_branch
          %1811 = sbr.rel (%p1809) target = $region248
        $region247: #{gcmc_forward.5} parent=243 // pred_region
          %p1812 = scmp.lt.s32.totalorder %s30, 2
          %s1813 = scalar_select %p1812, %s30, 2
          %s1814 = scalar_lea.vmem %s16, %s1813
        $region248: #{gcmc_forward.5} parent=243 // pred_fallthru
          _
      $region244: #{gcmc_forward.5} parent=5 // pred_fallthru
        _
    $region6: #{gcmc_forward.5} parent=1 // loop_footer
      %s28 = sadd.s32 1, %s24
    $region7: #{gcmc_forward.5} parent=1 // loop_footer_branch
      %23 = sbr.rel target = $region3
    $region8: #{gcmc_forward.5} parent=1 // loop_exit
      _

</llo_original>
